<compile_context>
chip_gen: v5e
topology: v5e:2x2
jax: 0.10.0
libtpu: 0.0.40
codegen_flags: <defaults>
</compile_context>

<pallas_src>
import functools
import math

import jax
import jax.numpy as jnp
from jax import lax
from jax.experimental import pallas as pl
from jax.experimental.pallas import tpu as pltpu

# ------------------- synthetic small (lane-dense) QWen config ---------------
VOCAB = 128
HIDDEN = 256
NUM_HEADS = 2
HEAD_DIM = HIDDEN // NUM_HEADS          # 128 == kv_channels (rotary_pct = 1.0)
NUM_KV_HEADS = NUM_HEADS
INTERMEDIATE = 4 * HIDDEN               # 1024
FF = INTERMEDIATE // 2                  # ff_dim_in = 512
NUM_LAYERS = 2
EPS = 1e-6
ROPE_BASE = 10000.0
SEQ = 16


# ------------------------------ fused kernel --------------------------------
def _qwen_layers_kernel(x_ref, cos_ref, sins_ref, lnf_ref,
                        ln1_ref, ln2_ref, qkvw_ref, qkvb_ref, ow_ref,
                        guw_ref, dw_ref,
                        out_ref, hid_ref, res_ref, attn_ref,
                        *, eps, num_heads, head_dim, ff):
    """One grid step == one QWenBlock; VMEM scratch carries hidden/residual."""
    layer = pl.program_id(0)

    @pl.when(layer == 0)
    def _():
        hid_ref[...] = x_ref[...]                 # embeddings
        res_ref[...] = jnp.zeros_like(res_ref)    # residual is None -> 0

    bf16 = jnp.bfloat16
    half = head_dim // 2
    qdim = num_heads * head_dim
    seq = x_ref.shape[0]

    cos = cos_ref[...]                            # [S, head_dim]
    sin_signed = sins_ref[...]                    # [S, head_dim] = [-sin | +sin]

    # Causal mask generated in-kernel (few VPU ops, no O(S^2) HBM array).
    row = lax.broadcasted_iota(jnp.int32, (seq, seq), 0)
    col = lax.broadcasted_iota(jnp.int32, (seq, seq), 1)
    bias = jnp.where(col <= row, 0.0, -1e30).astype(jnp.float32)

    def rmsnorm(h, w):                            # stats stay in f32
        var = jnp.mean(h * h, axis=-1, keepdims=True)
        return (h * lax.rsqrt(var + eps)) * w

    def rope(xh):                                 # xh: [S, head_dim], f32
        # rotate_half via lane-rotate (head_dim is a multiple of 128) with the
        # sign folded into sin_signed; no sub-lane slices/concats.
        return xh * cos + pltpu.roll(xh, shift=half, axis=1) * sin_signed

    # ---- ln_1: fused residual add + RMSNorm ----
    h1 = hid_ref[...] + res_ref[...]
    ln1 = rmsnorm(h1, ln1_ref[...])

    # ---- attention (c_attn -> RoPE -> causal softmax -> c_proj) ----
    qkv = jnp.dot(ln1.astype(bf16), qkvw_ref[...],
                  preferred_element_type=jnp.float32) + qkvb_ref[...]
    q = qkv[:, :qdim]                             # 1/sqrt(Dh) pre-folded into weights
    k = qkv[:, qdim:2 * qdim]
    v_bf = qkv[:, 2 * qdim:3 * qdim].astype(bf16)  # single hoisted cast

    for hidx in range(num_heads):                 # static unroll; 128-lane slices
        sl = slice(hidx * head_dim, (hidx + 1) * head_dim)
        qh = rope(q[:, sl]).astype(bf16)
        kh = rope(k[:, sl]).astype(bf16)
        s = lax.dot_general(qh, kh, (((1,), (1,)), ((), ())),
                            preferred_element_type=jnp.float32) + bias
        s = s - jnp.max(s, axis=-1, keepdims=True)
        p = jnp.exp(s)
        p = p * pl.reciprocal(jnp.sum(p, axis=-1, keepdims=True), approx=True)
        pv = jnp.dot(p.astype(bf16), v_bf[:, sl],
                     preferred_element_type=jnp.float32)
        attn_ref[:, sl] = pv.astype(bf16)         # lane-dense store, no concat

    attn_out = jnp.dot(attn_ref[...], ow_ref[...],
                       preferred_element_type=jnp.float32)   # c_proj, no bias

    # ---- ln_2: fused residual add + RMSNorm ----
    h2 = attn_out + h1
    ln2 = rmsnorm(h2, ln2_ref[...])

    # ---- MLP: fused gate_up matmul + SiluAndMul + down ----
    gu = jnp.dot(ln2.astype(bf16), guw_ref[...],
                 preferred_element_type=jnp.float32)          # [S, 2*FF]
    g, u = gu[:, :ff], gu[:, ff:]
    act = g * lax.logistic(g) * u                             # f32 elementwise
    mlp_out = jnp.dot(act.astype(bf16), dw_ref[...],
                      preferred_element_type=jnp.float32)

    hid_ref[...] = mlp_out
    res_ref[...] = h2

    # ---- final RMSNorm (ln_f) on the last layer ----
    @pl.when(layer == pl.num_programs(0) - 1)
    def _():
        out_ref[...] = rmsnorm(mlp_out + h2, lnf_ref[...])


# ------------------------------ model pieces --------------------------------
def compute_rope(position_ids, dim, base):
    # LinearScaling rotary emb (scale = 1.0) -> standard Llama/Qwen rope tables.
    inv_freq = 1.0 / (base ** (jnp.arange(0, dim, 2, dtype=jnp.float32) / dim))
    freqs = position_ids.astype(jnp.float32)[:, None] * inv_freq[None, :]
    emb = jnp.concatenate([freqs, freqs], axis=-1)             # [S, dim]
    return jnp.cos(emb), jnp.sin(emb)


def init_params(key):
    def nrm(k, shape, scale=0.02):
        return scale * jax.random.normal(k, shape, dtype=jnp.float32)

    keys = jax.random.split(key, 9)
    qdim = NUM_HEADS * HEAD_DIM
    attn_scale = 1.0 / math.sqrt(HEAD_DIM)

    # Fold the 1/sqrt(Dh) attention scale into the q-columns of c_attn at init
    # time (free; deletes the runtime [S,qdim] multiply in the kernel).
    qkv_w = nrm(keys[4], (NUM_LAYERS, HIDDEN, 3 * qdim))
    qkv_w = qkv_w.at[:, :, :qdim].multiply(attn_scale)
    qkv_b = nrm(keys[5], (NUM_LAYERS, 1, 3 * qdim))
    qkv_b = qkv_b.at[:, :, :qdim].multiply(attn_scale)

    params = {
        "wte": nrm(keys[0], (VOCAB, HIDDEN)),
        "lnf_w": 1.0 + 0.1 * jax.random.normal(keys[1], (1, HIDDEN), dtype=jnp.float32),
        # per-layer weights stacked on a leading layer axis
        "ln1_w": 1.0 + 0.1 * jax.random.normal(keys[2], (NUM_LAYERS, 1, HIDDEN), dtype=jnp.float32),
        "ln2_w": 1.0 + 0.1 * jax.random.normal(keys[3], (NUM_LAYERS, 1, HIDDEN), dtype=jnp.float32),
        "qkv_w": qkv_w.astype(jnp.bfloat16),                      # c_attn weight
        "qkv_b": qkv_b,                                            # c_attn bias (f32)
        "o_w": nrm(keys[6], (NUM_LAYERS, qdim, HIDDEN)).astype(jnp.bfloat16),      # no bias
        "gu_w": nrm(keys[7], (NUM_LAYERS, HIDDEN, 2 * FF)).astype(jnp.bfloat16),   # [gate|up]
        "d_w": nrm(keys[8], (NUM_LAYERS, FF, HIDDEN)).astype(jnp.bfloat16),
    }
    return params


def qwen_model_forward(params, input_ids, position_ids):
    hidden = params["wte"][input_ids]                 # [S, H] embedding gather (glue)
    cos, sin = compute_rope(position_ids, HEAD_DIM, ROPE_BASE)
    half = HEAD_DIM // 2
    # Sign-folded sin table so rotate_half is a single lane-rotate in-kernel.
    sin_signed = jnp.concatenate([-sin[:, :half], sin[:, half:]], axis=-1)

    qdim = NUM_HEADS * HEAD_DIM
    S, H, L = SEQ, HIDDEN, NUM_LAYERS

    kernel = functools.partial(
        _qwen_layers_kernel, eps=EPS, num_heads=NUM_HEADS, head_dim=HEAD_DIM, ff=FF)

    def cspec(shape):                 # layer-invariant input (loaded once)
        n = len(shape)
        return pl.BlockSpec(shape, lambda l, _n=n: (0,) * _n)

    def lspec(shape):                 # stacked per-layer weight; squeeze layer dim
        tail = tuple(shape[1:])
        n = len(tail)
        return pl.BlockSpec((None,) + tail, lambda l, _n=n: (l,) + (0,) * _n)

    out = pl.pallas_call(
        kernel,
        grid=(L,),
        in_specs=[
            cspec((S, H)),                 # embeddings
            cspec((S, HEAD_DIM)),          # cos
            cspec((S, HEAD_DIM)),          # sign-folded sin
            cspec((1, H)),                 # ln_f weight
            lspec((L, 1, H)),              # ln_1 weight
            lspec((L, 1, H)),              # ln_2 weight
            lspec((L, H, 3 * qdim)),       # c_attn weight (bf16, scale folded)
            lspec((L, 1, 3 * qdim)),       # c_attn bias
            lspec((L, qdim, H)),           # c_proj weight (bf16)
            lspec((L, H, 2 * FF)),         # gate_up weight (bf16)
            lspec((L, FF, H)),             # down weight (bf16)
        ],
        out_specs=pl.BlockSpec((S, H), lambda l: (0, 0)),
        out_shape=jax.ShapeDtypeStruct((S, H), jnp.float32),
        scratch_shapes=[pltpu.VMEM((S, H), jnp.float32),        # hidden carry
                        pltpu.VMEM((S, H), jnp.float32),        # residual carry
                        pltpu.VMEM((S, qdim), jnp.bfloat16)],   # attn head slab
        compiler_params=pltpu.CompilerParams(
            dimension_semantics=("arbitrary",),        # layers are sequential
            vmem_limit_bytes=32 * 1024 * 1024),        # explicit budget (tiny footprint)
    )(hidden, cos, sin_signed, params["lnf_w"],
      params["ln1_w"], params["ln2_w"], params["qkv_w"], params["qkv_b"],
      params["o_w"], params["gu_w"], params["d_w"])
    return out


# ---------------------------- pure-JAX reference ----------------------------
def _ref_forward(params, input_ids, position_ids):
    bf = jnp.bfloat16

    def mm(a, b):                      # same bf16-in / f32-accumulate as kernel
        return jnp.dot(a.astype(bf), b.astype(bf), preferred_element_type=jnp.float32)

    def rms(x, res, w):
        h = x + res
        var = jnp.mean(h * h, axis=-1, keepdims=True)
        return (h * lax.rsqrt(var + EPS)) * w, h

    half = HEAD_DIM // 2

    def rope(x, cos, sin):             # independent slice-based rotate_half
        x1, x2 = x[:, :half], x[:, half:]
        return jnp.concatenate([x1 * cos[:, :half] - x2 * sin[:, :half],
                                x2 * cos[:, half:] + x1 * sin[:, half:]], axis=-1)

    hidden = params["wte"][input_ids]
    residual = jnp.zeros_like(hidden)
    cos, sin = compute_rope(position_ids, HEAD_DIM, ROPE_BASE)
    qdim = NUM_HEADS * HEAD_DIM
    causal = jnp.tril(jnp.ones((SEQ, SEQ), bool))

    for l in range(NUM_LAYERS):
        ln1, residual = rms(hidden, residual, params["ln1_w"][l])
        qkv = mm(ln1, params["qkv_w"][l]) + params["qkv_b"][l]
        q = qkv[:, :qdim]              # attention scale already folded into c_attn
        k = qkv[:, qdim:2 * qdim]
        v = qkv[:, 2 * qdim:]
        heads = []
        for hh in range(NUM_HEADS):
            sl = slice(hh * HEAD_DIM, (hh + 1) * HEAD_DIM)
            qh = rope(q[:, sl], cos, sin)
            kh = rope(k[:, sl], cos, sin)
            s = mm(qh, kh.T)
            s = jnp.where(causal, s, -1e30)
            p = jax.nn.softmax(s, axis=-1)
            heads.append(mm(p, v[:, sl]))
        attn = jnp.concatenate(heads, axis=-1)
        attn_out = mm(attn, params["o_w"][l])
        ln2, residual = rms(attn_out, residual, params["ln2_w"][l])
        gu = mm(ln2, params["gu_w"][l])
        g, u = gu[:, :FF], gu[:, FF:]
        hidden = mm(g * lax.logistic(g) * u, params["d_w"][l])

    out, _ = rms(hidden, residual, params["lnf_w"])
    return out


# --------------------------------- main -------------------------------------
if __name__ == "__main__":
    key = jax.random.PRNGKey(0)
    pkey, ikey = jax.random.split(key)
    params = init_params(pkey)

    input_ids = jax.random.randint(ikey, (SEQ,), 0, VOCAB, dtype=jnp.int32)
    position_ids = jnp.arange(SEQ, dtype=jnp.int32)

    fwd = jax.jit(qwen_model_forward)
    out = jax.block_until_ready(fwd(params, input_ids, position_ids))

    ref = _ref_forward(params, input_ids, position_ids)
    assert out.shape == (SEQ, HIDDEN)
    assert bool(jnp.all(jnp.isfinite(out)))
    assert bool(jnp.allclose(out, ref, rtol=2e-2, atol=2e-2)), "mismatch vs JAX reference"

    print("KERNEL_OK")
</pallas_src>

<mosaic_0001>
module attributes {stable_mosaic.version = 11 : i64} {
  func.func @_qwen_layers_kernel(%arg0: i32, %arg1: memref<16x256xf32, #tpu.memory_space<vmem>>, %arg2: memref<16x128xf32, #tpu.memory_space<vmem>>, %arg3: memref<16x128xf32, #tpu.memory_space<vmem>>, %arg4: memref<1x256xf32, #tpu.memory_space<vmem>>, %arg5: memref<1x1x256xf32, #tpu.memory_space<vmem>>, %arg6: memref<1x1x256xf32, #tpu.memory_space<vmem>>, %arg7: memref<1x256x768xbf16, #tpu.memory_space<vmem>>, %arg8: memref<1x1x768xf32, #tpu.memory_space<vmem>>, %arg9: memref<1x256x256xbf16, #tpu.memory_space<vmem>>, %arg10: memref<1x256x1024xbf16, #tpu.memory_space<vmem>>, %arg11: memref<1x512x256xbf16, #tpu.memory_space<vmem>>, %arg12: memref<16x256xf32, #tpu.memory_space<vmem>>, %arg13: memref<16x256xf32, #tpu.memory_space<vmem>>, %arg14: memref<16x256xf32, #tpu.memory_space<vmem>>, %arg15: memref<16x256xbf16, #tpu.memory_space<vmem>>) attributes {dimension_semantics = [#tpu.dimension_semantics<arbitrary>], iteration_bounds = array<i64: 2>, scalar_prefetch = 0 : i64, scratch_operands = 3 : i64, tpu.core_type = #tpu.core_type<tc>, window_params = [{pipeline_mode = #tpu.pipeline_mode<synchronous>, transform_indices = @transform_0, window_bounds = array<i64: 16, 256>}, {pipeline_mode = #tpu.pipeline_mode<synchronous>, transform_indices = @transform_1, window_bounds = array<i64: 16, 128>}, {pipeline_mode = #tpu.pipeline_mode<synchronous>, transform_indices = @transform_2, window_bounds = array<i64: 16, 128>}, {pipeline_mode = #tpu.pipeline_mode<synchronous>, transform_indices = @transform_3, window_bounds = array<i64: 1, 256>}, {transform_indices = @transform_4, window_bounds = array<i64: 1, 1, 256>}, {transform_indices = @transform_5, window_bounds = array<i64: 1, 1, 256>}, {transform_indices = @transform_6, window_bounds = array<i64: 1, 256, 768>}, {transform_indices = @transform_7, window_bounds = array<i64: 1, 1, 768>}, {transform_indices = @transform_8, window_bounds = array<i64: 1, 256, 256>}, {transform_indices = @transform_9, window_bounds = array<i64: 1, 256, 1024>}, {transform_indices = @transform_10, window_bounds = array<i64: 1, 512, 256>}, {pipeline_mode = #tpu.pipeline_mode<synchronous>, transform_indices = @transform_11, window_bounds = array<i64: 16, 256>}]} {
    %c0_i32 = arith.constant 0 : i32
    %0 = arith.cmpi eq, %arg0, %c0_i32 : i32
    %1 = arith.extui %0 : i1 to i32
    %c0_i32_0 = arith.constant 0 : i32
    %2 = arith.cmpi ne, %1, %c0_i32_0 : i32
    scf.if %2 {
      %c0_62 = arith.constant 0 : index
      %c0_63 = arith.constant 0 : index
      %139 = vector.load %arg1[%c0_62, %c0_63] : memref<16x256xf32, #tpu.memory_space<vmem>>, vector<16x256xf32>
      %c0_64 = arith.constant 0 : index
      %c0_65 = arith.constant 0 : index
      %140 = vector.load %arg13[%c0_64, %c0_65] : memref<16x256xf32, #tpu.memory_space<vmem>>, vector<16x256xf32>
      tpu.vector_store %arg13[%c0_64, %c0_65], %139 {strides = array<i32>} : memref<16x256xf32, #tpu.memory_space<vmem>>, vector<16x256xf32>,
      %cst_66 = arith.constant 0.000000e+00 : f32
      %141 = vector.broadcast %cst_66 : f32 to vector<16x256xf32>
      %c0_67 = arith.constant 0 : index
      %c0_68 = arith.constant 0 : index
      %142 = vector.load %arg14[%c0_67, %c0_68] : memref<16x256xf32, #tpu.memory_space<vmem>>, vector<16x256xf32>
      tpu.vector_store %arg14[%c0_67, %c0_68], %141 {strides = array<i32>} : memref<16x256xf32, #tpu.memory_space<vmem>>, vector<16x256xf32>,
    } else {
    }
    %c0 = arith.constant 0 : index
    %c0_1 = arith.constant 0 : index
    %3 = vector.load %arg2[%c0, %c0_1] : memref<16x128xf32, #tpu.memory_space<vmem>>, vector<16x128xf32>
    %c0_2 = arith.constant 0 : index
    %c0_3 = arith.constant 0 : index
    %4 = vector.load %arg3[%c0_2, %c0_3] : memref<16x128xf32, #tpu.memory_space<vmem>>, vector<16x128xf32>
    %5 = tpu.iota {dimensions = array<i32: 0>} : vector<16x16xi32>
    %6 = tpu.iota {dimensions = array<i32: 1>} : vector<16x16xi32>
    %7 = arith.cmpi sle, %6, %5 : vector<16x16xi32>
    %cst = arith.constant 0.000000e+00 : f32
    %cst_4 = arith.constant -1.000000e+30 : f32
    %8 = vector.broadcast %cst : f32 to vector<16x16xf32>
    %9 = vector.broadcast %cst_4 : f32 to vector<16x16xf32>
    %10 = arith.select %7, %8, %9 : vector<16x16xi1>, vector<16x16xf32>
    %c0_5 = arith.constant 0 : index
    %c0_6 = arith.constant 0 : index
    %11 = vector.load %arg13[%c0_5, %c0_6] : memref<16x256xf32, #tpu.memory_space<vmem>>, vector<16x256xf32>
    %c0_7 = arith.constant 0 : index
    %c0_8 = arith.constant 0 : index
    %12 = vector.load %arg14[%c0_7, %c0_8] : memref<16x256xf32, #tpu.memory_space<vmem>>, vector<16x256xf32>
    %13 = arith.addf %11, %12 : vector<16x256xf32>
    %c0_9 = arith.constant 0 : index
    %c0_10 = arith.constant 0 : index
    %c0_11 = arith.constant 0 : index
    %14 = vector.load %arg5[%c0_9, %c0_10, %c0_11] : memref<1x1x256xf32, #tpu.memory_space<vmem>>, vector<1x1x256xf32>
    %15 = vector.shape_cast %14 : vector<1x1x256xf32> to vector<1x256xf32>
    %16 = arith.mulf %13, %13 : vector<16x256xf32>
    %cst_12 = arith.constant dense<0.000000e+00> : vector<16xf32>
    %17 = vector.multi_reduction <add>, %16, %cst_12 [1] : vector<16x256xf32> to vector<16xf32>
    %18 = vector.shape_cast %17 : vector<16xf32> to vector<16x1xf32>
    %cst_13 = arith.constant 2.560000e+02 : f32
    %19 = vector.broadcast %cst_13 : f32 to vector<16x1xf32>
    %20 = arith.divf %18, %19 : vector<16x1xf32>
    %cst_14 = arith.constant 9.99999997E-7 : f32
    %21 = vector.broadcast %cst_14 : f32 to vector<16x1xf32>
    %22 = arith.addf %20, %21 : vector<16x1xf32>
    %23 = math.rsqrt %22 : vector<16x1xf32>
    %24 = vector.broadcast %23 : vector<16x1xf32> to vector<16x256xf32>
    %25 = arith.mulf %13, %24 : vector<16x256xf32>
    %26 = vector.broadcast %15 : vector<1x256xf32> to vector<16x256xf32>
    %27 = arith.mulf %25, %26 : vector<16x256xf32>
    %28 = arith.truncf %27 : vector<16x256xf32> to vector<16x256xbf16>
    %c0_15 = arith.constant 0 : index
    %c0_16 = arith.constant 0 : index
    %c0_17 = arith.constant 0 : index
    %29 = vector.load %arg7[%c0_15, %c0_16, %c0_17] : memref<1x256x768xbf16, #tpu.memory_space<vmem>>, vector<1x256x768xbf16>
    %30 = vector.shape_cast %29 : vector<1x256x768xbf16> to vector<256x768xbf16>
    %cst_18 = arith.constant dense<0.000000e+00> : vector<16x768xf32>
    %31 = tpu.matmul %28, %30, %cst_18 {dimension_numbers = #tpu.dot_dimension_numbers<[1], [0], [0], [1], [0, 0, 1, 1], [], []>} : vector<16x256xbf16>, vector<256x768xbf16>, vector<16x768xf32> -> vector<16x768xf32>
    %c0_19 = arith.constant 0 : index
    %c0_20 = arith.constant 0 : index
    %c0_21 = arith.constant 0 : index
    %32 = vector.load %arg8[%c0_19, %c0_20, %c0_21] : memref<1x1x768xf32, #tpu.memory_space<vmem>>, vector<1x1x768xf32>
    %33 = vector.shape_cast %32 : vector<1x1x768xf32> to vector<1x768xf32>
    %34 = vector.broadcast %33 : vector<1x768xf32> to vector<16x768xf32>
    %35 = arith.addf %31, %34 : vector<16x768xf32>
    %36 = vector.extract_strided_slice %35 {offsets = [0, 0], sizes = [16, 256], strides = [1, 1]} : vector<16x768xf32> to vector<16x256xf32>
    %37 = vector.extract_strided_slice %35 {offsets = [0, 256], sizes = [16, 256], strides = [1, 1]} : vector<16x768xf32> to vector<16x256xf32>
    %38 = vector.extract_strided_slice %35 {offsets = [0, 512], sizes = [16, 256], strides = [1, 1]} : vector<16x768xf32> to vector<16x256xf32>
    %39 = arith.truncf %38 : vector<16x256xf32> to vector<16x256xbf16>
    %40 = vector.extract_strided_slice %36 {offsets = [0, 0], sizes = [16, 128], strides = [1, 1]} : vector<16x256xf32> to vector<16x128xf32>
    %41 = arith.mulf %40, %3 : vector<16x128xf32>
    %c64_i32 = arith.constant 64 : i32
    %42 = tpu.dynamic_rotate %40 by %c64_i32 dim 1 : vector<16x128xf32>, i32 -> vector<16x128xf32>
    %43 = arith.mulf %42, %4 : vector<16x128xf32>
    %44 = arith.addf %41, %43 : vector<16x128xf32>
    %45 = arith.truncf %44 : vector<16x128xf32> to vector<16x128xbf16>
    %46 = vector.extract_strided_slice %37 {offsets = [0, 0], sizes = [16, 128], strides = [1, 1]} : vector<16x256xf32> to vector<16x128xf32>
    %47 = arith.mulf %46, %3 : vector<16x128xf32>
    %c64_i32_22 = arith.constant 64 : i32
    %48 = tpu.dynamic_rotate %46 by %c64_i32_22 dim 1 : vector<16x128xf32>, i32 -> vector<16x128xf32>
    %49 = arith.mulf %48, %4 : vector<16x128xf32>
    %50 = arith.addf %47, %49 : vector<16x128xf32>
    %51 = arith.truncf %50 : vector<16x128xf32> to vector<16x128xbf16>
    %cst_23 = arith.constant dense<0.000000e+00> : vector<16x16xf32>
    %52 = tpu.matmul %45, %51, %cst_23 {dimension_numbers = #tpu.dot_dimension_numbers<[1], [1], [0], [0], [0, 0, 1, 0], [], []>} : vector<16x128xbf16>, vector<16x128xbf16>, vector<16x16xf32> -> vector<16x16xf32>
    %53 = arith.addf %52, %10 : vector<16x16xf32>
    %cst_24 = arith.constant dense<0xFF800000> : vector<16xf32>
    %54 = vector.multi_reduction <maximumf>, %53, %cst_24 [1] : vector<16x16xf32> to vector<16xf32>
    %55 = vector.shape_cast %54 : vector<16xf32> to vector<16x1xf32>
    %56 = vector.broadcast %55 : vector<16x1xf32> to vector<16x16xf32>
    %57 = arith.subf %53, %56 : vector<16x16xf32>
    %58 = math.exp %57 : vector<16x16xf32>
    %cst_25 = arith.constant dense<0.000000e+00> : vector<16xf32>
    %59 = vector.multi_reduction <add>, %58, %cst_25 [1] : vector<16x16xf32> to vector<16xf32>
    %60 = vector.shape_cast %59 : vector<16xf32> to vector<16x1xf32>
    %61 = tpu.reciprocal %60 {approx = true} : vector<16x1xf32> -> vector<16x1xf32>
    %62 = vector.broadcast %61 : vector<16x1xf32> to vector<16x16xf32>
    %63 = arith.mulf %58, %62 : vector<16x16xf32>
    %64 = arith.truncf %63 : vector<16x16xf32> to vector<16x16xbf16>
    %65 = vector.extract_strided_slice %39 {offsets = [0, 0], sizes = [16, 128], strides = [1, 1]} : vector<16x256xbf16> to vector<16x128xbf16>
    %cst_26 = arith.constant dense<0.000000e+00> : vector<16x128xf32>
    %66 = tpu.matmul %64, %65, %cst_26 {dimension_numbers = #tpu.dot_dimension_numbers<[1], [0], [0], [1], [0, 0, 1, 1], [], []>} : vector<16x16xbf16>, vector<16x128xbf16>, vector<16x128xf32> -> vector<16x128xf32>
    %67 = arith.truncf %66 : vector<16x128xf32> to vector<16x128xbf16>
    %c0_27 = arith.constant 0 : index
    %c0_28 = arith.constant 0 : index
    %68 = vector.load %arg15[%c0_27, %c0_28] : memref<16x256xbf16, #tpu.memory_space<vmem>>, vector<16x128xbf16>
    tpu.vector_store %arg15[%c0_27, %c0_28], %67 {strides = array<i32>} : memref<16x256xbf16, #tpu.memory_space<vmem>>, vector<16x128xbf16>,
    %69 = vector.extract_strided_slice %36 {offsets = [0, 128], sizes = [16, 128], strides = [1, 1]} : vector<16x256xf32> to vector<16x128xf32>
    %70 = arith.mulf %69, %3 : vector<16x128xf32>
    %c64_i32_29 = arith.constant 64 : i32
    %71 = tpu.dynamic_rotate %69 by %c64_i32_29 dim 1 : vector<16x128xf32>, i32 -> vector<16x128xf32>
    %72 = arith.mulf %71, %4 : vector<16x128xf32>
    %73 = arith.addf %70, %72 : vector<16x128xf32>
    %74 = arith.truncf %73 : vector<16x128xf32> to vector<16x128xbf16>
    %75 = vector.extract_strided_slice %37 {offsets = [0, 128], sizes = [16, 128], strides = [1, 1]} : vector<16x256xf32> to vector<16x128xf32>
    %76 = arith.mulf %75, %3 : vector<16x128xf32>
    %c64_i32_30 = arith.constant 64 : i32
    %77 = tpu.dynamic_rotate %75 by %c64_i32_30 dim 1 : vector<16x128xf32>, i32 -> vector<16x128xf32>
    %78 = arith.mulf %77, %4 : vector<16x128xf32>
    %79 = arith.addf %76, %78 : vector<16x128xf32>
    %80 = arith.truncf %79 : vector<16x128xf32> to vector<16x128xbf16>
    %cst_31 = arith.constant dense<0.000000e+00> : vector<16x16xf32>
    %81 = tpu.matmul %74, %80, %cst_31 {dimension_numbers = #tpu.dot_dimension_numbers<[1], [1], [0], [0], [0, 0, 1, 0], [], []>} : vector<16x128xbf16>, vector<16x128xbf16>, vector<16x16xf32> -> vector<16x16xf32>
    %82 = arith.addf %81, %10 : vector<16x16xf32>
    %cst_32 = arith.constant dense<0xFF800000> : vector<16xf32>
    %83 = vector.multi_reduction <maximumf>, %82, %cst_32 [1] : vector<16x16xf32> to vector<16xf32>
    %84 = vector.shape_cast %83 : vector<16xf32> to vector<16x1xf32>
    %85 = vector.broadcast %84 : vector<16x1xf32> to vector<16x16xf32>
    %86 = arith.subf %82, %85 : vector<16x16xf32>
    %87 = math.exp %86 : vector<16x16xf32>
    %cst_33 = arith.constant dense<0.000000e+00> : vector<16xf32>
    %88 = vector.multi_reduction <add>, %87, %cst_33 [1] : vector<16x16xf32> to vector<16xf32>
    %89 = vector.shape_cast %88 : vector<16xf32> to vector<16x1xf32>
    %90 = tpu.reciprocal %89 {approx = true} : vector<16x1xf32> -> vector<16x1xf32>
    %91 = vector.broadcast %90 : vector<16x1xf32> to vector<16x16xf32>
    %92 = arith.mulf %87, %91 : vector<16x16xf32>
    %93 = arith.truncf %92 : vector<16x16xf32> to vector<16x16xbf16>
    %94 = vector.extract_strided_slice %39 {offsets = [0, 128], sizes = [16, 128], strides = [1, 1]} : vector<16x256xbf16> to vector<16x128xbf16>
    %cst_34 = arith.constant dense<0.000000e+00> : vector<16x128xf32>
    %95 = tpu.matmul %93, %94, %cst_34 {dimension_numbers = #tpu.dot_dimension_numbers<[1], [0], [0], [1], [0, 0, 1, 1], [], []>} : vector<16x16xbf16>, vector<16x128xbf16>, vector<16x128xf32> -> vector<16x128xf32>
    %96 = arith.truncf %95 : vector<16x128xf32> to vector<16x128xbf16>
    %c0_35 = arith.constant 0 : index
    %c128 = arith.constant 128 : index
    %97 = vector.load %arg15[%c0_35, %c128] : memref<16x256xbf16, #tpu.memory_space<vmem>>, vector<16x128xbf16>
    tpu.vector_store %arg15[%c0_35, %c128], %96 {strides = array<i32>} : memref<16x256xbf16, #tpu.memory_space<vmem>>, vector<16x128xbf16>,
    %c0_36 = arith.constant 0 : index
    %c0_37 = arith.constant 0 : index
    %98 = vector.load %arg15[%c0_36, %c0_37] : memref<16x256xbf16, #tpu.memory_space<vmem>>, vector<16x256xbf16>
    %c0_38 = arith.constant 0 : index
    %c0_39 = arith.constant 0 : index
    %c0_40 = arith.constant 0 : index
    %99 = vector.load %arg9[%c0_38, %c0_39, %c0_40] : memref<1x256x256xbf16, #tpu.memory_space<vmem>>, vector<1x256x256xbf16>
    %100 = vector.shape_cast %99 : vector<1x256x256xbf16> to vector<256x256xbf16>
    %cst_41 = arith.constant dense<0.000000e+00> : vector<16x256xf32>
    %101 = tpu.matmul %98, %100, %cst_41 {dimension_numbers = #tpu.dot_dimension_numbers<[1], [0], [0], [1], [0, 0, 1, 1], [], []>} : vector<16x256xbf16>, vector<256x256xbf16>, vector<16x256xf32> -> vector<16x256xf32>
    %102 = arith.addf %101, %13 : vector<16x256xf32>
    %c0_42 = arith.constant 0 : index
    %c0_43 = arith.constant 0 : index
    %c0_44 = arith.constant 0 : index
    %103 = vector.load %arg6[%c0_42, %c0_43, %c0_44] : memref<1x1x256xf32, #tpu.memory_space<vmem>>, vector<1x1x256xf32>
    %104 = vector.shape_cast %103 : vector<1x1x256xf32> to vector<1x256xf32>
    %105 = arith.mulf %102, %102 : vector<16x256xf32>
    %cst_45 = arith.constant dense<0.000000e+00> : vector<16xf32>
    %106 = vector.multi_reduction <add>, %105, %cst_45 [1] : vector<16x256xf32> to vector<16xf32>
    %107 = vector.shape_cast %106 : vector<16xf32> to vector<16x1xf32>
    %cst_46 = arith.constant 2.560000e+02 : f32
    %108 = vector.broadcast %cst_46 : f32 to vector<16x1xf32>
    %109 = arith.divf %107, %108 : vector<16x1xf32>
    %cst_47 = arith.constant 9.99999997E-7 : f32
    %110 = vector.broadcast %cst_47 : f32 to vector<16x1xf32>
    %111 = arith.addf %109, %110 : vector<16x1xf32>
    %112 = math.rsqrt %111 : vector<16x1xf32>
    %113 = vector.broadcast %112 : vector<16x1xf32> to vector<16x256xf32>
    %114 = arith.mulf %102, %113 : vector<16x256xf32>
    %115 = vector.broadcast %104 : vector<1x256xf32> to vector<16x256xf32>
    %116 = arith.mulf %114, %115 : vector<16x256xf32>
    %117 = arith.truncf %116 : vector<16x256xf32> to vector<16x256xbf16>
    %c0_48 = arith.constant 0 : index
    %c0_49 = arith.constant 0 : index
    %c0_50 = arith.constant 0 : index
    %118 = vector.load %arg10[%c0_48, %c0_49, %c0_50] : memref<1x256x1024xbf16, #tpu.memory_space<vmem>>, vector<1x256x1024xbf16>
    %119 = vector.shape_cast %118 : vector<1x256x1024xbf16> to vector<256x1024xbf16>
    %cst_51 = arith.constant dense<0.000000e+00> : vector<16x1024xf32>
    %120 = tpu.matmul %117, %119, %cst_51 {dimension_numbers = #tpu.dot_dimension_numbers<[1], [0], [0], [1], [0, 0, 1, 1], [], []>} : vector<16x256xbf16>, vector<256x1024xbf16>, vector<16x1024xf32> -> vector<16x1024xf32>
    %121 = vector.extract_strided_slice %120 {offsets = [0, 0], sizes = [16, 512], strides = [1, 1]} : vector<16x1024xf32> to vector<16x512xf32>
    %122 = vector.extract_strided_slice %120 {offsets = [0, 512], sizes = [16, 512], strides = [1, 1]} : vector<16x1024xf32> to vector<16x512xf32>
    %123 = arith.negf %121 : vector<16x512xf32>
    %124 = math.exp %123 : vector<16x512xf32>
    %cst_52 = arith.constant 1.000000e+00 : f32
    %125 = vector.broadcast %cst_52 : f32 to vector<16x512xf32>
    %126 = arith.addf %125, %124 : vector<16x512xf32>
    %127 = arith.divf %125, %126 : vector<16x512xf32>
    %128 = arith.mulf %121, %127 : vector<16x512xf32>
    %129 = arith.mulf %128, %122 : vector<16x512xf32>
    %130 = arith.truncf %129 : vector<16x512xf32> to vector<16x512xbf16>
    %c0_53 = arith.constant 0 : index
    %c0_54 = arith.constant 0 : index
    %c0_55 = arith.constant 0 : index
    %131 = vector.load %arg11[%c0_53, %c0_54, %c0_55] : memref<1x512x256xbf16, #tpu.memory_space<vmem>>, vector<1x512x256xbf16>
    %132 = vector.shape_cast %131 : vector<1x512x256xbf16> to vector<512x256xbf16>
    %cst_56 = arith.constant dense<0.000000e+00> : vector<16x256xf32>
    %133 = tpu.matmul %130, %132, %cst_56 {dimension_numbers = #tpu.dot_dimension_numbers<[1], [0], [0], [1], [0, 0, 1, 1], [], []>} : vector<16x512xbf16>, vector<512x256xbf16>, vector<16x256xf32> -> vector<16x256xf32>
    %c0_57 = arith.constant 0 : index
    %c0_58 = arith.constant 0 : index
    %134 = vector.load %arg13[%c0_57, %c0_58] : memref<16x256xf32, #tpu.memory_space<vmem>>, vector<16x256xf32>
    tpu.vector_store %arg13[%c0_57, %c0_58], %133 {strides = array<i32>} : memref<16x256xf32, #tpu.memory_space<vmem>>, vector<16x256xf32>,
    %c0_59 = arith.constant 0 : index
    %c0_60 = arith.constant 0 : index
    %135 = vector.load %arg14[%c0_59, %c0_60] : memref<16x256xf32, #tpu.memory_space<vmem>>, vector<16x256xf32>
    tpu.vector_store %arg14[%c0_59, %c0_60], %102 {strides = array<i32>} : memref<16x256xf32, #tpu.memory_space<vmem>>, vector<16x256xf32>,
    %c1_i32 = arith.constant 1 : i32
    %136 = arith.cmpi eq, %arg0, %c1_i32 : i32
    %137 = arith.extui %136 : i1 to i32
    %c0_i32_61 = arith.constant 0 : i32
    %138 = arith.cmpi ne, %137, %c0_i32_61 : i32
    scf.if %138 {
      %139 = arith.addf %133, %102 : vector<16x256xf32>
      %c0_62 = arith.constant 0 : index
      %c0_63 = arith.constant 0 : index
      %140 = vector.load %arg4[%c0_62, %c0_63] : memref<1x256xf32, #tpu.memory_space<vmem>>, vector<1x256xf32>
      %141 = arith.mulf %139, %139 : vector<16x256xf32>
      %cst_64 = arith.constant dense<0.000000e+00> : vector<16xf32>
      %142 = vector.multi_reduction <add>, %141, %cst_64 [1] : vector<16x256xf32> to vector<16xf32>
      %143 = vector.shape_cast %142 : vector<16xf32> to vector<16x1xf32>
      %cst_65 = arith.constant 2.560000e+02 : f32
      %144 = vector.broadcast %cst_65 : f32 to vector<16x1xf32>
      %145 = arith.divf %143, %144 : vector<16x1xf32>
      %cst_66 = arith.constant 9.99999997E-7 : f32
      %146 = vector.broadcast %cst_66 : f32 to vector<16x1xf32>
      %147 = arith.addf %145, %146 : vector<16x1xf32>
      %148 = math.rsqrt %147 : vector<16x1xf32>
      %149 = vector.broadcast %148 : vector<16x1xf32> to vector<16x256xf32>
      %150 = arith.mulf %139, %149 : vector<16x256xf32>
      %151 = vector.broadcast %140 : vector<1x256xf32> to vector<16x256xf32>
      %152 = arith.mulf %150, %151 : vector<16x256xf32>
      %c0_67 = arith.constant 0 : index
      %c0_68 = arith.constant 0 : index
      %153 = vector.load %arg12[%c0_67, %c0_68] : memref<16x256xf32, #tpu.memory_space<vmem>>, vector<16x256xf32>
      tpu.vector_store %arg12[%c0_67, %c0_68], %152 {strides = array<i32>} : memref<16x256xf32, #tpu.memory_space<vmem>>, vector<16x256xf32>,
    } else {
    }
    return
  }
  func.func @transform_0(%arg0: i32) -> (i32, i32) {
    %c0_i32 = arith.constant 0 : i32
    %c0_i32_0 = arith.constant 0 : i32
    %c0_i32_1 = arith.constant 0 : i32
    return %c0_i32, %c0_i32_0 : i32, i32
  }
  func.func @transform_1(%arg0: i32) -> (i32, i32) {
    %c0_i32 = arith.constant 0 : i32
    %c0_i32_0 = arith.constant 0 : i32
    %c0_i32_1 = arith.constant 0 : i32
    return %c0_i32, %c0_i32_0 : i32, i32
  }
  func.func @transform_2(%arg0: i32) -> (i32, i32) {
    %c0_i32 = arith.constant 0 : i32
    %c0_i32_0 = arith.constant 0 : i32
    %c0_i32_1 = arith.constant 0 : i32
    return %c0_i32, %c0_i32_0 : i32, i32
  }
  func.func @transform_3(%arg0: i32) -> (i32, i32) {
    %c0_i32 = arith.constant 0 : i32
    %c0_i32_0 = arith.constant 0 : i32
    %c0_i32_1 = arith.constant 0 : i32
    return %c0_i32, %c0_i32_0 : i32, i32
  }
  func.func @transform_4(%arg0: i32) -> (i32, i32, i32) {
    %c0_i32 = arith.constant 0 : i32
    %c0_i32_0 = arith.constant 0 : i32
    %c0_i32_1 = arith.constant 0 : i32
    return %arg0, %c0_i32, %c0_i32_0 : i32, i32, i32
  }
  func.func @transform_5(%arg0: i32) -> (i32, i32, i32) {
    %c0_i32 = arith.constant 0 : i32
    %c0_i32_0 = arith.constant 0 : i32
    %c0_i32_1 = arith.constant 0 : i32
    return %arg0, %c0_i32, %c0_i32_0 : i32, i32, i32
  }
  func.func @transform_6(%arg0: i32) -> (i32, i32, i32) {
    %c0_i32 = arith.constant 0 : i32
    %c0_i32_0 = arith.constant 0 : i32
    %c0_i32_1 = arith.constant 0 : i32
    return %arg0, %c0_i32, %c0_i32_0 : i32, i32, i32
  }
  func.func @transform_7(%arg0: i32) -> (i32, i32, i32) {
    %c0_i32 = arith.constant 0 : i32
    %c0_i32_0 = arith.constant 0 : i32
    %c0_i32_1 = arith.constant 0 : i32
    return %arg0, %c0_i32, %c0_i32_0 : i32, i32, i32
  }
  func.func @transform_8(%arg0: i32) -> (i32, i32, i32) {
    %c0_i32 = arith.constant 0 : i32
    %c0_i32_0 = arith.constant 0 : i32
    %c0_i32_1 = arith.constant 0 : i32
    return %arg0, %c0_i32, %c0_i32_0 : i32, i32, i32
  }
  func.func @transform_9(%arg0: i32) -> (i32, i32, i32) {
    %c0_i32 = arith.constant 0 : i32
    %c0_i32_0 = arith.constant 0 : i32
    %c0_i32_1 = arith.constant 0 : i32
    return %arg0, %c0_i32, %c0_i32_0 : i32, i32, i32
  }
  func.func @transform_10(%arg0: i32) -> (i32, i32, i32) {
    %c0_i32 = arith.constant 0 : i32
    %c0_i32_0 = arith.constant 0 : i32
    %c0_i32_1 = arith.constant 0 : i32
    return %arg0, %c0_i32, %c0_i32_0 : i32, i32, i32
  }
  func.func @transform_11(%arg0: i32) -> (i32, i32) {
    %c0_i32 = arith.constant 0 : i32
    %c0_i32_0 = arith.constant 0 : i32
    %c0_i32_1 = arith.constant 0 : i32
    return %c0_i32, %c0_i32_0 : i32, i32
  }
}

</mosaic_0001>

<llo_original>
// kernel: qwen_model_forward.1
$region0: #{qwen_model_forward.1}
  #allocation0 [shape = 'u32[]', space=smem, size = 0x4, offset = 0x4, fixed_abs, tag = 'smem constant byte address 0x4 - core index']
  #allocation1 [shape = 'u32[72,128]{1,0:T(1,128)}', space=vmem, size = 0x9000, scoped, tag = 'internal scratch']
  #allocation2 [shape = 'f32[16,256]{1,0:T(8,128)}', space=vmem, size = 0x4000, scoped, tag = 'scratch operand']
  #allocation3 [shape = 'f32[16,256]{1,0:T(8,128)}', space=vmem, size = 0x4000, scoped, tag = 'scratch operand']
  #allocation4 [shape = 'bf16[16,256]{1,0:T(8,128)(2,1)}', space=vmem, size = 0x2000, scoped, tag = 'scratch operand']
  %s0 = inlined_call_operand.vmem [shape: f32[16,256], index: 0, kind: input, shape index: {}]
  %s1 = inlined_call_operand.vmem [shape: f32[16,128], index: 1, kind: input, shape index: {}]
  %s2 = inlined_call_operand.vmem [shape: f32[16,128], index: 2, kind: input, shape index: {}]
  %s3 = inlined_call_operand.vmem [shape: f32[1,256], index: 3, kind: input, shape index: {}]
  %s4 = inlined_call_operand.vmem [shape: f32[2,1,256], index: 4, kind: input, shape index: {}]
  %s5 = inlined_call_operand.vmem [shape: f32[2,1,256], index: 5, kind: input, shape index: {}]
  %s6 = inlined_call_operand.hbm [shape: bf16[2,256,768], index: 6, kind: input, shape index: {}]
  %s7 = inlined_call_operand.vmem [shape: f32[2,1,768], index: 7, kind: input, shape index: {}]
  %s8 = inlined_call_operand.hbm [shape: bf16[2,256,256], index: 8, kind: input, shape index: {}]
  %s9 = inlined_call_operand.hbm [shape: bf16[2,256,1024], index: 9, kind: input, shape index: {}]
  %s10 = inlined_call_operand.hbm [shape: bf16[2,512,256], index: 10, kind: input, shape index: {}]
  %s11 = inlined_call_operand.hbm [shape: f32[16,256], index: 11, kind: output, shape index: {}]
  %s12 = sld [smem:[#allocation0]]
  $region101: #{qwen_model_forward.1} parent=0
    _
  %s14 = ssub.s32 1, %s12
  %s15 = scalar_select 0, %s14, %s12
  $region1: #{qwen_model_forward.1} parent=0
    #allocation5 [shape = 'u8[786432]{0}', space=vmem, size = 0xc0000, scoped, tag = 'input window, operand 6']
    #allocation6 [shape = 's32[2]{0}', space=sflag, size = 0x8, scoped, tag = 'scoped memory for qwen_model_forward.1']
    #allocation7 [shape = 's32[2]{0}', space=sflag, size = 0x8, scoped, tag = 'scoped memory for qwen_model_forward.1']
    #allocation8 [shape = 'u8[262144]{0}', space=vmem, size = 0x40000, scoped, tag = 'input window, operand 8']
    #allocation9 [shape = 's32[2]{0}', space=sflag, size = 0x8, scoped, tag = 'scoped memory for qwen_model_forward.1']
    #allocation10 [shape = 'u8[1048576]{0}', space=vmem, size = 0x100000, scoped, tag = 'input window, operand 9']
    #allocation11 [shape = 'u8[524288]{0}', space=vmem, size = 0x80000, scoped, tag = 'input window, operand 10']
    #allocation12 [shape = 's32[2]{0}', space=sflag, size = 0x8, scoped, tag = 'scoped memory for qwen_model_forward.1']
    #allocation13 [shape = 'u8[16384]{0}', space=vmem, size = 0x4000, scoped, tag = 'output window, operand 0, single buffered']
    %16 = vsyncpa [#allocation6], 0
    %s17 = scalar_lea.sflag [#allocation6], 1
    %18 = vsyncpa %s17, 0
    %19 = vsyncpa [#allocation9], 0
    %s20 = scalar_lea.sflag [#allocation9], 1
    %21 = vsyncpa %s20, 0
    %22 = vsyncpa [#allocation12], 0
    %s23 = scalar_lea.sflag [#allocation12], 1
    %24 = vsyncpa %s23, 0
    %25 = vsyncpa [#allocation7], 0
    loop: start=0, step=1, limit=4
    $region2: #{qwen_model_forward.1} parent=1 // loop_pre_header
      _
    $region3: #{qwen_model_forward.1} parent=1 // loop_header
      %s27 = sphi 0, %s31
      %p28 = scmp.ge.s32.totalorder %s27, 4
      %s35 = sphi 0, %s35
      %s37 = sphi 0, %s35
      %s38 = sphi 0, %s37
      %s52 = sphi 0, %s38
      %s56 = sphi 0, %s56
      %s58 = sphi 0, %s56
      %s59 = sphi 0, %s58
      %s73 = sphi 0, %s59
      %s77 = sphi 0, %s77
      %s79 = sphi 0, %s77
      %s80 = sphi 0, %s79
      %s94 = sphi 0, %s80
      %s98 = sphi 0, %s98
      %s100 = sphi 0, %s98
      %s101 = sphi 0, %s100
      %s115 = sphi 0, %s101
      %s121 = sphi 0, %s123
      %s124 = sphi 0, %s121
      %s125 = sphi 0, %s124
      %s141 = sphi 0, %s125
      %s147 = sphi 0, %s149
      %s150 = sphi 0, %s147
      %s151 = sphi 0, %s150
      %s167 = sphi 0, %s151
      %s173 = sphi 0, %s175
      %s176 = sphi 0, %s173
      %s177 = sphi 0, %s176
      %s193 = sphi 0, %s177
      %s199 = sphi 0, %s201
      %s202 = sphi 0, %s199
      %s203 = sphi 0, %s202
      %s219 = sphi 0, %s203
      %s225 = sphi 0, %s227
      %s228 = sphi 0, %s225
      %s229 = sphi 0, %s228
      %s245 = sphi 0, %s229
      %s251 = sphi 0, %s253
      %s254 = sphi 0, %s251
      %s255 = sphi 0, %s254
      %s271 = sphi 0, %s255
      %s277 = sphi 0, %s279
      %s280 = sphi 0, %s277
      %s281 = sphi 0, %s280
      %s297 = sphi 0, %s281
      %s301 = sphi 0, %s301
      %s303 = sphi 0, %s301
      %s304 = sphi 0, %s303
      %s318 = sphi 0, %s304
    $region4: #{qwen_model_forward.1} parent=1 // loop_header_branch
      %30 = sbr.rel (%p28) target = $region8
    $region5: #{qwen_model_forward.1} parent=1 // loop_body
      %s32 = ssub.s32 %s27, 1
      %s33 = ssub.s32 %s27, 2
      %s34 = sadd.s32 %s27, 1
      %s36 = sadd.s32 %s35, 1
      %p39 = scmp.eq.s32.totalorder %s27, 1
      %p40 = scmp.ne.s32.totalorder %s35, %s37
      %p41 = scmp.eq.s32.totalorder %s27, 0
      %p42 = por %p40, %p41
      %p43 = scmp.ne.s32.totalorder %s35, %s37
      %p44 = scmp.eq.s32.totalorder %s32, 1
      %p45 = por %p43, %p44
      %p46 = scmp.ne.s32.totalorder %s37, %s38
      %p47 = scmp.eq.s32.totalorder %s32, 0
      %p48 = por %p46, %p47
      %p49 = scmp.ne.s32.totalorder %s37, %s38
      %p50 = scmp.eq.s32.totalorder %s33, 1
      %p51 = por %p49, %p50
      %p53 = scmp.ne.s32.totalorder %s38, %s52
      %p54 = scmp.eq.s32.totalorder %s33, 0
      %p55 = por %p53, %p54
      %s57 = sadd.s32 %s56, 1
      %p60 = scmp.eq.s32.totalorder %s27, 1
      %p61 = scmp.ne.s32.totalorder %s56, %s58
      %p62 = scmp.eq.s32.totalorder %s27, 0
      %p63 = por %p61, %p62
      %p64 = scmp.ne.s32.totalorder %s56, %s58
      %p65 = scmp.eq.s32.totalorder %s32, 1
      %p66 = por %p64, %p65
      %p67 = scmp.ne.s32.totalorder %s58, %s59
      %p68 = scmp.eq.s32.totalorder %s32, 0
      %p69 = por %p67, %p68
      %p70 = scmp.ne.s32.totalorder %s58, %s59
      %p71 = scmp.eq.s32.totalorder %s33, 1
      %p72 = por %p70, %p71
      %p74 = scmp.ne.s32.totalorder %s59, %s73
      %p75 = scmp.eq.s32.totalorder %s33, 0
      %p76 = por %p74, %p75
      %s78 = sadd.s32 %s77, 1
      %p81 = scmp.eq.s32.totalorder %s27, 1
      %p82 = scmp.ne.s32.totalorder %s77, %s79
      %p83 = scmp.eq.s32.totalorder %s27, 0
      %p84 = por %p82, %p83
      %p85 = scmp.ne.s32.totalorder %s77, %s79
      %p86 = scmp.eq.s32.totalorder %s32, 1
      %p87 = por %p85, %p86
      %p88 = scmp.ne.s32.totalorder %s79, %s80
      %p89 = scmp.eq.s32.totalorder %s32, 0
      %p90 = por %p88, %p89
      %p91 = scmp.ne.s32.totalorder %s79, %s80
      %p92 = scmp.eq.s32.totalorder %s33, 1
      %p93 = por %p91, %p92
      %p95 = scmp.ne.s32.totalorder %s80, %s94
      %p96 = scmp.eq.s32.totalorder %s33, 0
      %p97 = por %p95, %p96
      %s99 = sadd.s32 %s98, 1
      %p102 = scmp.eq.s32.totalorder %s27, 1
      %p103 = scmp.ne.s32.totalorder %s98, %s100
      %p104 = scmp.eq.s32.totalorder %s27, 0
      %p105 = por %p103, %p104
      %p106 = scmp.ne.s32.totalorder %s98, %s100
      %p107 = scmp.eq.s32.totalorder %s32, 1
      %p108 = por %p106, %p107
      %p109 = scmp.ne.s32.totalorder %s100, %s101
      %p110 = scmp.eq.s32.totalorder %s32, 0
      %p111 = por %p109, %p110
      %p112 = scmp.ne.s32.totalorder %s100, %s101
      %p113 = scmp.eq.s32.totalorder %s33, 1
      %p114 = por %p112, %p113
      %p116 = scmp.ne.s32.totalorder %s101, %s115
      %p117 = scmp.eq.s32.totalorder %s33, 0
      %p118 = por %p116, %p117
      %s119 = ssub.s32 %s27, %s34
      %p120 = scmp.eq.s32.totalorder %s119, 0
      %s122 = sadd.s32 %s121, 1
      %s123 = scalar_select %p120, %s121, %s122
      %p126 = pneg %p120
      %p127 = scmp.eq.s32.totalorder %s27, 1
      %p128 = por %p126, %p127
      %p129 = scmp.ne.s32.totalorder %s121, %s124
      %p130 = scmp.eq.s32.totalorder %s27, 0
      %p131 = por %p129, %p130
      %p132 = scmp.ne.s32.totalorder %s121, %s124
      %p133 = scmp.eq.s32.totalorder %s32, 1
      %p134 = por %p132, %p133
      %p135 = scmp.ne.s32.totalorder %s124, %s125
      %p136 = scmp.eq.s32.totalorder %s32, 0
      %p137 = por %p135, %p136
      %p138 = scmp.ne.s32.totalorder %s124, %s125
      %p139 = scmp.eq.s32.totalorder %s33, 1
      %p140 = por %p138, %p139
      %p142 = scmp.ne.s32.totalorder %s125, %s141
      %p143 = scmp.eq.s32.totalorder %s33, 0
      %p144 = por %p142, %p143
      %s145 = ssub.s32 %s27, %s34
      %p146 = scmp.eq.s32.totalorder %s145, 0
      %s148 = sadd.s32 %s147, 1
      %s149 = scalar_select %p146, %s147, %s148
      %p152 = pneg %p146
      %p153 = scmp.eq.s32.totalorder %s27, 1
      %p154 = por %p152, %p153
      %p155 = scmp.ne.s32.totalorder %s147, %s150
      %p156 = scmp.eq.s32.totalorder %s27, 0
      %p157 = por %p155, %p156
      %p158 = scmp.ne.s32.totalorder %s147, %s150
      %p159 = scmp.eq.s32.totalorder %s32, 1
      %p160 = por %p158, %p159
      %p161 = scmp.ne.s32.totalorder %s150, %s151
      %p162 = scmp.eq.s32.totalorder %s32, 0
      %p163 = por %p161, %p162
      %p164 = scmp.ne.s32.totalorder %s150, %s151
      %p165 = scmp.eq.s32.totalorder %s33, 1
      %p166 = por %p164, %p165
      %p168 = scmp.ne.s32.totalorder %s151, %s167
      %p169 = scmp.eq.s32.totalorder %s33, 0
      %p170 = por %p168, %p169
      %s171 = ssub.s32 %s27, %s34
      %p172 = scmp.eq.s32.totalorder %s171, 0
      %s174 = sadd.s32 %s173, 1
      %s175 = scalar_select %p172, %s173, %s174
      %p178 = pneg %p172
      %p179 = scmp.eq.s32.totalorder %s27, 1
      %p180 = por %p178, %p179
      %p181 = scmp.ne.s32.totalorder %s173, %s176
      %p182 = scmp.eq.s32.totalorder %s27, 0
      %p183 = por %p181, %p182
      %p184 = scmp.ne.s32.totalorder %s173, %s176
      %p185 = scmp.eq.s32.totalorder %s32, 1
      %p186 = por %p184, %p185
      %p187 = scmp.ne.s32.totalorder %s176, %s177
      %p188 = scmp.eq.s32.totalorder %s32, 0
      %p189 = por %p187, %p188
      %p190 = scmp.ne.s32.totalorder %s176, %s177
      %p191 = scmp.eq.s32.totalorder %s33, 1
      %p192 = por %p190, %p191
      %p194 = scmp.ne.s32.totalorder %s177, %s193
      %p195 = scmp.eq.s32.totalorder %s33, 0
      %p196 = por %p194, %p195
      %s197 = ssub.s32 %s27, %s34
      %p198 = scmp.eq.s32.totalorder %s197, 0
      %s200 = sadd.s32 %s199, 1
      %s201 = scalar_select %p198, %s199, %s200
      %p204 = pneg %p198
      %p205 = scmp.eq.s32.totalorder %s27, 1
      %p206 = por %p204, %p205
      %p207 = scmp.ne.s32.totalorder %s199, %s202
      %p208 = scmp.eq.s32.totalorder %s27, 0
      %p209 = por %p207, %p208
      %p210 = scmp.ne.s32.totalorder %s199, %s202
      %p211 = scmp.eq.s32.totalorder %s32, 1
      %p212 = por %p210, %p211
      %p213 = scmp.ne.s32.totalorder %s202, %s203
      %p214 = scmp.eq.s32.totalorder %s32, 0
      %p215 = por %p213, %p214
      %p216 = scmp.ne.s32.totalorder %s202, %s203
      %p217 = scmp.eq.s32.totalorder %s33, 1
      %p218 = por %p216, %p217
      %p220 = scmp.ne.s32.totalorder %s203, %s219
      %p221 = scmp.eq.s32.totalorder %s33, 0
      %p222 = por %p220, %p221
      %s223 = ssub.s32 %s27, %s34
      %p224 = scmp.eq.s32.totalorder %s223, 0
      %s226 = sadd.s32 %s225, 1
      %s227 = scalar_select %p224, %s225, %s226
      %p230 = pneg %p224
      %p231 = scmp.eq.s32.totalorder %s27, 1
      %p232 = por %p230, %p231
      %p233 = scmp.ne.s32.totalorder %s225, %s228
      %p234 = scmp.eq.s32.totalorder %s27, 0
      %p235 = por %p233, %p234
      %p236 = scmp.ne.s32.totalorder %s225, %s228
      %p237 = scmp.eq.s32.totalorder %s32, 1
      %p238 = por %p236, %p237
      %p239 = scmp.ne.s32.totalorder %s228, %s229
      %p240 = scmp.eq.s32.totalorder %s32, 0
      %p241 = por %p239, %p240
      %p242 = scmp.ne.s32.totalorder %s228, %s229
      %p243 = scmp.eq.s32.totalorder %s33, 1
      %p244 = por %p242, %p243
      %p246 = scmp.ne.s32.totalorder %s229, %s245
      %p247 = scmp.eq.s32.totalorder %s33, 0
      %p248 = por %p246, %p247
      %s249 = ssub.s32 %s27, %s34
      %p250 = scmp.eq.s32.totalorder %s249, 0
      %s252 = sadd.s32 %s251, 1
      %s253 = scalar_select %p250, %s251, %s252
      %p256 = pneg %p250
      %p257 = scmp.eq.s32.totalorder %s27, 1
      %p258 = por %p256, %p257
      %p259 = scmp.ne.s32.totalorder %s251, %s254
      %p260 = scmp.eq.s32.totalorder %s27, 0
      %p261 = por %p259, %p260
      %p262 = scmp.ne.s32.totalorder %s251, %s254
      %p263 = scmp.eq.s32.totalorder %s32, 1
      %p264 = por %p262, %p263
      %p265 = scmp.ne.s32.totalorder %s254, %s255
      %p266 = scmp.eq.s32.totalorder %s32, 0
      %p267 = por %p265, %p266
      %p268 = scmp.ne.s32.totalorder %s254, %s255
      %p269 = scmp.eq.s32.totalorder %s33, 1
      %p270 = por %p268, %p269
      %p272 = scmp.ne.s32.totalorder %s255, %s271
      %p273 = scmp.eq.s32.totalorder %s33, 0
      %p274 = por %p272, %p273
      %s275 = ssub.s32 %s27, %s34
      %p276 = scmp.eq.s32.totalorder %s275, 0
      %s278 = sadd.s32 %s277, 1
      %s279 = scalar_select %p276, %s277, %s278
      %p282 = pneg %p276
      %p283 = scmp.eq.s32.totalorder %s27, 1
      %p284 = por %p282, %p283
      %p285 = scmp.ne.s32.totalorder %s277, %s280
      %p286 = scmp.eq.s32.totalorder %s27, 0
      %p287 = por %p285, %p286
      %p288 = scmp.ne.s32.totalorder %s277, %s280
      %p289 = scmp.eq.s32.totalorder %s32, 1
      %p290 = por %p288, %p289
      %p291 = scmp.ne.s32.totalorder %s280, %s281
      %p292 = scmp.eq.s32.totalorder %s32, 0
      %p293 = por %p291, %p292
      %p294 = scmp.ne.s32.totalorder %s280, %s281
      %p295 = scmp.eq.s32.totalorder %s33, 1
      %p296 = por %p294, %p295
      %p298 = scmp.ne.s32.totalorder %s281, %s297
      %p299 = scmp.eq.s32.totalorder %s33, 0
      %p300 = por %p298, %p299
      %s302 = sadd.s32 %s301, 1
      %p305 = scmp.eq.s32.totalorder %s27, 1
      %p306 = scmp.ne.s32.totalorder %s301, %s303
      %p307 = scmp.eq.s32.totalorder %s27, 0
      %p308 = por %p306, %p307
      %p309 = scmp.ne.s32.totalorder %s301, %s303
      %p310 = scmp.eq.s32.totalorder %s32, 1
      %p311 = por %p309, %p310
      %p312 = scmp.ne.s32.totalorder %s303, %s304
      %p313 = scmp.eq.s32.totalorder %s32, 0
      %p314 = por %p312, %p313
      %p315 = scmp.ne.s32.totalorder %s303, %s304
      %p316 = scmp.eq.s32.totalorder %s33, 1
      %p317 = por %p315, %p316
      %p319 = scmp.ne.s32.totalorder %s304, %s318
      %p320 = scmp.eq.s32.totalorder %s33, 0
      %p321 = por %p319, %p320
      %p322 = scmp.le.s32.totalorder 1, %s27
      %p323 = scmp.lt.s32.totalorder %s27, 3
      %p324 = pnand %p322, %p323
      %p325 = pneg %p324
      // Predicated region
      $region9: #{qwen_model_forward.1} parent=5 // pred_check
        _
      $region10: #{qwen_model_forward.1} parent=5 // pred_check_branch
        %327 = sbr.rel (%p324) target = $region12
      $region11: #{qwen_model_forward.1} parent=5 // pred_region
        %s328 = ssub.s32 %s27, 1
        // Predicated region
        $region13: #{qwen_model_forward.1} parent=11 // pred_check
          %p329 = pneg %p48
        $region14: #{qwen_model_forward.1} parent=11 // pred_check_branch
          %331 = sbr.rel (%p329) target = $region16
        $region15: #{qwen_model_forward.1} parent=11 // pred_region
          _
        $region16: #{qwen_model_forward.1} parent=11 // pred_fallthru
          _
        // Predicated region
        $region17: #{qwen_model_forward.1} parent=11 // pred_check
          %p332 = pneg %p69
        $region18: #{qwen_model_forward.1} parent=11 // pred_check_branch
          %334 = sbr.rel (%p332) target = $region20
        $region19: #{qwen_model_forward.1} parent=11 // pred_region
          _
        $region20: #{qwen_model_forward.1} parent=11 // pred_fallthru
          _
        // Predicated region
        $region21: #{qwen_model_forward.1} parent=11 // pred_check
          %p335 = pneg %p90
        $region22: #{qwen_model_forward.1} parent=11 // pred_check_branch
          %337 = sbr.rel (%p335) target = $region24
        $region23: #{qwen_model_forward.1} parent=11 // pred_region
          _
        $region24: #{qwen_model_forward.1} parent=11 // pred_fallthru
          _
        // Predicated region
        $region25: #{qwen_model_forward.1} parent=11 // pred_check
          %p338 = pneg %p111
        $region26: #{qwen_model_forward.1} parent=11 // pred_check_branch
          %340 = sbr.rel (%p338) target = $region28
        $region27: #{qwen_model_forward.1} parent=11 // pred_region
          _
        $region28: #{qwen_model_forward.1} parent=11 // pred_fallthru
          _
      $region12: #{qwen_model_forward.1} parent=5 // pred_fallthru
        _
      %p341 = scmp.lt.s32.totalorder %s27, 2
      // Predicated region
      $region29: #{qwen_model_forward.1} parent=5 // pred_check
        %p342 = pneg %p341
      $region30: #{qwen_model_forward.1} parent=5 // pred_check_branch
        %344 = sbr.rel (%p342) target = $region32
      $region31: #{qwen_model_forward.1} parent=5 // pred_region
        // Predicated region
        $region33: #{qwen_model_forward.1} parent=31 // pred_check
          %p345 = pneg %p131
        $region34: #{qwen_model_forward.1} parent=31 // pred_check_branch
          %347 = sbr.rel (%p345) target = $region36
        $region35: #{qwen_model_forward.1} parent=31 // pred_region
          %p348 = scmp.lt.s32.totalorder %s27, 1
          %s349 = scalar_select %p348, %s27, 1
          %s350 = smul.addr %s349, 2
          %s351 = scalar_lea.vmem %s4, %s350
        $region36: #{qwen_model_forward.1} parent=31 // pred_fallthru
          _
        // Predicated region
        $region37: #{qwen_model_forward.1} parent=31 // pred_check
          %p352 = pneg %p157
        $region38: #{qwen_model_forward.1} parent=31 // pred_check_branch
          %354 = sbr.rel (%p352) target = $region40
        $region39: #{qwen_model_forward.1} parent=31 // pred_region
          %p355 = scmp.lt.s32.totalorder %s27, 1
          %s356 = scalar_select %p355, %s27, 1
          %s357 = smul.addr %s356, 2
          %s358 = scalar_lea.vmem %s5, %s357
        $region40: #{qwen_model_forward.1} parent=31 // pred_fallthru
          _
        // Predicated region
        $region41: #{qwen_model_forward.1} parent=31 // pred_check
          %p359 = pneg %p183
        $region42: #{qwen_model_forward.1} parent=31 // pred_check_branch
          %361 = sbr.rel (%p359) target = $region44
        $region43: #{qwen_model_forward.1} parent=31 // pred_region
          %s362 = sand.u32 %s173, 1
          %s363 = scalar_lea.sflag [#allocation6], %s362
          %s364 = sand.u32 %s173, 1
          %s365 = smul.addr %s364, 768
          %s366 = scalar_lea.vmem [#allocation5], %s365
          %368 = vsyncadd %s363, 0
          %s369 = smul.addr %s27, 192
          %s370 = smul.addr %s369, 4
          %s371 = scalar_lea.hbm %s6, %s370
          %s372 = sshll.u32 %s371, 4
          %s373 = int_to_ptr.hbm [resolvable:$true] %s372
          %s374 = sshll.u32 %s366, 4
          %s375 = int_to_ptr.vmem [resolvable:$true] %s374
          %380 = dma.hbm_to_vmem [thread:$0]  %s373, 12288, %s375, %s363, 384, 384, 24
        $region44: #{qwen_model_forward.1} parent=31 // pred_fallthru
          _
        // Predicated region
        $region45: #{qwen_model_forward.1} parent=31 // pred_check
          %p381 = pneg %p209
        $region46: #{qwen_model_forward.1} parent=31 // pred_check_branch
          %383 = sbr.rel (%p381) target = $region48
        $region47: #{qwen_model_forward.1} parent=31 // pred_region
          %p384 = scmp.lt.s32.totalorder %s27, 1
          %s385 = scalar_select %p384, %s27, 1
          %s386 = smul.addr %s385, 6
          %s387 = scalar_lea.vmem %s7, %s386
        $region48: #{qwen_model_forward.1} parent=31 // pred_fallthru
          _
        // Predicated region
        $region49: #{qwen_model_forward.1} parent=31 // pred_check
          %p388 = pneg %p235
        $region50: #{qwen_model_forward.1} parent=31 // pred_check_branch
          %390 = sbr.rel (%p388) target = $region52
        $region51: #{qwen_model_forward.1} parent=31 // pred_region
          %s391 = sand.u32 %s27, 1
          %s392 = scalar_lea.sflag [#allocation9], %s391
          %s393 = sand.u32 %s225, 1
          %s394 = smul.addr %s393, 256
          %s395 = scalar_lea.vmem [#allocation8], %s394
          %397 = vsyncadd %s392, 0
          %s398 = smul.addr %s27, 64
          %s399 = smul.addr %s398, 4
          %s400 = scalar_lea.hbm %s8, %s399
          %s401 = sshll.u32 %s400, 4
          %s402 = int_to_ptr.hbm [resolvable:$true] %s401
          %s403 = sshll.u32 %s395, 4
          %s404 = int_to_ptr.vmem [resolvable:$true] %s403
          %409 = dma.hbm_to_vmem [thread:$0]  %s402, 4096, %s404, %s392, 128, 128, 8
        $region52: #{qwen_model_forward.1} parent=31 // pred_fallthru
          _
        // Predicated region
        $region53: #{qwen_model_forward.1} parent=31 // pred_check
          %p410 = pneg %p261
        $region54: #{qwen_model_forward.1} parent=31 // pred_check_branch
          %412 = sbr.rel (%p410) target = $region56
        $region55: #{qwen_model_forward.1} parent=31 // pred_region
          %s413 = sand.u32 %s27, 1
          %s414 = scalar_lea.sflag [#allocation9], %s413
          %s415 = sand.u32 %s251, 1
          %s416 = smul.addr %s415, 1024
          %s417 = scalar_lea.vmem [#allocation10], %s416
          %419 = vsyncadd %s414, 0
          %s420 = smul.addr %s27, 256
          %s421 = smul.addr %s420, 4
          %s422 = scalar_lea.hbm %s9, %s421
          %s423 = sshll.u32 %s422, 4
          %s424 = int_to_ptr.hbm [resolvable:$true] %s423
          %s425 = sshll.u32 %s417, 4
          %s426 = int_to_ptr.vmem [resolvable:$true] %s425
          %431 = dma.hbm_to_vmem [thread:$0]  %s424, 16384, %s426, %s414, 512, 512, 32
        $region56: #{qwen_model_forward.1} parent=31 // pred_fallthru
          _
        // Predicated region
        $region57: #{qwen_model_forward.1} parent=31 // pred_check
          %p432 = pneg %p287
        $region58: #{qwen_model_forward.1} parent=31 // pred_check_branch
          %434 = sbr.rel (%p432) target = $region60
        $region59: #{qwen_model_forward.1} parent=31 // pred_region
          %s435 = sand.u32 %s277, 1
          %s436 = scalar_lea.sflag [#allocation12], %s435
          %s437 = sand.u32 %s277, 1
          %s438 = smul.addr %s437, 512
          %s439 = scalar_lea.vmem [#allocation11], %s438
          %441 = vsyncadd %s436, 0
          %s442 = smul.addr %s27, 128
          %s443 = smul.addr %s442, 4
          %s444 = scalar_lea.hbm %s10, %s443
          %s445 = sshll.u32 %s444, 4
          %s446 = int_to_ptr.hbm [resolvable:$true] %s445
          %s447 = sshll.u32 %s439, 4
          %s448 = int_to_ptr.vmem [resolvable:$true] %s447
          %453 = dma.hbm_to_vmem [thread:$0]  %s446, 8192, %s448, %s436, 128, 128, 8
        $region60: #{qwen_model_forward.1} parent=31 // pred_fallthru
          _
      $region32: #{qwen_model_forward.1} parent=5 // pred_fallthru
        _
      %p454 = scmp.le.s32.totalorder 1, %s27
      %p455 = scmp.lt.s32.totalorder %s27, 3
      %p456 = pnand %p454, %p455
      %p457 = pneg %p456
      // Predicated region
      $region61: #{qwen_model_forward.1} parent=5 // pred_check
        _
      $region62: #{qwen_model_forward.1} parent=5 // pred_check_branch
        %459 = sbr.rel (%p456) target = $region64
      $region63: #{qwen_model_forward.1} parent=5 // pred_region
        %s460 = ssub.s32 %s27, 1
        %s461 = sand.u32 %s176, 1
        %s462 = scalar_lea.sflag [#allocation6], %s461
        %s463 = sand.u32 %s176, 1
        %s464 = smul.addr %s463, 768
        %s465 = scalar_lea.vmem [#allocation5], %s464
        // Predicated region
        $region65: #{qwen_model_forward.1} parent=63 // pred_check
          %p466 = pneg %p189
        $region66: #{qwen_model_forward.1} parent=63 // pred_check_branch
          %468 = sbr.rel (%p466) target = $region68
        $region67: #{qwen_model_forward.1} parent=63 // pred_region
          %470 = dma.done %s462, 12288
        $region68: #{qwen_model_forward.1} parent=63 // pred_fallthru
          _
        %s471 = sand.u32 %s32, 1
        %s472 = scalar_lea.sflag [#allocation9], %s471
        %s473 = sand.u32 %s228, 1
        %s474 = smul.addr %s473, 256
        %s475 = scalar_lea.vmem [#allocation8], %s474
        // Predicated region
        $region69: #{qwen_model_forward.1} parent=63 // pred_check
          %p476 = pneg %p241
        $region70: #{qwen_model_forward.1} parent=63 // pred_check_branch
          %478 = sbr.rel (%p476) target = $region72
        $region71: #{qwen_model_forward.1} parent=63 // pred_region
          %480 = dma.done %s472, 4096
        $region72: #{qwen_model_forward.1} parent=63 // pred_fallthru
          _
        %s481 = sand.u32 %s32, 1
        %s482 = scalar_lea.sflag [#allocation9], %s481
        %s483 = sand.u32 %s254, 1
        %s484 = smul.addr %s483, 1024
        %s485 = scalar_lea.vmem [#allocation10], %s484
        // Predicated region
        $region73: #{qwen_model_forward.1} parent=63 // pred_check
          %p486 = pneg %p267
        $region74: #{qwen_model_forward.1} parent=63 // pred_check_branch
          %488 = sbr.rel (%p486) target = $region76
        $region75: #{qwen_model_forward.1} parent=63 // pred_region
          %490 = dma.done %s482, 16384
        $region76: #{qwen_model_forward.1} parent=63 // pred_fallthru
          _
        %s491 = sand.u32 %s280, 1
        %s492 = scalar_lea.sflag [#allocation12], %s491
        %s493 = sand.u32 %s280, 1
        %s494 = smul.addr %s493, 512
        %s495 = scalar_lea.vmem [#allocation11], %s494
        // Predicated region
        $region77: #{qwen_model_forward.1} parent=63 // pred_check
          %p496 = pneg %p293
        $region78: #{qwen_model_forward.1} parent=63 // pred_check_branch
          %498 = sbr.rel (%p496) target = $region80
        $region79: #{qwen_model_forward.1} parent=63 // pred_region
          %500 = dma.done %s492, 8192
        $region80: #{qwen_model_forward.1} parent=63 // pred_fallthru
          _
        %p501 = pneg %p48
        %p502 = pneg %p45
        %p503 = pneg %p69
        %p504 = pneg %p66
        %p505 = pneg %p90
        %p506 = pneg %p87
        %p507 = pneg %p111
        %p508 = pneg %p108
        %p509 = scmp.lt.s32.totalorder %s32, 1
        %s510 = scalar_select %p509, %s32, 1
        %s511 = smul.addr %s510, 2
        %s512 = scalar_lea.vmem %s4, %s511
        %p513 = pneg %p137
        %p514 = pneg %p134
        %p515 = scmp.lt.s32.totalorder %s32, 1
        %s516 = scalar_select %p515, %s32, 1
        %s517 = smul.addr %s516, 2
        %s518 = scalar_lea.vmem %s5, %s517
        %p519 = pneg %p163
        %p520 = pneg %p160
        %s521 = sand.u32 %s176, 1
        %s522 = scalar_lea.sflag [#allocation6], %s521
        %s523 = sand.u32 %s176, 1
        %s524 = smul.addr %s523, 768
        %s525 = scalar_lea.vmem [#allocation5], %s524
        %p526 = pneg %p189
        %p527 = pneg %p186
        %p528 = scmp.lt.s32.totalorder %s32, 1
        %s529 = scalar_select %p528, %s32, 1
        %s530 = smul.addr %s529, 6
        %s531 = scalar_lea.vmem %s7, %s530
        %p532 = pneg %p215
        %p533 = pneg %p212
        %s534 = sand.u32 %s32, 1
        %s535 = scalar_lea.sflag [#allocation9], %s534
        %s536 = sand.u32 %s228, 1
        %s537 = smul.addr %s536, 256
        %s538 = scalar_lea.vmem [#allocation8], %s537
        %p539 = pneg %p241
        %p540 = pneg %p238
        %s541 = sand.u32 %s32, 1
        %s542 = scalar_lea.sflag [#allocation9], %s541
        %s543 = sand.u32 %s254, 1
        %s544 = smul.addr %s543, 1024
        %s545 = scalar_lea.vmem [#allocation10], %s544
        %p546 = pneg %p267
        %p547 = pneg %p264
        %s548 = sand.u32 %s280, 1
        %s549 = scalar_lea.sflag [#allocation12], %s548
        %s550 = sand.u32 %s280, 1
        %s551 = smul.addr %s550, 512
        %s552 = scalar_lea.vmem [#allocation11], %s551
        %p553 = pneg %p293
        %p554 = pneg %p290
        %p555 = pneg %p314
        %p556 = pneg %p311
        %p557 = scmp.lt.s32.totalorder %s32, 1
        %s558 = scalar_select %p557, %s32, 1
        %s559 = smul.addr %s558, 2
        %s560 = scalar_lea.vmem %s4, %s559
        %p561 = scmp.lt.s32.totalorder %s32, 1
        %s562 = scalar_select %p561, %s32, 1
        %s563 = smul.addr %s562, 2
        %s564 = scalar_lea.vmem %s5, %s563
        %p565 = scmp.lt.s32.totalorder %s32, 1
        %s566 = scalar_select %p565, %s32, 1
        %s567 = smul.addr %s566, 6
        %s568 = scalar_lea.vmem %s7, %s567
        %p570 = scmp.eq.s32.totalorder %s32, 0
        // Predicated region
        $region81: #{qwen_model_forward.1} parent=63 // pred_check
          %p571 = pneg %p570
        $region82: #{qwen_model_forward.1} parent=63 // pred_check_branch
          %573 = sbr.rel (%p571) target = $region84
        $region83: #{qwen_model_forward.1} parent=63 // pred_region
          %v574 = vld [vmem:[%s0] sm:$0xff]
          %v575 = vld [vmem:[%s0 + $0x8] sm:$0xff]
          %v576 = vld [vmem:[%s0 + $0x10] sm:$0xff]
          %v577 = vld [vmem:[%s0 + $0x18] sm:$0xff]
          %578 = vst [vmem:[#allocation2] sm:$0xff] %v574
          %579 = vst [vmem:[#allocation2 + $0x8] sm:$0xff] %v575
          %580 = vst [vmem:[#allocation2 + $0x10] sm:$0xff] %v576
          %581 = vst [vmem:[#allocation2 + $0x18] sm:$0xff] %v577
          %582 = vst [vmem:[#allocation3] sm:$0xff] 0.0
          %583 = vst [vmem:[#allocation3 + $0x8] sm:$0xff] 0.0
          %584 = vst [vmem:[#allocation3 + $0x10] sm:$0xff] 0.0
          %585 = vst [vmem:[#allocation3 + $0x18] sm:$0xff] 0.0
        $region84: #{qwen_model_forward.1} parent=63 // pred_fallthru
          _
        %v586 = vld [vmem:[%s1] sm:$0xff]
        %v587 = vld [vmem:[%s1 + $0x8] sm:$0xff]
        %v588 = vld [vmem:[%s2] sm:$0xff]
        %v589 = vld [vmem:[%s2 + $0x8] sm:$0xff]
        %v590 = vlaneseq
        %v591 = vshrl.u32 %v590, 7
        %v592 = vadd.s32 %v591, 8
        %v593 = vlaneseq
        %v594 = vand.u32 %v593, 127
        %vm595 = vcmp.le.s32.totalorder %v594, %v591
        %vm596 = vcmp.le.s32.totalorder %v594, %v592
        %v597 = vsel %vm595, 0.0, -1e+30
        %v598 = vsel %vm596, 0.0, -1e+30
        %v599 = vld [vmem:[#allocation2] sm:$0xff]
        %v600 = vld [vmem:[#allocation2 + $0x8] sm:$0xff]
        %v601 = vld [vmem:[#allocation2 + $0x10] sm:$0xff]
        %v602 = vld [vmem:[#allocation2 + $0x18] sm:$0xff]
        %v603 = vld [vmem:[#allocation3] sm:$0xff]
        %v604 = vld [vmem:[#allocation3 + $0x8] sm:$0xff]
        %v605 = vld [vmem:[#allocation3 + $0x10] sm:$0xff]
        %v606 = vld [vmem:[#allocation3 + $0x18] sm:$0xff]
        %v607 = vadd.f32 %v599, %v603
        %v608 = vadd.f32 %v600, %v604
        %v609 = vadd.f32 %v601, %v605
        %v610 = vadd.f32 %v602, %v606
        %v611 = vld [vmem:[%s560] sm:$0x3]
        %v612 = vmul.f32 %v607, %v607
        %v613 = vmul.f32 %v608, %v608
        %v614 = vmul.f32 %v609, %v609
        %v615 = vmul.f32 %v610, %v610
        %v616 = vadd.f32 %v612, %v613
        %617 = vadd.xlane.f32.xlu0 %v616
        %v618 = vpop.xlane.xlu0 %617
        %v619 = vadd.f32 %v614, %v615
        %620 = vadd.xlane.f32.xlu0 %v619
        %v621 = vpop.xlane.xlu0 %620
        %v622 = vrcp.pop 256.0
        %v623 = vmul.f32 256.0, %v622
        %v624 = vsub.f32 1.0, %v623
        %v625 = vmul.f32 %v622, %v624
        %v626 = vadd.f32 %v622, %v625
        %vm627 = vweird.f32 %v622
        %v628 = vsel %vm627, %v622, %v626
        %v629 = vmul.f32 %v618, %v628
        %v630 = vmul.f32 %v621, %v628
        %v631 = vadd.f32 %v629, 1e-06
        %v632 = vadd.f32 %v630, 1e-06
        %v633 = vrsqrt.pop %v631
        %v634 = vmul.f32 %v633, %v631
        %v635 = vmul.f32 %v634, %v633
        %v636 = vmul.f32 0.5, %v635
        %v637 = vsub.f32 1.5, %v636
        %v638 = vmul.f32 %v633, %v637
        %vm639 = vweird.f32 %v631
        %vm640 = vweird.f32 %v633
        %vm641 = vmor %vm639, %vm640
        %v642 = vsel %vm641, %v633, %v638
        %v643 = vrsqrt.pop %v632
        %v644 = vmul.f32 %v643, %v632
        %v645 = vmul.f32 %v644, %v643
        %v646 = vmul.f32 0.5, %v645
        %v647 = vsub.f32 1.5, %v646
        %v648 = vmul.f32 %v643, %v647
        %vm649 = vweird.f32 %v632
        %vm650 = vweird.f32 %v643
        %vm651 = vmor %vm649, %vm650
        %v652 = vsel %vm651, %v643, %v648
        %v653 = vmul.f32 %v607, %v642
        %v654 = vmul.f32 %v608, %v642
        %v655 = vmul.f32 %v609, %v652
        %v656 = vmul.f32 %v610, %v652
        %v658 = vperm.slane %v611, 0
        %v659 = vperm.slane %v611, 1
        %v662 = vmul.f32 %v653, %v658
        %v663 = vmul.f32 %v654, %v659
        %v664 = vmul.f32 %v655, %v658
        %v665 = vmul.f32 %v656, %v659
        %v666 = vpack.c.bf16 %v664, %v662
        %v667 = vpack.c.bf16 %v665, %v663
        %v668 = vld [vmem:[%s465] sm:$0xff]
        %v669 = vld [vmem:[%s465 + $0x8] sm:$0xff]
        %v670 = vld [vmem:[%s465 + $0x10] sm:$0xff]
        %v671 = vld [vmem:[%s465 + $0x18] sm:$0xff]
        %v672 = vld [vmem:[%s465 + $0x20] sm:$0xff]
        %v673 = vld [vmem:[%s465 + $0x28] sm:$0xff]
        %v674 = vld [vmem:[%s465 + $0x30] sm:$0xff]
        %v675 = vld [vmem:[%s465 + $0x38] sm:$0xff]
        %v676 = vld [vmem:[%s465 + $0x40] sm:$0xff]
        %v677 = vld [vmem:[%s465 + $0x48] sm:$0xff]
        %v678 = vld [vmem:[%s465 + $0x50] sm:$0xff]
        %v679 = vld [vmem:[%s465 + $0x58] sm:$0xff]
        %v680 = vld [vmem:[%s465 + $0x60] sm:$0xff]
        %v681 = vld [vmem:[%s465 + $0x68] sm:$0xff]
        %v682 = vld [vmem:[%s465 + $0x70] sm:$0xff]
        %v683 = vld [vmem:[%s465 + $0x78] sm:$0xff]
        %v684 = vld [vmem:[%s465 + $0x80] sm:$0xff]
        %v685 = vld [vmem:[%s465 + $0x88] sm:$0xff]
        %v686 = vld [vmem:[%s465 + $0x90] sm:$0xff]
        %v687 = vld [vmem:[%s465 + $0x98] sm:$0xff]
        %v688 = vld [vmem:[%s465 + $0xa0] sm:$0xff]
        %v689 = vld [vmem:[%s465 + $0xa8] sm:$0xff]
        %v690 = vld [vmem:[%s465 + $0xb0] sm:$0xff]
        %v691 = vld [vmem:[%s465 + $0xb8] sm:$0xff]
        %v692 = vld [vmem:[%s465 + $0xc0] sm:$0xff]
        %v693 = vld [vmem:[%s465 + $0xc8] sm:$0xff]
        %v694 = vld [vmem:[%s465 + $0xd0] sm:$0xff]
        %v695 = vld [vmem:[%s465 + $0xd8] sm:$0xff]
        %v696 = vld [vmem:[%s465 + $0xe0] sm:$0xff]
        %v697 = vld [vmem:[%s465 + $0xe8] sm:$0xff]
        %v698 = vld [vmem:[%s465 + $0xf0] sm:$0xff]
        %v699 = vld [vmem:[%s465 + $0xf8] sm:$0xff]
        %v700 = vld [vmem:[%s465 + $0x100] sm:$0xff]
        %v701 = vld [vmem:[%s465 + $0x108] sm:$0xff]
        %v702 = vld [vmem:[%s465 + $0x110] sm:$0xff]
        %v703 = vld [vmem:[%s465 + $0x118] sm:$0xff]
        %v704 = vld [vmem:[%s465 + $0x120] sm:$0xff]
        %v705 = vld [vmem:[%s465 + $0x128] sm:$0xff]
        %v706 = vld [vmem:[%s465 + $0x130] sm:$0xff]
        %v707 = vld [vmem:[%s465 + $0x138] sm:$0xff]
        %v708 = vld [vmem:[%s465 + $0x140] sm:$0xff]
        %v709 = vld [vmem:[%s465 + $0x148] sm:$0xff]
        %v710 = vld [vmem:[%s465 + $0x150] sm:$0xff]
        %v711 = vld [vmem:[%s465 + $0x158] sm:$0xff]
        %v712 = vld [vmem:[%s465 + $0x160] sm:$0xff]
        %v713 = vld [vmem:[%s465 + $0x168] sm:$0xff]
        %v714 = vld [vmem:[%s465 + $0x170] sm:$0xff]
        %v715 = vld [vmem:[%s465 + $0x178] sm:$0xff]
        %v716 = vld [vmem:[%s465 + $0x180] sm:$0xff]
        %v717 = vld [vmem:[%s465 + $0x188] sm:$0xff]
        %v718 = vld [vmem:[%s465 + $0x190] sm:$0xff]
        %v719 = vld [vmem:[%s465 + $0x198] sm:$0xff]
        %v720 = vld [vmem:[%s465 + $0x1a0] sm:$0xff]
        %v721 = vld [vmem:[%s465 + $0x1a8] sm:$0xff]
        %v722 = vld [vmem:[%s465 + $0x1b0] sm:$0xff]
        %v723 = vld [vmem:[%s465 + $0x1b8] sm:$0xff]
        %v724 = vld [vmem:[%s465 + $0x1c0] sm:$0xff]
        %v725 = vld [vmem:[%s465 + $0x1c8] sm:$0xff]
        %v726 = vld [vmem:[%s465 + $0x1d0] sm:$0xff]
        %v727 = vld [vmem:[%s465 + $0x1d8] sm:$0xff]
        %v728 = vld [vmem:[%s465 + $0x1e0] sm:$0xff]
        %v729 = vld [vmem:[%s465 + $0x1e8] sm:$0xff]
        %v730 = vld [vmem:[%s465 + $0x1f0] sm:$0xff]
        %v731 = vld [vmem:[%s465 + $0x1f8] sm:$0xff]
        %v732 = vld [vmem:[%s465 + $0x200] sm:$0xff]
        %v733 = vld [vmem:[%s465 + $0x208] sm:$0xff]
        %v734 = vld [vmem:[%s465 + $0x210] sm:$0xff]
        %v735 = vld [vmem:[%s465 + $0x218] sm:$0xff]
        %v736 = vld [vmem:[%s465 + $0x220] sm:$0xff]
        %v737 = vld [vmem:[%s465 + $0x228] sm:$0xff]
        %v738 = vld [vmem:[%s465 + $0x230] sm:$0xff]
        %v739 = vld [vmem:[%s465 + $0x238] sm:$0xff]
        %v740 = vld [vmem:[%s465 + $0x240] sm:$0xff]
        %v741 = vld [vmem:[%s465 + $0x248] sm:$0xff]
        %v742 = vld [vmem:[%s465 + $0x250] sm:$0xff]
        %v743 = vld [vmem:[%s465 + $0x258] sm:$0xff]
        %v744 = vld [vmem:[%s465 + $0x260] sm:$0xff]
        %v745 = vld [vmem:[%s465 + $0x268] sm:$0xff]
        %v746 = vld [vmem:[%s465 + $0x270] sm:$0xff]
        %v747 = vld [vmem:[%s465 + $0x278] sm:$0xff]
        %v748 = vld [vmem:[%s465 + $0x280] sm:$0xff]
        %v749 = vld [vmem:[%s465 + $0x288] sm:$0xff]
        %v750 = vld [vmem:[%s465 + $0x290] sm:$0xff]
        %v751 = vld [vmem:[%s465 + $0x298] sm:$0xff]
        %v752 = vld [vmem:[%s465 + $0x2a0] sm:$0xff]
        %v753 = vld [vmem:[%s465 + $0x2a8] sm:$0xff]
        %v754 = vld [vmem:[%s465 + $0x2b0] sm:$0xff]
        %v755 = vld [vmem:[%s465 + $0x2b8] sm:$0xff]
        %v756 = vld [vmem:[%s465 + $0x2c0] sm:$0xff]
        %v757 = vld [vmem:[%s465 + $0x2c8] sm:$0xff]
        %v758 = vld [vmem:[%s465 + $0x2d0] sm:$0xff]
        %v759 = vld [vmem:[%s465 + $0x2d8] sm:$0xff]
        %v760 = vld [vmem:[%s465 + $0x2e0] sm:$0xff]
        %v761 = vld [vmem:[%s465 + $0x2e8] sm:$0xff]
        %v762 = vld [vmem:[%s465 + $0x2f0] sm:$0xff]
        %v763 = vld [vmem:[%s465 + $0x2f8] sm:$0xff]
        %v764 = vld [vmem:[%s568] sm:$0x3f]
        %v766 = vperm.slane %v764, 0
        %v767 = vperm.slane %v764, 1
        %v768 = vperm.slane %v764, 2
        %v769 = vperm.slane %v764, 3
        %v770 = vperm.slane %v764, 4
        %v771 = vperm.slane %v764, 5
        %v874 = vunpack.c.l.b16 %v668
        %v875 = vunpack.c.h.b16 %v668
        %v876 = vunpack.c.l.b16 %v669
        %v877 = vunpack.c.h.b16 %v669
        %v878 = vunpack.c.l.b16 %v670
        %v879 = vunpack.c.h.b16 %v670
        %v880 = vunpack.c.l.b16 %v671
        %v881 = vunpack.c.h.b16 %v671
        %v882 = vunpack.c.l.b16 %v672
        %v883 = vunpack.c.h.b16 %v672
        %v884 = vunpack.c.l.b16 %v673
        %v885 = vunpack.c.h.b16 %v673
        %v886 = vunpack.c.l.b16 %v674
        %v887 = vunpack.c.h.b16 %v674
        %v888 = vunpack.c.l.b16 %v675
        %v889 = vunpack.c.h.b16 %v675
        %v890 = vunpack.c.l.b16 %v676
        %v891 = vunpack.c.h.b16 %v676
        %v892 = vunpack.c.l.b16 %v677
        %v893 = vunpack.c.h.b16 %v677
        %v894 = vunpack.c.l.b16 %v678
        %v895 = vunpack.c.h.b16 %v678
        %v896 = vunpack.c.l.b16 %v679
        %v897 = vunpack.c.h.b16 %v679
        %v898 = vunpack.c.l.b16 %v680
        %v899 = vunpack.c.h.b16 %v680
        %v900 = vunpack.c.l.b16 %v681
        %v901 = vunpack.c.h.b16 %v681
        %v902 = vunpack.c.l.b16 %v682
        %v903 = vunpack.c.h.b16 %v682
        %v904 = vunpack.c.l.b16 %v683
        %v905 = vunpack.c.h.b16 %v683
        %v906 = vunpack.c.l.b16 %v684
        %v907 = vunpack.c.h.b16 %v684
        %v908 = vunpack.c.l.b16 %v685
        %v909 = vunpack.c.h.b16 %v685
        %v910 = vunpack.c.l.b16 %v686
        %v911 = vunpack.c.h.b16 %v686
        %v912 = vunpack.c.l.b16 %v687
        %v913 = vunpack.c.h.b16 %v687
        %v914 = vunpack.c.l.b16 %v688
        %v915 = vunpack.c.h.b16 %v688
        %v916 = vunpack.c.l.b16 %v689
        %v917 = vunpack.c.h.b16 %v689
        %v918 = vunpack.c.l.b16 %v690
        %v919 = vunpack.c.h.b16 %v690
        %v920 = vunpack.c.l.b16 %v691
        %v921 = vunpack.c.h.b16 %v691
        %v922 = vunpack.c.l.b16 %v692
        %v923 = vunpack.c.h.b16 %v692
        %v924 = vunpack.c.l.b16 %v693
        %v925 = vunpack.c.h.b16 %v693
        %v926 = vunpack.c.l.b16 %v694
        %v927 = vunpack.c.h.b16 %v694
        %v928 = vunpack.c.l.b16 %v695
        %v929 = vunpack.c.h.b16 %v695
        %v930 = vunpack.c.l.b16 %v696
        %v931 = vunpack.c.h.b16 %v696
        %v932 = vunpack.c.l.b16 %v697
        %v933 = vunpack.c.h.b16 %v697
        %v934 = vunpack.c.l.b16 %v698
        %v935 = vunpack.c.h.b16 %v698
        %v936 = vunpack.c.l.b16 %v699
        %v937 = vunpack.c.h.b16 %v699
        %v938 = vunpack.c.l.b16 %v700
        %v939 = vunpack.c.h.b16 %v700
        %v940 = vunpack.c.l.b16 %v701
        %v941 = vunpack.c.h.b16 %v701
        %v942 = vunpack.c.l.b16 %v702
        %v943 = vunpack.c.h.b16 %v702
        %v944 = vunpack.c.l.b16 %v703
        %v945 = vunpack.c.h.b16 %v703
        %v946 = vunpack.c.l.b16 %v704
        %v947 = vunpack.c.h.b16 %v704
        %v948 = vunpack.c.l.b16 %v705
        %v949 = vunpack.c.h.b16 %v705
        %v950 = vunpack.c.l.b16 %v706
        %v951 = vunpack.c.h.b16 %v706
        %v952 = vunpack.c.l.b16 %v707
        %v953 = vunpack.c.h.b16 %v707
        %v954 = vunpack.c.l.b16 %v708
        %v955 = vunpack.c.h.b16 %v708
        %v956 = vunpack.c.l.b16 %v709
        %v957 = vunpack.c.h.b16 %v709
        %v958 = vunpack.c.l.b16 %v710
        %v959 = vunpack.c.h.b16 %v710
        %v960 = vunpack.c.l.b16 %v711
        %v961 = vunpack.c.h.b16 %v711
        %v962 = vunpack.c.l.b16 %v712
        %v963 = vunpack.c.h.b16 %v712
        %v964 = vunpack.c.l.b16 %v713
        %v965 = vunpack.c.h.b16 %v713
        %v966 = vunpack.c.l.b16 %v714
        %v967 = vunpack.c.h.b16 %v714
        %v968 = vunpack.c.l.b16 %v715
        %v969 = vunpack.c.h.b16 %v715
        %v970 = vunpack.c.l.b16 %v716
        %v971 = vunpack.c.h.b16 %v716
        %v972 = vunpack.c.l.b16 %v717
        %v973 = vunpack.c.h.b16 %v717
        %v974 = vunpack.c.l.b16 %v718
        %v975 = vunpack.c.h.b16 %v718
        %v976 = vunpack.c.l.b16 %v719
        %v977 = vunpack.c.h.b16 %v719
        %v978 = vunpack.c.l.b16 %v720
        %v979 = vunpack.c.h.b16 %v720
        %v980 = vunpack.c.l.b16 %v721
        %v981 = vunpack.c.h.b16 %v721
        %v982 = vunpack.c.l.b16 %v722
        %v983 = vunpack.c.h.b16 %v722
        %v984 = vunpack.c.l.b16 %v723
        %v985 = vunpack.c.h.b16 %v723
        %v986 = vunpack.c.l.b16 %v724
        %v987 = vunpack.c.h.b16 %v724
        %v988 = vunpack.c.l.b16 %v725
        %v989 = vunpack.c.h.b16 %v725
        %v990 = vunpack.c.l.b16 %v726
        %v991 = vunpack.c.h.b16 %v726
        %v992 = vunpack.c.l.b16 %v727
        %v993 = vunpack.c.h.b16 %v727
        %v994 = vunpack.c.l.b16 %v728
        %v995 = vunpack.c.h.b16 %v728
        %v996 = vunpack.c.l.b16 %v729
        %v997 = vunpack.c.h.b16 %v729
        %v998 = vunpack.c.l.b16 %v730
        %v999 = vunpack.c.h.b16 %v730
        %v1000 = vunpack.c.l.b16 %v731
        %v1001 = vunpack.c.h.b16 %v731
        %v1002 = vunpack.c.l.b16 %v732
        %v1003 = vunpack.c.h.b16 %v732
        %v1004 = vunpack.c.l.b16 %v733
        %v1005 = vunpack.c.h.b16 %v733
        %v1006 = vunpack.c.l.b16 %v734
        %v1007 = vunpack.c.h.b16 %v734
        %v1008 = vunpack.c.l.b16 %v735
        %v1009 = vunpack.c.h.b16 %v735
        %v1010 = vunpack.c.l.b16 %v736
        %v1011 = vunpack.c.h.b16 %v736
        %v1012 = vunpack.c.l.b16 %v737
        %v1013 = vunpack.c.h.b16 %v737
        %v1014 = vunpack.c.l.b16 %v738
        %v1015 = vunpack.c.h.b16 %v738
        %v1016 = vunpack.c.l.b16 %v739
        %v1017 = vunpack.c.h.b16 %v739
        %v1018 = vunpack.c.l.b16 %v740
        %v1019 = vunpack.c.h.b16 %v740
        %v1020 = vunpack.c.l.b16 %v741
        %v1021 = vunpack.c.h.b16 %v741
        %v1022 = vunpack.c.l.b16 %v742
        %v1023 = vunpack.c.h.b16 %v742
        %v1024 = vunpack.c.l.b16 %v743
        %v1025 = vunpack.c.h.b16 %v743
        %v1026 = vunpack.c.l.b16 %v744
        %v1027 = vunpack.c.h.b16 %v744
        %v1028 = vunpack.c.l.b16 %v745
        %v1029 = vunpack.c.h.b16 %v745
        %v1030 = vunpack.c.l.b16 %v746
        %v1031 = vunpack.c.h.b16 %v746
        %v1032 = vunpack.c.l.b16 %v747
        %v1033 = vunpack.c.h.b16 %v747
        %v1034 = vunpack.c.l.b16 %v748
        %v1035 = vunpack.c.h.b16 %v748
        %v1036 = vunpack.c.l.b16 %v749
        %v1037 = vunpack.c.h.b16 %v749
        %v1038 = vunpack.c.l.b16 %v750
        %v1039 = vunpack.c.h.b16 %v750
        %v1040 = vunpack.c.l.b16 %v751
        %v1041 = vunpack.c.h.b16 %v751
        %v1042 = vunpack.c.l.b16 %v752
        %v1043 = vunpack.c.h.b16 %v752
        %v1044 = vunpack.c.l.b16 %v753
        %v1045 = vunpack.c.h.b16 %v753
        %v1046 = vunpack.c.l.b16 %v754
        %v1047 = vunpack.c.h.b16 %v754
        %v1048 = vunpack.c.l.b16 %v755
        %v1049 = vunpack.c.h.b16 %v755
        %v1050 = vunpack.c.l.b16 %v756
        %v1051 = vunpack.c.h.b16 %v756
        %v1052 = vunpack.c.l.b16 %v757
        %v1053 = vunpack.c.h.b16 %v757
        %v1054 = vunpack.c.l.b16 %v758
        %v1055 = vunpack.c.h.b16 %v758
        %v1056 = vunpack.c.l.b16 %v759
        %v1057 = vunpack.c.h.b16 %v759
        %v1058 = vunpack.c.l.b16 %v760
        %v1059 = vunpack.c.h.b16 %v760
        %v1060 = vunpack.c.l.b16 %v761
        %v1061 = vunpack.c.h.b16 %v761
        %v1062 = vunpack.c.l.b16 %v762
        %v1063 = vunpack.c.h.b16 %v762
        %v1064 = vunpack.c.l.b16 %v763
        %v1065 = vunpack.c.h.b16 %v763
        %v1066 = vpack.c.b16 %v880, %v874
        %v1067 = vpack.c.b16 %v881, %v875
        %v1068 = vpack.c.b16 %v882, %v876
        %v1069 = vpack.c.b16 %v883, %v877
        %v1070 = vpack.c.b16 %v884, %v878
        %v1071 = vpack.c.b16 %v885, %v879
        %v1072 = vpack.c.b16 %v892, %v886
        %v1073 = vpack.c.b16 %v893, %v887
        %v1074 = vpack.c.b16 %v894, %v888
        %v1075 = vpack.c.b16 %v895, %v889
        %v1076 = vpack.c.b16 %v896, %v890
        %v1077 = vpack.c.b16 %v897, %v891
        %v1078 = vpack.c.b16 %v904, %v898
        %v1079 = vpack.c.b16 %v905, %v899
        %v1080 = vpack.c.b16 %v906, %v900
        %v1081 = vpack.c.b16 %v907, %v901
        %v1082 = vpack.c.b16 %v908, %v902
        %v1083 = vpack.c.b16 %v909, %v903
        %v1084 = vpack.c.b16 %v916, %v910
        %v1085 = vpack.c.b16 %v917, %v911
        %v1086 = vpack.c.b16 %v918, %v912
        %v1087 = vpack.c.b16 %v919, %v913
        %v1088 = vpack.c.b16 %v920, %v914
        %v1089 = vpack.c.b16 %v921, %v915
        %v1090 = vpack.c.b16 %v928, %v922
        %v1091 = vpack.c.b16 %v929, %v923
        %v1092 = vpack.c.b16 %v930, %v924
        %v1093 = vpack.c.b16 %v931, %v925
        %v1094 = vpack.c.b16 %v932, %v926
        %v1095 = vpack.c.b16 %v933, %v927
        %v1096 = vpack.c.b16 %v940, %v934
        %v1097 = vpack.c.b16 %v941, %v935
        %v1098 = vpack.c.b16 %v942, %v936
        %v1099 = vpack.c.b16 %v943, %v937
        %v1100 = vpack.c.b16 %v944, %v938
        %v1101 = vpack.c.b16 %v945, %v939
        %v1102 = vpack.c.b16 %v952, %v946
        %v1103 = vpack.c.b16 %v953, %v947
        %v1104 = vpack.c.b16 %v954, %v948
        %v1105 = vpack.c.b16 %v955, %v949
        %v1106 = vpack.c.b16 %v956, %v950
        %v1107 = vpack.c.b16 %v957, %v951
        %v1108 = vpack.c.b16 %v964, %v958
        %v1109 = vpack.c.b16 %v965, %v959
        %v1110 = vpack.c.b16 %v966, %v960
        %v1111 = vpack.c.b16 %v967, %v961
        %v1112 = vpack.c.b16 %v968, %v962
        %v1113 = vpack.c.b16 %v969, %v963
        %v1114 = vpack.c.b16 %v976, %v970
        %v1115 = vpack.c.b16 %v977, %v971
        %v1116 = vpack.c.b16 %v978, %v972
        %v1117 = vpack.c.b16 %v979, %v973
        %v1118 = vpack.c.b16 %v980, %v974
        %v1119 = vpack.c.b16 %v981, %v975
        %v1120 = vpack.c.b16 %v988, %v982
        %v1121 = vpack.c.b16 %v989, %v983
        %v1122 = vpack.c.b16 %v990, %v984
        %v1123 = vpack.c.b16 %v991, %v985
        %v1124 = vpack.c.b16 %v992, %v986
        %v1125 = vpack.c.b16 %v993, %v987
        %v1126 = vpack.c.b16 %v1000, %v994
        %v1127 = vpack.c.b16 %v1001, %v995
        %v1128 = vpack.c.b16 %v1002, %v996
        %v1129 = vpack.c.b16 %v1003, %v997
        %v1130 = vpack.c.b16 %v1004, %v998
        %v1131 = vpack.c.b16 %v1005, %v999
        %v1132 = vpack.c.b16 %v1012, %v1006
        %v1133 = vpack.c.b16 %v1013, %v1007
        %v1134 = vpack.c.b16 %v1014, %v1008
        %v1135 = vpack.c.b16 %v1015, %v1009
        %v1136 = vpack.c.b16 %v1016, %v1010
        %v1137 = vpack.c.b16 %v1017, %v1011
        %v1138 = vpack.c.b16 %v1024, %v1018
        %v1139 = vpack.c.b16 %v1025, %v1019
        %v1140 = vpack.c.b16 %v1026, %v1020
        %v1141 = vpack.c.b16 %v1027, %v1021
        %v1142 = vpack.c.b16 %v1028, %v1022
        %v1143 = vpack.c.b16 %v1029, %v1023
        %v1144 = vpack.c.b16 %v1036, %v1030
        %v1145 = vpack.c.b16 %v1037, %v1031
        %v1146 = vpack.c.b16 %v1038, %v1032
        %v1147 = vpack.c.b16 %v1039, %v1033
        %v1148 = vpack.c.b16 %v1040, %v1034
        %v1149 = vpack.c.b16 %v1041, %v1035
        %v1150 = vpack.c.b16 %v1048, %v1042
        %v1151 = vpack.c.b16 %v1049, %v1043
        %v1152 = vpack.c.b16 %v1050, %v1044
        %v1153 = vpack.c.b16 %v1051, %v1045
        %v1154 = vpack.c.b16 %v1052, %v1046
        %v1155 = vpack.c.b16 %v1053, %v1047
        %v1156 = vpack.c.b16 %v1060, %v1054
        %v1157 = vpack.c.b16 %v1061, %v1055
        %v1158 = vpack.c.b16 %v1062, %v1056
        %v1159 = vpack.c.b16 %v1063, %v1057
        %v1160 = vpack.c.b16 %v1064, %v1058
        %v1161 = vpack.c.b16 %v1065, %v1059
        %1258 = vmatpush.bf16.msra.mxu0 %v1108
        %1259 = vmatpush.bf16.msra.mxu0 %v1102
        %1260 = vmatpush.bf16.msra.mxu0 %v1096
        %1261 = vmatpush.bf16.msra.mxu0 %v1090
        %1262 = vmatpush.bf16.msra.mxu0 %v1084
        %1263 = vmatpush.bf16.msra.mxu0 %v1078
        %1264 = vmatpush.bf16.msra.mxu0 %v1072
        %1265 = vmatpush.bf16.msra.mxu0 %v1066
        %1266 = vmatmul.bf16.gmra.mxu0 %v666
        %v1267 = vpop.f32.mrf.mxu0
        %v1268 = vadd.f32 %v766, %v1267
        %v1269 = vpop.f32.mrf.mxu0
        %v1270 = vadd.f32 %v766, %v1269
        %1271 = vdwg.mxu0
        %1272 = vmatpush.bf16.msra.mxu0 %v1156
        %1273 = vmatpush.bf16.msra.mxu0 %v1150
        %1274 = vmatpush.bf16.msra.mxu0 %v1144
        %1275 = vmatpush.bf16.msra.mxu0 %v1138
        %1276 = vmatpush.bf16.msra.mxu0 %v1132
        %1277 = vmatpush.bf16.msra.mxu0 %v1126
        %1278 = vmatpush.bf16.msra.mxu0 %v1120
        %1279 = vmatpush.bf16.msra.mxu0 %v1114
        %1280 = vmatmul.bf16.gmra.mxu0 %v667
        %v1281 = vpop.f32.mrf.mxu0
        %v1282 = vadd.f32 %v1268, %v1281
        %v1283 = vpop.f32.mrf.mxu0
        %v1284 = vadd.f32 %v1270, %v1283
        %1285 = vdwg.mxu0
        %1286 = vmatpush.bf16.msra.mxu0 %v1109
        %1287 = vmatpush.bf16.msra.mxu0 %v1103
        %1288 = vmatpush.bf16.msra.mxu0 %v1097
        %1289 = vmatpush.bf16.msra.mxu0 %v1091
        %1290 = vmatpush.bf16.msra.mxu0 %v1085
        %1291 = vmatpush.bf16.msra.mxu0 %v1079
        %1292 = vmatpush.bf16.msra.mxu0 %v1073
        %1293 = vmatpush.bf16.msra.mxu0 %v1067
        %1294 = vmatmul.bf16.gmra.mxu0 %v666
        %v1295 = vpop.f32.mrf.mxu0
        %v1296 = vadd.f32 %v767, %v1295
        %v1297 = vpop.f32.mrf.mxu0
        %v1298 = vadd.f32 %v767, %v1297
        %1299 = vdwg.mxu0
        %1300 = vmatpush.bf16.msra.mxu0 %v1157
        %1301 = vmatpush.bf16.msra.mxu0 %v1151
        %1302 = vmatpush.bf16.msra.mxu0 %v1145
        %1303 = vmatpush.bf16.msra.mxu0 %v1139
        %1304 = vmatpush.bf16.msra.mxu0 %v1133
        %1305 = vmatpush.bf16.msra.mxu0 %v1127
        %1306 = vmatpush.bf16.msra.mxu0 %v1121
        %1307 = vmatpush.bf16.msra.mxu0 %v1115
        %1308 = vmatmul.bf16.gmra.mxu0 %v667
        %v1309 = vpop.f32.mrf.mxu0
        %v1310 = vadd.f32 %v1296, %v1309
        %v1311 = vpop.f32.mrf.mxu0
        %v1312 = vadd.f32 %v1298, %v1311
        %1313 = vdwg.mxu0
        %1314 = vmatpush.bf16.msra.mxu0 %v1110
        %1315 = vmatpush.bf16.msra.mxu0 %v1104
        %1316 = vmatpush.bf16.msra.mxu0 %v1098
        %1317 = vmatpush.bf16.msra.mxu0 %v1092
        %1318 = vmatpush.bf16.msra.mxu0 %v1086
        %1319 = vmatpush.bf16.msra.mxu0 %v1080
        %1320 = vmatpush.bf16.msra.mxu0 %v1074
        %1321 = vmatpush.bf16.msra.mxu0 %v1068
        %1322 = vmatmul.bf16.gmra.mxu0 %v666
        %v1323 = vpop.f32.mrf.mxu0
        %v1324 = vadd.f32 %v768, %v1323
        %v1325 = vpop.f32.mrf.mxu0
        %v1326 = vadd.f32 %v768, %v1325
        %1327 = vdwg.mxu0
        %1328 = vmatpush.bf16.msra.mxu0 %v1158
        %1329 = vmatpush.bf16.msra.mxu0 %v1152
        %1330 = vmatpush.bf16.msra.mxu0 %v1146
        %1331 = vmatpush.bf16.msra.mxu0 %v1140
        %1332 = vmatpush.bf16.msra.mxu0 %v1134
        %1333 = vmatpush.bf16.msra.mxu0 %v1128
        %1334 = vmatpush.bf16.msra.mxu0 %v1122
        %1335 = vmatpush.bf16.msra.mxu0 %v1116
        %1336 = vmatmul.bf16.gmra.mxu0 %v667
        %v1337 = vpop.f32.mrf.mxu0
        %v1338 = vadd.f32 %v1324, %v1337
        %v1339 = vpop.f32.mrf.mxu0
        %v1340 = vadd.f32 %v1326, %v1339
        %1341 = vdwg.mxu0
        %1342 = vmatpush.bf16.msra.mxu0 %v1111
        %1343 = vmatpush.bf16.msra.mxu0 %v1105
        %1344 = vmatpush.bf16.msra.mxu0 %v1099
        %1345 = vmatpush.bf16.msra.mxu0 %v1093
        %1346 = vmatpush.bf16.msra.mxu0 %v1087
        %1347 = vmatpush.bf16.msra.mxu0 %v1081
        %1348 = vmatpush.bf16.msra.mxu0 %v1075
        %1349 = vmatpush.bf16.msra.mxu0 %v1069
        %1350 = vmatmul.bf16.gmra.mxu0 %v666
        %v1351 = vpop.f32.mrf.mxu0
        %v1352 = vadd.f32 %v769, %v1351
        %v1353 = vpop.f32.mrf.mxu0
        %v1354 = vadd.f32 %v769, %v1353
        %1355 = vdwg.mxu0
        %1356 = vmatpush.bf16.msra.mxu0 %v1159
        %1357 = vmatpush.bf16.msra.mxu0 %v1153
        %1358 = vmatpush.bf16.msra.mxu0 %v1147
        %1359 = vmatpush.bf16.msra.mxu0 %v1141
        %1360 = vmatpush.bf16.msra.mxu0 %v1135
        %1361 = vmatpush.bf16.msra.mxu0 %v1129
        %1362 = vmatpush.bf16.msra.mxu0 %v1123
        %1363 = vmatpush.bf16.msra.mxu0 %v1117
        %1364 = vmatmul.bf16.gmra.mxu0 %v667
        %v1365 = vpop.f32.mrf.mxu0
        %v1366 = vadd.f32 %v1352, %v1365
        %v1367 = vpop.f32.mrf.mxu0
        %v1368 = vadd.f32 %v1354, %v1367
        %1369 = vdwg.mxu0
        %1370 = vmatpush.bf16.msra.mxu0 %v1112
        %1371 = vmatpush.bf16.msra.mxu0 %v1106
        %1372 = vmatpush.bf16.msra.mxu0 %v1100
        %1373 = vmatpush.bf16.msra.mxu0 %v1094
        %1374 = vmatpush.bf16.msra.mxu0 %v1088
        %1375 = vmatpush.bf16.msra.mxu0 %v1082
        %1376 = vmatpush.bf16.msra.mxu0 %v1076
        %1377 = vmatpush.bf16.msra.mxu0 %v1070
        %1378 = vmatmul.bf16.gmra.mxu0 %v666
        %v1379 = vpop.f32.mrf.mxu0
        %v1380 = vadd.f32 %v770, %v1379
        %v1381 = vpop.f32.mrf.mxu0
        %v1382 = vadd.f32 %v770, %v1381
        %1383 = vdwg.mxu0
        %1384 = vmatpush.bf16.msra.mxu0 %v1160
        %1385 = vmatpush.bf16.msra.mxu0 %v1154
        %1386 = vmatpush.bf16.msra.mxu0 %v1148
        %1387 = vmatpush.bf16.msra.mxu0 %v1142
        %1388 = vmatpush.bf16.msra.mxu0 %v1136
        %1389 = vmatpush.bf16.msra.mxu0 %v1130
        %1390 = vmatpush.bf16.msra.mxu0 %v1124
        %1391 = vmatpush.bf16.msra.mxu0 %v1118
        %1392 = vmatmul.bf16.gmra.mxu0 %v667
        %v1393 = vpop.f32.mrf.mxu0
        %v1394 = vadd.f32 %v1380, %v1393
        %v1395 = vpop.f32.mrf.mxu0
        %v1396 = vadd.f32 %v1382, %v1395
        %1397 = vdwg.mxu0
        %1398 = vmatpush.bf16.msra.mxu0 %v1113
        %1399 = vmatpush.bf16.msra.mxu0 %v1107
        %1400 = vmatpush.bf16.msra.mxu0 %v1101
        %1401 = vmatpush.bf16.msra.mxu0 %v1095
        %1402 = vmatpush.bf16.msra.mxu0 %v1089
        %1403 = vmatpush.bf16.msra.mxu0 %v1083
        %1404 = vmatpush.bf16.msra.mxu0 %v1077
        %1405 = vmatpush.bf16.msra.mxu0 %v1071
        %1406 = vmatmul.bf16.gmra.mxu0 %v666
        %v1407 = vpop.f32.mrf.mxu0
        %v1408 = vadd.f32 %v771, %v1407
        %v1409 = vpop.f32.mrf.mxu0
        %v1410 = vadd.f32 %v771, %v1409
        %1411 = vdwg.mxu0
        %1412 = vmatpush.bf16.msra.mxu0 %v1161
        %1413 = vmatpush.bf16.msra.mxu0 %v1155
        %1414 = vmatpush.bf16.msra.mxu0 %v1149
        %1415 = vmatpush.bf16.msra.mxu0 %v1143
        %1416 = vmatpush.bf16.msra.mxu0 %v1137
        %1417 = vmatpush.bf16.msra.mxu0 %v1131
        %1418 = vmatpush.bf16.msra.mxu0 %v1125
        %1419 = vmatpush.bf16.msra.mxu0 %v1119
        %1420 = vmatmul.bf16.gmra.mxu0 %v667
        %v1421 = vpop.f32.mrf.mxu0
        %v1422 = vadd.f32 %v1408, %v1421
        %v1423 = vpop.f32.mrf.mxu0
        %v1424 = vadd.f32 %v1410, %v1423
        %1425 = vdwg.mxu0
        %v1426 = vpack.c.bf16 %v1422, %v1394
        %v1427 = vpack.c.bf16 %v1424, %v1396
        %v1428 = vmul.f32 %v1282, %v586
        %v1429 = vmul.f32 %v1284, %v587
        %1430 = vrot.lane.b32.xlu0 %v1282, 64
        %v1431 = vpop.permute.xlu0 %1430
        %1432 = vrot.lane.b32.xlu0 %v1284, 64
        %v1433 = vpop.permute.xlu0 %1432
        %v1434 = vmul.f32 %v1431, %v588
        %v1435 = vmul.f32 %v1433, %v589
        %v1436 = vadd.f32 %v1428, %v1434
        %v1437 = vadd.f32 %v1429, %v1435
        %v1438 = vpack.c.bf16 %v1437, %v1436
        %v1439 = vmul.f32 %v1338, %v586
        %v1440 = vmul.f32 %v1340, %v587
        %1441 = vrot.lane.b32.xlu0 %v1338, 64
        %v1442 = vpop.permute.xlu0 %1441
        %1443 = vrot.lane.b32.xlu0 %v1340, 64
        %v1444 = vpop.permute.xlu0 %1443
        %v1445 = vmul.f32 %v1442, %v588
        %v1446 = vmul.f32 %v1444, %v589
        %v1447 = vadd.f32 %v1439, %v1445
        %v1448 = vadd.f32 %v1440, %v1446
        %v1449 = vpack.c.bf16 %v1448, %v1447
        %1450 = vmatpush.bf16.xpose.msra.mxu0 0
        %1451 = vmatpush.bf16.xpose.msra.mxu0 0
        %1452 = vmatpush.bf16.xpose.msra.mxu0 0
        %1453 = vmatpush.bf16.xpose.msra.mxu0 0
        %1454 = vmatpush.bf16.xpose.msra.mxu0 0
        %1455 = vmatpush.bf16.xpose.msra.mxu0 0
        %1456 = vmatpush.bf16.xpose.msra.mxu0 0
        %1457 = vmatpush.bf16.xpose.msra.mxu0 %v1449
        %1458 = vmatmul.bf16.gmra.mxu0 %v1438
        %v1459 = vpop.f32.mrf.mxu0
        %v1460 = vadd.f32 %v597, %v1459
        %v1461 = vpop.f32.mrf.mxu0
        %v1462 = vadd.f32 %v598, %v1461
        %1463 = vdwg.mxu0
        %vm1464 = vcmask 130048
        %v1465 = vsel %vm1464, %v1460, -inf
        %1466 = vmax.xlane.f32.xlu0 %v1465
        %v1467 = vpop.xlane.xlu0 %1466
        %v1468 = vsel %vm1464, %v1462, -inf
        %1469 = vmax.xlane.f32.xlu0 %v1468
        %v1470 = vpop.xlane.xlu0 %1469
        %v1471 = vsub.f32 %v1460, %v1467
        %v1472 = vsub.f32 %v1462, %v1470
        %v1473 = vmul.f32 %v1471, 1.442695
        %v1474 = vpow.pop %v1473
        %v1475 = vmul.f32 %v1472, 1.442695
        %v1476 = vpow.pop %v1475
        %v1477 = vsel %vm1464, %v1474, 0.0
        %1478 = vadd.xlane.f32.xlu0 %v1477
        %v1479 = vpop.xlane.xlu0 %1478
        %v1480 = vsel %vm1464, %v1476, 0.0
        %1481 = vadd.xlane.f32.xlu0 %v1480
        %v1482 = vpop.xlane.xlu0 %1481
        %v1483 = vrcp.pop %v1479
        %v1484 = vrcp.pop %v1482
        %v1485 = vmul.f32 %v1474, %v1483
        %v1486 = vmul.f32 %v1476, %v1484
        %v1487 = vpack.c.bf16 %v1486, %v1485
        %v1490 = vunpack.c.l.b16 %v1426
        %v1491 = vunpack.c.l.b16 %v1427
        %v1492 = vpack.c.b16 %v1491, %v1490
        %v1495 = vsel %vm1464, %v1487, 0
        %1497 = vmatpush.bf16.msra.mxu0 0
        %1498 = vmatpush.bf16.msra.mxu0 0
        %1499 = vmatpush.bf16.msra.mxu0 0
        %1500 = vmatpush.bf16.msra.mxu0 0
        %1501 = vmatpush.bf16.msra.mxu0 0
        %1502 = vmatpush.bf16.msra.mxu0 0
        %1503 = vmatpush.bf16.msra.mxu0 0
        %1504 = vmatpush.bf16.msra.mxu0 %v1492
        %1505 = vmatmul.bf16.gmra.mxu0 %v1495
        %v1506 = vpop.f32.mrf.mxu0
        %v1507 = vadd.f32 0.0, %v1506
        %v1508 = vpop.f32.mrf.mxu0
        %v1509 = vadd.f32 0.0, %v1508
        %1510 = vdwg.mxu0
        %v1511 = vpack.c.bf16 %v1507, %v1507
        %v1512 = vpack.c.bf16 %v1509, %v1509
        %1513 = vst [vmem:[#allocation4] sm:$0xf] %v1511
        %1514 = vst [vmem:[#allocation4 + $0x8] sm:$0xf] %v1512
        %v1515 = vmul.f32 %v1310, %v586
        %v1516 = vmul.f32 %v1312, %v587
        %1517 = vrot.lane.b32.xlu0 %v1310, 64
        %v1518 = vpop.permute.xlu0 %1517
        %1519 = vrot.lane.b32.xlu0 %v1312, 64
        %v1520 = vpop.permute.xlu0 %1519
        %v1521 = vmul.f32 %v1518, %v588
        %v1522 = vmul.f32 %v1520, %v589
        %v1523 = vadd.f32 %v1515, %v1521
        %v1524 = vadd.f32 %v1516, %v1522
        %v1525 = vpack.c.bf16 %v1524, %v1523
        %v1526 = vmul.f32 %v1366, %v586
        %v1527 = vmul.f32 %v1368, %v587
        %1528 = vrot.lane.b32.xlu0 %v1366, 64
        %v1529 = vpop.permute.xlu0 %1528
        %1530 = vrot.lane.b32.xlu0 %v1368, 64
        %v1531 = vpop.permute.xlu0 %1530
        %v1532 = vmul.f32 %v1529, %v588
        %v1533 = vmul.f32 %v1531, %v589
        %v1534 = vadd.f32 %v1526, %v1532
        %v1535 = vadd.f32 %v1527, %v1533
        %v1536 = vpack.c.bf16 %v1535, %v1534
        %1537 = vmatpush.bf16.xpose.msra.mxu0 0
        %1538 = vmatpush.bf16.xpose.msra.mxu0 0
        %1539 = vmatpush.bf16.xpose.msra.mxu0 0
        %1540 = vmatpush.bf16.xpose.msra.mxu0 0
        %1541 = vmatpush.bf16.xpose.msra.mxu0 0
        %1542 = vmatpush.bf16.xpose.msra.mxu0 0
        %1543 = vmatpush.bf16.xpose.msra.mxu0 0
        %1544 = vmatpush.bf16.xpose.msra.mxu0 %v1536
        %1545 = vmatmul.bf16.gmra.mxu0 %v1525
        %v1546 = vpop.f32.mrf.mxu0
        %v1547 = vadd.f32 %v597, %v1546
        %v1548 = vpop.f32.mrf.mxu0
        %v1549 = vadd.f32 %v598, %v1548
        %1550 = vdwg.mxu0
        %v1551 = vsel %vm1464, %v1547, -inf
        %1552 = vmax.xlane.f32.xlu0 %v1551
        %v1553 = vpop.xlane.xlu0 %1552
        %v1554 = vsel %vm1464, %v1549, -inf
        %1555 = vmax.xlane.f32.xlu0 %v1554
        %v1556 = vpop.xlane.xlu0 %1555
        %v1557 = vsub.f32 %v1547, %v1553
        %v1558 = vsub.f32 %v1549, %v1556
        %v1559 = vmul.f32 %v1557, 1.442695
        %v1560 = vpow.pop %v1559
        %v1561 = vmul.f32 %v1558, 1.442695
        %v1562 = vpow.pop %v1561
        %v1563 = vsel %vm1464, %v1560, 0.0
        %1564 = vadd.xlane.f32.xlu0 %v1563
        %v1565 = vpop.xlane.xlu0 %1564
        %v1566 = vsel %vm1464, %v1562, 0.0
        %1567 = vadd.xlane.f32.xlu0 %v1566
        %v1568 = vpop.xlane.xlu0 %1567
        %v1569 = vrcp.pop %v1565
        %v1570 = vrcp.pop %v1568
        %v1571 = vmul.f32 %v1560, %v1569
        %v1572 = vmul.f32 %v1562, %v1570
        %v1573 = vpack.c.bf16 %v1572, %v1571
        %v1574 = vunpack.c.h.b16 %v1426
        %v1575 = vunpack.c.h.b16 %v1427
        %v1576 = vpack.c.b16 %v1575, %v1574
        %v1579 = vsel %vm1464, %v1573, 0
        %1581 = vmatpush.bf16.msra.mxu0 0
        %1582 = vmatpush.bf16.msra.mxu0 0
        %1583 = vmatpush.bf16.msra.mxu0 0
        %1584 = vmatpush.bf16.msra.mxu0 0
        %1585 = vmatpush.bf16.msra.mxu0 0
        %1586 = vmatpush.bf16.msra.mxu0 0
        %1587 = vmatpush.bf16.msra.mxu0 0
        %1588 = vmatpush.bf16.msra.mxu0 %v1576
        %1589 = vmatmul.bf16.gmra.mxu0 %v1579
        %v1590 = vpop.f32.mrf.mxu0
        %v1591 = vadd.f32 0.0, %v1590
        %v1592 = vpop.f32.mrf.mxu0
        %v1593 = vadd.f32 0.0, %v1592
        %1594 = vdwg.mxu0
        %v1595 = vpack.c.bf16 %v1591, %v1591
        %v1596 = vpack.c.bf16 %v1593, %v1593
        %1597 = vst [vmem:[#allocation4 + $0x4] sm:$0xf] %v1595
        %1598 = vst [vmem:[#allocation4 + $0xc] sm:$0xf] %v1596
        %v1599 = vld [vmem:[#allocation4] sm:$0xff]
        %v1600 = vld [vmem:[#allocation4 + $0x8] sm:$0xff]
        %v1601 = vld [vmem:[%s475] sm:$0xff]
        %v1602 = vld [vmem:[%s475 + $0x8] sm:$0xff]
        %v1603 = vld [vmem:[%s475 + $0x10] sm:$0xff]
        %v1604 = vld [vmem:[%s475 + $0x18] sm:$0xff]
        %v1605 = vld [vmem:[%s475 + $0x20] sm:$0xff]
        %v1606 = vld [vmem:[%s475 + $0x28] sm:$0xff]
        %v1607 = vld [vmem:[%s475 + $0x30] sm:$0xff]
        %v1608 = vld [vmem:[%s475 + $0x38] sm:$0xff]
        %v1609 = vld [vmem:[%s475 + $0x40] sm:$0xff]
        %v1610 = vld [vmem:[%s475 + $0x48] sm:$0xff]
        %v1611 = vld [vmem:[%s475 + $0x50] sm:$0xff]
        %v1612 = vld [vmem:[%s475 + $0x58] sm:$0xff]
        %v1613 = vld [vmem:[%s475 + $0x60] sm:$0xff]
        %v1614 = vld [vmem:[%s475 + $0x68] sm:$0xff]
        %v1615 = vld [vmem:[%s475 + $0x70] sm:$0xff]
        %v1616 = vld [vmem:[%s475 + $0x78] sm:$0xff]
        %v1617 = vld [vmem:[%s475 + $0x80] sm:$0xff]
        %v1618 = vld [vmem:[%s475 + $0x88] sm:$0xff]
        %v1619 = vld [vmem:[%s475 + $0x90] sm:$0xff]
        %v1620 = vld [vmem:[%s475 + $0x98] sm:$0xff]
        %v1621 = vld [vmem:[%s475 + $0xa0] sm:$0xff]
        %v1622 = vld [vmem:[%s475 + $0xa8] sm:$0xff]
        %v1623 = vld [vmem:[%s475 + $0xb0] sm:$0xff]
        %v1624 = vld [vmem:[%s475 + $0xb8] sm:$0xff]
        %v1625 = vld [vmem:[%s475 + $0xc0] sm:$0xff]
        %v1626 = vld [vmem:[%s475 + $0xc8] sm:$0xff]
        %v1627 = vld [vmem:[%s475 + $0xd0] sm:$0xff]
        %v1628 = vld [vmem:[%s475 + $0xd8] sm:$0xff]
        %v1629 = vld [vmem:[%s475 + $0xe0] sm:$0xff]
        %v1630 = vld [vmem:[%s475 + $0xe8] sm:$0xff]
        %v1631 = vld [vmem:[%s475 + $0xf0] sm:$0xff]
        %v1632 = vld [vmem:[%s475 + $0xf8] sm:$0xff]
        %v1635 = vunpack.c.l.b16 %v1599
        %v1636 = vunpack.c.h.b16 %v1599
        %v1637 = vunpack.c.l.b16 %v1600
        %v1638 = vunpack.c.h.b16 %v1600
        %v1639 = vpack.c.b16 %v1637, %v1635
        %v1640 = vpack.c.b16 %v1638, %v1636
        %v1675 = vunpack.c.l.b16 %v1601
        %v1676 = vunpack.c.h.b16 %v1601
        %v1677 = vunpack.c.l.b16 %v1602
        %v1678 = vunpack.c.h.b16 %v1602
        %v1679 = vunpack.c.l.b16 %v1603
        %v1680 = vunpack.c.h.b16 %v1603
        %v1681 = vunpack.c.l.b16 %v1604
        %v1682 = vunpack.c.h.b16 %v1604
        %v1683 = vunpack.c.l.b16 %v1605
        %v1684 = vunpack.c.h.b16 %v1605
        %v1685 = vunpack.c.l.b16 %v1606
        %v1686 = vunpack.c.h.b16 %v1606
        %v1687 = vunpack.c.l.b16 %v1607
        %v1688 = vunpack.c.h.b16 %v1607
        %v1689 = vunpack.c.l.b16 %v1608
        %v1690 = vunpack.c.h.b16 %v1608
        %v1691 = vunpack.c.l.b16 %v1609
        %v1692 = vunpack.c.h.b16 %v1609
        %v1693 = vunpack.c.l.b16 %v1610
        %v1694 = vunpack.c.h.b16 %v1610
        %v1695 = vunpack.c.l.b16 %v1611
        %v1696 = vunpack.c.h.b16 %v1611
        %v1697 = vunpack.c.l.b16 %v1612
        %v1698 = vunpack.c.h.b16 %v1612
        %v1699 = vunpack.c.l.b16 %v1613
        %v1700 = vunpack.c.h.b16 %v1613
        %v1701 = vunpack.c.l.b16 %v1614
        %v1702 = vunpack.c.h.b16 %v1614
        %v1703 = vunpack.c.l.b16 %v1615
        %v1704 = vunpack.c.h.b16 %v1615
        %v1705 = vunpack.c.l.b16 %v1616
        %v1706 = vunpack.c.h.b16 %v1616
        %v1707 = vunpack.c.l.b16 %v1617
        %v1708 = vunpack.c.h.b16 %v1617
        %v1709 = vunpack.c.l.b16 %v1618
        %v1710 = vunpack.c.h.b16 %v1618
        %v1711 = vunpack.c.l.b16 %v1619
        %v1712 = vunpack.c.h.b16 %v1619
        %v1713 = vunpack.c.l.b16 %v1620
        %v1714 = vunpack.c.h.b16 %v1620
        %v1715 = vunpack.c.l.b16 %v1621
        %v1716 = vunpack.c.h.b16 %v1621
        %v1717 = vunpack.c.l.b16 %v1622
        %v1718 = vunpack.c.h.b16 %v1622
        %v1719 = vunpack.c.l.b16 %v1623
        %v1720 = vunpack.c.h.b16 %v1623
        %v1721 = vunpack.c.l.b16 %v1624
        %v1722 = vunpack.c.h.b16 %v1624
        %v1723 = vunpack.c.l.b16 %v1625
        %v1724 = vunpack.c.h.b16 %v1625
        %v1725 = vunpack.c.l.b16 %v1626
        %v1726 = vunpack.c.h.b16 %v1626
        %v1727 = vunpack.c.l.b16 %v1627
        %v1728 = vunpack.c.h.b16 %v1627
        %v1729 = vunpack.c.l.b16 %v1628
        %v1730 = vunpack.c.h.b16 %v1628
        %v1731 = vunpack.c.l.b16 %v1629
        %v1732 = vunpack.c.h.b16 %v1629
        %v1733 = vunpack.c.l.b16 %v1630
        %v1734 = vunpack.c.h.b16 %v1630
        %v1735 = vunpack.c.l.b16 %v1631
        %v1736 = vunpack.c.h.b16 %v1631
        %v1737 = vunpack.c.l.b16 %v1632
        %v1738 = vunpack.c.h.b16 %v1632
        %v1739 = vpack.c.b16 %v1677, %v1675
        %v1740 = vpack.c.b16 %v1678, %v1676
        %v1741 = vpack.c.b16 %v1681, %v1679
        %v1742 = vpack.c.b16 %v1682, %v1680
        %v1743 = vpack.c.b16 %v1685, %v1683
        %v1744 = vpack.c.b16 %v1686, %v1684
        %v1745 = vpack.c.b16 %v1689, %v1687
        %v1746 = vpack.c.b16 %v1690, %v1688
        %v1747 = vpack.c.b16 %v1693, %v1691
        %v1748 = vpack.c.b16 %v1694, %v1692
        %v1749 = vpack.c.b16 %v1697, %v1695
        %v1750 = vpack.c.b16 %v1698, %v1696
        %v1751 = vpack.c.b16 %v1701, %v1699
        %v1752 = vpack.c.b16 %v1702, %v1700
        %v1753 = vpack.c.b16 %v1705, %v1703
        %v1754 = vpack.c.b16 %v1706, %v1704
        %v1755 = vpack.c.b16 %v1709, %v1707
        %v1756 = vpack.c.b16 %v1710, %v1708
        %v1757 = vpack.c.b16 %v1713, %v1711
        %v1758 = vpack.c.b16 %v1714, %v1712
        %v1759 = vpack.c.b16 %v1717, %v1715
        %v1760 = vpack.c.b16 %v1718, %v1716
        %v1761 = vpack.c.b16 %v1721, %v1719
        %v1762 = vpack.c.b16 %v1722, %v1720
        %v1763 = vpack.c.b16 %v1725, %v1723
        %v1764 = vpack.c.b16 %v1726, %v1724
        %v1765 = vpack.c.b16 %v1729, %v1727
        %v1766 = vpack.c.b16 %v1730, %v1728
        %v1767 = vpack.c.b16 %v1733, %v1731
        %v1768 = vpack.c.b16 %v1734, %v1732
        %v1769 = vpack.c.b16 %v1737, %v1735
        %v1770 = vpack.c.b16 %v1738, %v1736
        %1803 = vmatpush.bf16.msra.mxu0 %v1753
        %1804 = vmatpush.bf16.msra.mxu0 %v1751
        %1805 = vmatpush.bf16.msra.mxu0 %v1749
        %1806 = vmatpush.bf16.msra.mxu0 %v1747
        %1807 = vmatpush.bf16.msra.mxu0 %v1745
        %1808 = vmatpush.bf16.msra.mxu0 %v1743
        %1809 = vmatpush.bf16.msra.mxu0 %v1741
        %1810 = vmatpush.bf16.msra.mxu0 %v1739
        %1811 = vmatmul.bf16.gmra.mxu0 %v1639
        %v1812 = vpop.f32.mrf.mxu0
        %v1813 = vadd.f32 %v607, %v1812
        %v1814 = vpop.f32.mrf.mxu0
        %v1815 = vadd.f32 %v609, %v1814
        %1816 = vdwg.mxu0
        %1817 = vmatpush.bf16.msra.mxu0 %v1769
        %1818 = vmatpush.bf16.msra.mxu0 %v1767
        %1819 = vmatpush.bf16.msra.mxu0 %v1765
        %1820 = vmatpush.bf16.msra.mxu0 %v1763
        %1821 = vmatpush.bf16.msra.mxu0 %v1761
        %1822 = vmatpush.bf16.msra.mxu0 %v1759
        %1823 = vmatpush.bf16.msra.mxu0 %v1757
        %1824 = vmatpush.bf16.msra.mxu0 %v1755
        %1825 = vmatmul.bf16.gmra.mxu0 %v1640
        %v1826 = vpop.f32.mrf.mxu0
        %v1827 = vadd.f32 %v1813, %v1826
        %v1828 = vpop.f32.mrf.mxu0
        %v1829 = vadd.f32 %v1815, %v1828
        %1830 = vdwg.mxu0
        %1831 = vmatpush.bf16.msra.mxu0 %v1754
        %1832 = vmatpush.bf16.msra.mxu0 %v1752
        %1833 = vmatpush.bf16.msra.mxu0 %v1750
        %1834 = vmatpush.bf16.msra.mxu0 %v1748
        %1835 = vmatpush.bf16.msra.mxu0 %v1746
        %1836 = vmatpush.bf16.msra.mxu0 %v1744
        %1837 = vmatpush.bf16.msra.mxu0 %v1742
        %1838 = vmatpush.bf16.msra.mxu0 %v1740
        %1839 = vmatmul.bf16.gmra.mxu0 %v1639
        %v1840 = vpop.f32.mrf.mxu0
        %v1841 = vadd.f32 %v608, %v1840
        %v1842 = vpop.f32.mrf.mxu0
        %v1843 = vadd.f32 %v610, %v1842
        %1844 = vdwg.mxu0
        %1845 = vmatpush.bf16.msra.mxu0 %v1770
        %1846 = vmatpush.bf16.msra.mxu0 %v1768
        %1847 = vmatpush.bf16.msra.mxu0 %v1766
        %1848 = vmatpush.bf16.msra.mxu0 %v1764
        %1849 = vmatpush.bf16.msra.mxu0 %v1762
        %1850 = vmatpush.bf16.msra.mxu0 %v1760
        %1851 = vmatpush.bf16.msra.mxu0 %v1758
        %1852 = vmatpush.bf16.msra.mxu0 %v1756
        %1853 = vmatmul.bf16.gmra.mxu0 %v1640
        %v1854 = vpop.f32.mrf.mxu0
        %v1855 = vadd.f32 %v1841, %v1854
        %v1856 = vpop.f32.mrf.mxu0
        %v1857 = vadd.f32 %v1843, %v1856
        %1858 = vdwg.mxu0
        %v1859 = vld [vmem:[%s564] sm:$0x3]
        %v1860 = vmul.f32 %v1827, %v1827
        %v1861 = vmul.f32 %v1855, %v1855
        %v1862 = vmul.f32 %v1829, %v1829
        %v1863 = vmul.f32 %v1857, %v1857
        %v1864 = vadd.f32 %v1860, %v1861
        %1865 = vadd.xlane.f32.xlu0 %v1864
        %v1866 = vpop.xlane.xlu0 %1865
        %v1867 = vadd.f32 %v1862, %v1863
        %1868 = vadd.xlane.f32.xlu0 %v1867
        %v1869 = vpop.xlane.xlu0 %1868
        %v1870 = vmul.f32 %v1866, %v628
        %v1871 = vmul.f32 %v1869, %v628
        %v1872 = vadd.f32 %v1870, 1e-06
        %v1873 = vadd.f32 %v1871, 1e-06
        %v1874 = vrsqrt.pop %v1872
        %v1875 = vmul.f32 %v1874, %v1872
        %v1876 = vmul.f32 %v1875, %v1874
        %v1877 = vmul.f32 0.5, %v1876
        %v1878 = vsub.f32 1.5, %v1877
        %v1879 = vmul.f32 %v1874, %v1878
        %vm1880 = vweird.f32 %v1872
        %vm1881 = vweird.f32 %v1874
        %vm1882 = vmor %vm1880, %vm1881
        %v1883 = vsel %vm1882, %v1874, %v1879
        %v1884 = vrsqrt.pop %v1873
        %v1885 = vmul.f32 %v1884, %v1873
        %v1886 = vmul.f32 %v1885, %v1884
        %v1887 = vmul.f32 0.5, %v1886
        %v1888 = vsub.f32 1.5, %v1887
        %v1889 = vmul.f32 %v1884, %v1888
        %vm1890 = vweird.f32 %v1873
        %vm1891 = vweird.f32 %v1884
        %vm1892 = vmor %vm1890, %vm1891
        %v1893 = vsel %vm1892, %v1884, %v1889
        %v1894 = vmul.f32 %v1827, %v1883
        %v1895 = vmul.f32 %v1855, %v1883
        %v1896 = vmul.f32 %v1829, %v1893
        %v1897 = vmul.f32 %v1857, %v1893
        %v1899 = vperm.slane %v1859, 0
        %v1900 = vperm.slane %v1859, 1
        %v1903 = vmul.f32 %v1894, %v1899
        %v1904 = vmul.f32 %v1895, %v1900
        %v1905 = vmul.f32 %v1896, %v1899
        %v1906 = vmul.f32 %v1897, %v1900
        %v1907 = vpack.c.bf16 %v1905, %v1903
        %v1908 = vpack.c.bf16 %v1906, %v1904
        %v1909 = vld [vmem:[%s485] sm:$0xff]
        %v1910 = vld [vmem:[%s485 + $0x8] sm:$0xff]
        %v1911 = vld [vmem:[%s485 + $0x10] sm:$0xff]
        %v1912 = vld [vmem:[%s485 + $0x18] sm:$0xff]
        %v1913 = vld [vmem:[%s485 + $0x20] sm:$0xff]
        %v1914 = vld [vmem:[%s485 + $0x28] sm:$0xff]
        %v1915 = vld [vmem:[%s485 + $0x30] sm:$0xff]
        %v1916 = vld [vmem:[%s485 + $0x38] sm:$0xff]
        %v1917 = vld [vmem:[%s485 + $0x40] sm:$0xff]
        %v1918 = vld [vmem:[%s485 + $0x48] sm:$0xff]
        %v1919 = vld [vmem:[%s485 + $0x50] sm:$0xff]
        %v1920 = vld [vmem:[%s485 + $0x58] sm:$0xff]
        %v1921 = vld [vmem:[%s485 + $0x60] sm:$0xff]
        %v1922 = vld [vmem:[%s485 + $0x68] sm:$0xff]
        %v1923 = vld [vmem:[%s485 + $0x70] sm:$0xff]
        %v1924 = vld [vmem:[%s485 + $0x78] sm:$0xff]
        %v1925 = vld [vmem:[%s485 + $0x80] sm:$0xff]
        %v1926 = vld [vmem:[%s485 + $0x88] sm:$0xff]
        %v1927 = vld [vmem:[%s485 + $0x90] sm:$0xff]
        %v1928 = vld [vmem:[%s485 + $0x98] sm:$0xff]
        %v1929 = vld [vmem:[%s485 + $0xa0] sm:$0xff]
        %v1930 = vld [vmem:[%s485 + $0xa8] sm:$0xff]
        %v1931 = vld [vmem:[%s485 + $0xb0] sm:$0xff]
        %v1932 = vld [vmem:[%s485 + $0xb8] sm:$0xff]
        %v1933 = vld [vmem:[%s485 + $0xc0] sm:$0xff]
        %v1934 = vld [vmem:[%s485 + $0xc8] sm:$0xff]
        %v1935 = vld [vmem:[%s485 + $0xd0] sm:$0xff]
        %v1936 = vld [vmem:[%s485 + $0xd8] sm:$0xff]
        %v1937 = vld [vmem:[%s485 + $0xe0] sm:$0xff]
        %v1938 = vld [vmem:[%s485 + $0xe8] sm:$0xff]
        %v1939 = vld [vmem:[%s485 + $0xf0] sm:$0xff]
        %v1940 = vld [vmem:[%s485 + $0xf8] sm:$0xff]
        %v1941 = vld [vmem:[%s485 + $0x100] sm:$0xff]
        %v1942 = vld [vmem:[%s485 + $0x108] sm:$0xff]
        %v1943 = vld [vmem:[%s485 + $0x110] sm:$0xff]
        %v1944 = vld [vmem:[%s485 + $0x118] sm:$0xff]
        %v1945 = vld [vmem:[%s485 + $0x120] sm:$0xff]
        %v1946 = vld [vmem:[%s485 + $0x128] sm:$0xff]
        %v1947 = vld [vmem:[%s485 + $0x130] sm:$0xff]
        %v1948 = vld [vmem:[%s485 + $0x138] sm:$0xff]
        %v1949 = vld [vmem:[%s485 + $0x140] sm:$0xff]
        %v1950 = vld [vmem:[%s485 + $0x148] sm:$0xff]
        %v1951 = vld [vmem:[%s485 + $0x150] sm:$0xff]
        %v1952 = vld [vmem:[%s485 + $0x158] sm:$0xff]
        %v1953 = vld [vmem:[%s485 + $0x160] sm:$0xff]
        %v1954 = vld [vmem:[%s485 + $0x168] sm:$0xff]
        %v1955 = vld [vmem:[%s485 + $0x170] sm:$0xff]
        %v1956 = vld [vmem:[%s485 + $0x178] sm:$0xff]
        %v1957 = vld [vmem:[%s485 + $0x180] sm:$0xff]
        %v1958 = vld [vmem:[%s485 + $0x188] sm:$0xff]
        %v1959 = vld [vmem:[%s485 + $0x190] sm:$0xff]
        %v1960 = vld [vmem:[%s485 + $0x198] sm:$0xff]
        %v1961 = vld [vmem:[%s485 + $0x1a0] sm:$0xff]
        %v1962 = vld [vmem:[%s485 + $0x1a8] sm:$0xff]
        %v1963 = vld [vmem:[%s485 + $0x1b0] sm:$0xff]
        %v1964 = vld [vmem:[%s485 + $0x1b8] sm:$0xff]
        %v1965 = vld [vmem:[%s485 + $0x1c0] sm:$0xff]
        %v1966 = vld [vmem:[%s485 + $0x1c8] sm:$0xff]
        %v1967 = vld [vmem:[%s485 + $0x1d0] sm:$0xff]
        %v1968 = vld [vmem:[%s485 + $0x1d8] sm:$0xff]
        %v1969 = vld [vmem:[%s485 + $0x1e0] sm:$0xff]
        %v1970 = vld [vmem:[%s485 + $0x1e8] sm:$0xff]
        %v1971 = vld [vmem:[%s485 + $0x1f0] sm:$0xff]
        %v1972 = vld [vmem:[%s485 + $0x1f8] sm:$0xff]
        %v1973 = vld [vmem:[%s485 + $0x200] sm:$0xff]
        %v1974 = vld [vmem:[%s485 + $0x208] sm:$0xff]
        %v1975 = vld [vmem:[%s485 + $0x210] sm:$0xff]
        %v1976 = vld [vmem:[%s485 + $0x218] sm:$0xff]
        %v1977 = vld [vmem:[%s485 + $0x220] sm:$0xff]
        %v1978 = vld [vmem:[%s485 + $0x228] sm:$0xff]
        %v1979 = vld [vmem:[%s485 + $0x230] sm:$0xff]
        %v1980 = vld [vmem:[%s485 + $0x238] sm:$0xff]
        %v1981 = vld [vmem:[%s485 + $0x240] sm:$0xff]
        %v1982 = vld [vmem:[%s485 + $0x248] sm:$0xff]
        %v1983 = vld [vmem:[%s485 + $0x250] sm:$0xff]
        %v1984 = vld [vmem:[%s485 + $0x258] sm:$0xff]
        %v1985 = vld [vmem:[%s485 + $0x260] sm:$0xff]
        %v1986 = vld [vmem:[%s485 + $0x268] sm:$0xff]
        %v1987 = vld [vmem:[%s485 + $0x270] sm:$0xff]
        %v1988 = vld [vmem:[%s485 + $0x278] sm:$0xff]
        %v1989 = vld [vmem:[%s485 + $0x280] sm:$0xff]
        %v1990 = vld [vmem:[%s485 + $0x288] sm:$0xff]
        %v1991 = vld [vmem:[%s485 + $0x290] sm:$0xff]
        %v1992 = vld [vmem:[%s485 + $0x298] sm:$0xff]
        %v1993 = vld [vmem:[%s485 + $0x2a0] sm:$0xff]
        %v1994 = vld [vmem:[%s485 + $0x2a8] sm:$0xff]
        %v1995 = vld [vmem:[%s485 + $0x2b0] sm:$0xff]
        %v1996 = vld [vmem:[%s485 + $0x2b8] sm:$0xff]
        %v1997 = vld [vmem:[%s485 + $0x2c0] sm:$0xff]
        %v1998 = vld [vmem:[%s485 + $0x2c8] sm:$0xff]
        %v1999 = vld [vmem:[%s485 + $0x2d0] sm:$0xff]
        %v2000 = vld [vmem:[%s485 + $0x2d8] sm:$0xff]
        %v2001 = vld [vmem:[%s485 + $0x2e0] sm:$0xff]
        %v2002 = vld [vmem:[%s485 + $0x2e8] sm:$0xff]
        %v2003 = vld [vmem:[%s485 + $0x2f0] sm:$0xff]
        %v2004 = vld [vmem:[%s485 + $0x2f8] sm:$0xff]
        %v2005 = vld [vmem:[%s485 + $0x300] sm:$0xff]
        %v2006 = vld [vmem:[%s485 + $0x308] sm:$0xff]
        %v2007 = vld [vmem:[%s485 + $0x310] sm:$0xff]
        %v2008 = vld [vmem:[%s485 + $0x318] sm:$0xff]
        %v2009 = vld [vmem:[%s485 + $0x320] sm:$0xff]
        %v2010 = vld [vmem:[%s485 + $0x328] sm:$0xff]
        %v2011 = vld [vmem:[%s485 + $0x330] sm:$0xff]
        %v2012 = vld [vmem:[%s485 + $0x338] sm:$0xff]
        %v2013 = vld [vmem:[%s485 + $0x340] sm:$0xff]
        %v2014 = vld [vmem:[%s485 + $0x348] sm:$0xff]
        %v2015 = vld [vmem:[%s485 + $0x350] sm:$0xff]
        %v2016 = vld [vmem:[%s485 + $0x358] sm:$0xff]
        %v2017 = vld [vmem:[%s485 + $0x360] sm:$0xff]
        %v2018 = vld [vmem:[%s485 + $0x368] sm:$0xff]
        %v2019 = vld [vmem:[%s485 + $0x370] sm:$0xff]
        %v2020 = vld [vmem:[%s485 + $0x378] sm:$0xff]
        %v2021 = vld [vmem:[%s485 + $0x380] sm:$0xff]
        %v2022 = vld [vmem:[%s485 + $0x388] sm:$0xff]
        %v2023 = vld [vmem:[%s485 + $0x390] sm:$0xff]
        %v2024 = vld [vmem:[%s485 + $0x398] sm:$0xff]
        %v2025 = vld [vmem:[%s485 + $0x3a0] sm:$0xff]
        %v2026 = vld [vmem:[%s485 + $0x3a8] sm:$0xff]
        %v2027 = vld [vmem:[%s485 + $0x3b0] sm:$0xff]
        %v2028 = vld [vmem:[%s485 + $0x3b8] sm:$0xff]
        %v2029 = vld [vmem:[%s485 + $0x3c0] sm:$0xff]
        %v2030 = vld [vmem:[%s485 + $0x3c8] sm:$0xff]
        %v2031 = vld [vmem:[%s485 + $0x3d0] sm:$0xff]
        %v2032 = vld [vmem:[%s485 + $0x3d8] sm:$0xff]
        %v2033 = vld [vmem:[%s485 + $0x3e0] sm:$0xff]
        %v2034 = vld [vmem:[%s485 + $0x3e8] sm:$0xff]
        %v2035 = vld [vmem:[%s485 + $0x3f0] sm:$0xff]
        %v2036 = vld [vmem:[%s485 + $0x3f8] sm:$0xff]
        %v2165 = vunpack.c.l.b16 %v1909
        %v2166 = vunpack.c.h.b16 %v1909
        %v2167 = vunpack.c.l.b16 %v1910
        %v2168 = vunpack.c.h.b16 %v1910
        %v2169 = vunpack.c.l.b16 %v1911
        %v2170 = vunpack.c.h.b16 %v1911
        %v2171 = vunpack.c.l.b16 %v1912
        %v2172 = vunpack.c.h.b16 %v1912
        %v2173 = vunpack.c.l.b16 %v1913
        %v2174 = vunpack.c.h.b16 %v1913
        %v2175 = vunpack.c.l.b16 %v1914
        %v2176 = vunpack.c.h.b16 %v1914
        %v2177 = vunpack.c.l.b16 %v1915
        %v2178 = vunpack.c.h.b16 %v1915
        %v2179 = vunpack.c.l.b16 %v1916
        %v2180 = vunpack.c.h.b16 %v1916
        %v2181 = vunpack.c.l.b16 %v1917
        %v2182 = vunpack.c.h.b16 %v1917
        %v2183 = vunpack.c.l.b16 %v1918
        %v2184 = vunpack.c.h.b16 %v1918
        %v2185 = vunpack.c.l.b16 %v1919
        %v2186 = vunpack.c.h.b16 %v1919
        %v2187 = vunpack.c.l.b16 %v1920
        %v2188 = vunpack.c.h.b16 %v1920
        %v2189 = vunpack.c.l.b16 %v1921
        %v2190 = vunpack.c.h.b16 %v1921
        %v2191 = vunpack.c.l.b16 %v1922
        %v2192 = vunpack.c.h.b16 %v1922
        %v2193 = vunpack.c.l.b16 %v1923
        %v2194 = vunpack.c.h.b16 %v1923
        %v2195 = vunpack.c.l.b16 %v1924
        %v2196 = vunpack.c.h.b16 %v1924
        %v2197 = vunpack.c.l.b16 %v1925
        %v2198 = vunpack.c.h.b16 %v1925
        %v2199 = vunpack.c.l.b16 %v1926
        %v2200 = vunpack.c.h.b16 %v1926
        %v2201 = vunpack.c.l.b16 %v1927
        %v2202 = vunpack.c.h.b16 %v1927
        %v2203 = vunpack.c.l.b16 %v1928
        %v2204 = vunpack.c.h.b16 %v1928
        %v2205 = vunpack.c.l.b16 %v1929
        %v2206 = vunpack.c.h.b16 %v1929
        %v2207 = vunpack.c.l.b16 %v1930
        %v2208 = vunpack.c.h.b16 %v1930
        %v2209 = vunpack.c.l.b16 %v1931
        %v2210 = vunpack.c.h.b16 %v1931
        %v2211 = vunpack.c.l.b16 %v1932
        %v2212 = vunpack.c.h.b16 %v1932
        %v2213 = vunpack.c.l.b16 %v1933
        %v2214 = vunpack.c.h.b16 %v1933
        %v2215 = vunpack.c.l.b16 %v1934
        %v2216 = vunpack.c.h.b16 %v1934
        %v2217 = vunpack.c.l.b16 %v1935
        %v2218 = vunpack.c.h.b16 %v1935
        %v2219 = vunpack.c.l.b16 %v1936
        %v2220 = vunpack.c.h.b16 %v1936
        %v2221 = vunpack.c.l.b16 %v1937
        %v2222 = vunpack.c.h.b16 %v1937
        %v2223 = vunpack.c.l.b16 %v1938
        %v2224 = vunpack.c.h.b16 %v1938
        %v2225 = vunpack.c.l.b16 %v1939
        %v2226 = vunpack.c.h.b16 %v1939
        %v2227 = vunpack.c.l.b16 %v1940
        %v2228 = vunpack.c.h.b16 %v1940
        %v2229 = vunpack.c.l.b16 %v1941
        %v2230 = vunpack.c.h.b16 %v1941
        %v2231 = vunpack.c.l.b16 %v1942
        %v2232 = vunpack.c.h.b16 %v1942
        %v2233 = vunpack.c.l.b16 %v1943
        %v2234 = vunpack.c.h.b16 %v1943
        %v2235 = vunpack.c.l.b16 %v1944
        %v2236 = vunpack.c.h.b16 %v1944
        %v2237 = vunpack.c.l.b16 %v1945
        %v2238 = vunpack.c.h.b16 %v1945
        %v2239 = vunpack.c.l.b16 %v1946
        %v2240 = vunpack.c.h.b16 %v1946
        %v2241 = vunpack.c.l.b16 %v1947
        %v2242 = vunpack.c.h.b16 %v1947
        %v2243 = vunpack.c.l.b16 %v1948
        %v2244 = vunpack.c.h.b16 %v1948
        %v2245 = vunpack.c.l.b16 %v1949
        %v2246 = vunpack.c.h.b16 %v1949
        %v2247 = vunpack.c.l.b16 %v1950
        %v2248 = vunpack.c.h.b16 %v1950
        %v2249 = vunpack.c.l.b16 %v1951
        %v2250 = vunpack.c.h.b16 %v1951
        %v2251 = vunpack.c.l.b16 %v1952
        %v2252 = vunpack.c.h.b16 %v1952
        %v2253 = vunpack.c.l.b16 %v1953
        %v2254 = vunpack.c.h.b16 %v1953
        %v2255 = vunpack.c.l.b16 %v1954
        %v2256 = vunpack.c.h.b16 %v1954
        %v2257 = vunpack.c.l.b16 %v1955
        %v2258 = vunpack.c.h.b16 %v1955
        %v2259 = vunpack.c.l.b16 %v1956
        %v2260 = vunpack.c.h.b16 %v1956
        %v2261 = vunpack.c.l.b16 %v1957
        %v2262 = vunpack.c.h.b16 %v1957
        %v2263 = vunpack.c.l.b16 %v1958
        %v2264 = vunpack.c.h.b16 %v1958
        %v2265 = vunpack.c.l.b16 %v1959
        %v2266 = vunpack.c.h.b16 %v1959
        %v2267 = vunpack.c.l.b16 %v1960
        %v2268 = vunpack.c.h.b16 %v1960
        %v2269 = vunpack.c.l.b16 %v1961
        %v2270 = vunpack.c.h.b16 %v1961
        %v2271 = vunpack.c.l.b16 %v1962
        %v2272 = vunpack.c.h.b16 %v1962
        %v2273 = vunpack.c.l.b16 %v1963
        %v2274 = vunpack.c.h.b16 %v1963
        %v2275 = vunpack.c.l.b16 %v1964
        %v2276 = vunpack.c.h.b16 %v1964
        %v2277 = vunpack.c.l.b16 %v1965
        %v2278 = vunpack.c.h.b16 %v1965
        %v2279 = vunpack.c.l.b16 %v1966
        %v2280 = vunpack.c.h.b16 %v1966
        %v2281 = vunpack.c.l.b16 %v1967
        %v2282 = vunpack.c.h.b16 %v1967
        %v2283 = vunpack.c.l.b16 %v1968
        %v2284 = vunpack.c.h.b16 %v1968
        %v2285 = vunpack.c.l.b16 %v1969
        %v2286 = vunpack.c.h.b16 %v1969
        %v2287 = vunpack.c.l.b16 %v1970
        %v2288 = vunpack.c.h.b16 %v1970
        %v2289 = vunpack.c.l.b16 %v1971
        %v2290 = vunpack.c.h.b16 %v1971
        %v2291 = vunpack.c.l.b16 %v1972
        %v2292 = vunpack.c.h.b16 %v1972
        %v2293 = vunpack.c.l.b16 %v1973
        %v2294 = vunpack.c.h.b16 %v1973
        %v2295 = vunpack.c.l.b16 %v1974
        %v2296 = vunpack.c.h.b16 %v1974
        %v2297 = vunpack.c.l.b16 %v1975
        %v2298 = vunpack.c.h.b16 %v1975
        %v2299 = vunpack.c.l.b16 %v1976
        %v2300 = vunpack.c.h.b16 %v1976
        %v2301 = vunpack.c.l.b16 %v1977
        %v2302 = vunpack.c.h.b16 %v1977
        %v2303 = vunpack.c.l.b16 %v1978
        %v2304 = vunpack.c.h.b16 %v1978
        %v2305 = vunpack.c.l.b16 %v1979
        %v2306 = vunpack.c.h.b16 %v1979
        %v2307 = vunpack.c.l.b16 %v1980
        %v2308 = vunpack.c.h.b16 %v1980
        %v2309 = vunpack.c.l.b16 %v1981
        %v2310 = vunpack.c.h.b16 %v1981
        %v2311 = vunpack.c.l.b16 %v1982
        %v2312 = vunpack.c.h.b16 %v1982
        %v2313 = vunpack.c.l.b16 %v1983
        %v2314 = vunpack.c.h.b16 %v1983
        %v2315 = vunpack.c.l.b16 %v1984
        %v2316 = vunpack.c.h.b16 %v1984
        %v2317 = vunpack.c.l.b16 %v1985
        %v2318 = vunpack.c.h.b16 %v1985
        %v2319 = vunpack.c.l.b16 %v1986
        %v2320 = vunpack.c.h.b16 %v1986
        %v2321 = vunpack.c.l.b16 %v1987
        %v2322 = vunpack.c.h.b16 %v1987
        %v2323 = vunpack.c.l.b16 %v1988
        %v2324 = vunpack.c.h.b16 %v1988
        %v2325 = vunpack.c.l.b16 %v1989
        %v2326 = vunpack.c.h.b16 %v1989
        %v2327 = vunpack.c.l.b16 %v1990
        %v2328 = vunpack.c.h.b16 %v1990
        %v2329 = vunpack.c.l.b16 %v1991
        %v2330 = vunpack.c.h.b16 %v1991
        %v2331 = vunpack.c.l.b16 %v1992
        %v2332 = vunpack.c.h.b16 %v1992
        %v2333 = vunpack.c.l.b16 %v1993
        %v2334 = vunpack.c.h.b16 %v1993
        %v2335 = vunpack.c.l.b16 %v1994
        %v2336 = vunpack.c.h.b16 %v1994
        %v2337 = vunpack.c.l.b16 %v1995
        %v2338 = vunpack.c.h.b16 %v1995
        %v2339 = vunpack.c.l.b16 %v1996
        %v2340 = vunpack.c.h.b16 %v1996
        %v2341 = vunpack.c.l.b16 %v1997
        %v2342 = vunpack.c.h.b16 %v1997
        %v2343 = vunpack.c.l.b16 %v1998
        %v2344 = vunpack.c.h.b16 %v1998
        %v2345 = vunpack.c.l.b16 %v1999
        %v2346 = vunpack.c.h.b16 %v1999
        %v2347 = vunpack.c.l.b16 %v2000
        %v2348 = vunpack.c.h.b16 %v2000
        %v2349 = vunpack.c.l.b16 %v2001
        %v2350 = vunpack.c.h.b16 %v2001
        %v2351 = vunpack.c.l.b16 %v2002
        %v2352 = vunpack.c.h.b16 %v2002
        %v2353 = vunpack.c.l.b16 %v2003
        %v2354 = vunpack.c.h.b16 %v2003
        %v2355 = vunpack.c.l.b16 %v2004
        %v2356 = vunpack.c.h.b16 %v2004
        %v2357 = vunpack.c.l.b16 %v2005
        %v2358 = vunpack.c.h.b16 %v2005
        %v2359 = vunpack.c.l.b16 %v2006
        %v2360 = vunpack.c.h.b16 %v2006
        %v2361 = vunpack.c.l.b16 %v2007
        %v2362 = vunpack.c.h.b16 %v2007
        %v2363 = vunpack.c.l.b16 %v2008
        %v2364 = vunpack.c.h.b16 %v2008
        %v2365 = vunpack.c.l.b16 %v2009
        %v2366 = vunpack.c.h.b16 %v2009
        %v2367 = vunpack.c.l.b16 %v2010
        %v2368 = vunpack.c.h.b16 %v2010
        %v2369 = vunpack.c.l.b16 %v2011
        %v2370 = vunpack.c.h.b16 %v2011
        %v2371 = vunpack.c.l.b16 %v2012
        %v2372 = vunpack.c.h.b16 %v2012
        %v2373 = vunpack.c.l.b16 %v2013
        %v2374 = vunpack.c.h.b16 %v2013
        %v2375 = vunpack.c.l.b16 %v2014
        %v2376 = vunpack.c.h.b16 %v2014
        %v2377 = vunpack.c.l.b16 %v2015
        %v2378 = vunpack.c.h.b16 %v2015
        %v2379 = vunpack.c.l.b16 %v2016
        %v2380 = vunpack.c.h.b16 %v2016
        %v2381 = vunpack.c.l.b16 %v2017
        %v2382 = vunpack.c.h.b16 %v2017
        %v2383 = vunpack.c.l.b16 %v2018
        %v2384 = vunpack.c.h.b16 %v2018
        %v2385 = vunpack.c.l.b16 %v2019
        %v2386 = vunpack.c.h.b16 %v2019
        %v2387 = vunpack.c.l.b16 %v2020
        %v2388 = vunpack.c.h.b16 %v2020
        %v2389 = vunpack.c.l.b16 %v2021
        %v2390 = vunpack.c.h.b16 %v2021
        %v2391 = vunpack.c.l.b16 %v2022
        %v2392 = vunpack.c.h.b16 %v2022
        %v2393 = vunpack.c.l.b16 %v2023
        %v2394 = vunpack.c.h.b16 %v2023
        %v2395 = vunpack.c.l.b16 %v2024
        %v2396 = vunpack.c.h.b16 %v2024
        %v2397 = vunpack.c.l.b16 %v2025
        %v2398 = vunpack.c.h.b16 %v2025
        %v2399 = vunpack.c.l.b16 %v2026
        %v2400 = vunpack.c.h.b16 %v2026
        %v2401 = vunpack.c.l.b16 %v2027
        %v2402 = vunpack.c.h.b16 %v2027
        %v2403 = vunpack.c.l.b16 %v2028
        %v2404 = vunpack.c.h.b16 %v2028
        %v2405 = vunpack.c.l.b16 %v2029
        %v2406 = vunpack.c.h.b16 %v2029
        %v2407 = vunpack.c.l.b16 %v2030
        %v2408 = vunpack.c.h.b16 %v2030
        %v2409 = vunpack.c.l.b16 %v2031
        %v2410 = vunpack.c.h.b16 %v2031
        %v2411 = vunpack.c.l.b16 %v2032
        %v2412 = vunpack.c.h.b16 %v2032
        %v2413 = vunpack.c.l.b16 %v2033
        %v2414 = vunpack.c.h.b16 %v2033
        %v2415 = vunpack.c.l.b16 %v2034
        %v2416 = vunpack.c.h.b16 %v2034
        %v2417 = vunpack.c.l.b16 %v2035
        %v2418 = vunpack.c.h.b16 %v2035
        %v2419 = vunpack.c.l.b16 %v2036
        %v2420 = vunpack.c.h.b16 %v2036
        %v2421 = vpack.c.b16 %v2173, %v2165
        %v2422 = vpack.c.b16 %v2174, %v2166
        %v2423 = vpack.c.b16 %v2175, %v2167
        %v2424 = vpack.c.b16 %v2176, %v2168
        %v2425 = vpack.c.b16 %v2177, %v2169
        %v2426 = vpack.c.b16 %v2178, %v2170
        %v2427 = vpack.c.b16 %v2179, %v2171
        %v2428 = vpack.c.b16 %v2180, %v2172
        %v2429 = vpack.c.b16 %v2189, %v2181
        %v2430 = vpack.c.b16 %v2190, %v2182
        %v2431 = vpack.c.b16 %v2191, %v2183
        %v2432 = vpack.c.b16 %v2192, %v2184
        %v2433 = vpack.c.b16 %v2193, %v2185
        %v2434 = vpack.c.b16 %v2194, %v2186
        %v2435 = vpack.c.b16 %v2195, %v2187
        %v2436 = vpack.c.b16 %v2196, %v2188
        %v2437 = vpack.c.b16 %v2205, %v2197
        %v2438 = vpack.c.b16 %v2206, %v2198
        %v2439 = vpack.c.b16 %v2207, %v2199
        %v2440 = vpack.c.b16 %v2208, %v2200
        %v2441 = vpack.c.b16 %v2209, %v2201
        %v2442 = vpack.c.b16 %v2210, %v2202
        %v2443 = vpack.c.b16 %v2211, %v2203
        %v2444 = vpack.c.b16 %v2212, %v2204
        %v2445 = vpack.c.b16 %v2221, %v2213
        %v2446 = vpack.c.b16 %v2222, %v2214
        %v2447 = vpack.c.b16 %v2223, %v2215
        %v2448 = vpack.c.b16 %v2224, %v2216
        %v2449 = vpack.c.b16 %v2225, %v2217
        %v2450 = vpack.c.b16 %v2226, %v2218
        %v2451 = vpack.c.b16 %v2227, %v2219
        %v2452 = vpack.c.b16 %v2228, %v2220
        %v2453 = vpack.c.b16 %v2237, %v2229
        %v2454 = vpack.c.b16 %v2238, %v2230
        %v2455 = vpack.c.b16 %v2239, %v2231
        %v2456 = vpack.c.b16 %v2240, %v2232
        %v2457 = vpack.c.b16 %v2241, %v2233
        %v2458 = vpack.c.b16 %v2242, %v2234
        %v2459 = vpack.c.b16 %v2243, %v2235
        %v2460 = vpack.c.b16 %v2244, %v2236
        %v2461 = vpack.c.b16 %v2253, %v2245
        %v2462 = vpack.c.b16 %v2254, %v2246
        %v2463 = vpack.c.b16 %v2255, %v2247
        %v2464 = vpack.c.b16 %v2256, %v2248
        %v2465 = vpack.c.b16 %v2257, %v2249
        %v2466 = vpack.c.b16 %v2258, %v2250
        %v2467 = vpack.c.b16 %v2259, %v2251
        %v2468 = vpack.c.b16 %v2260, %v2252
        %v2469 = vpack.c.b16 %v2269, %v2261
        %v2470 = vpack.c.b16 %v2270, %v2262
        %v2471 = vpack.c.b16 %v2271, %v2263
        %v2472 = vpack.c.b16 %v2272, %v2264
        %v2473 = vpack.c.b16 %v2273, %v2265
        %v2474 = vpack.c.b16 %v2274, %v2266
        %v2475 = vpack.c.b16 %v2275, %v2267
        %v2476 = vpack.c.b16 %v2276, %v2268
        %v2477 = vpack.c.b16 %v2285, %v2277
        %v2478 = vpack.c.b16 %v2286, %v2278
        %v2479 = vpack.c.b16 %v2287, %v2279
        %v2480 = vpack.c.b16 %v2288, %v2280
        %v2481 = vpack.c.b16 %v2289, %v2281
        %v2482 = vpack.c.b16 %v2290, %v2282
        %v2483 = vpack.c.b16 %v2291, %v2283
        %v2484 = vpack.c.b16 %v2292, %v2284
        %v2485 = vpack.c.b16 %v2301, %v2293
        %v2486 = vpack.c.b16 %v2302, %v2294
        %v2487 = vpack.c.b16 %v2303, %v2295
        %v2488 = vpack.c.b16 %v2304, %v2296
        %v2489 = vpack.c.b16 %v2305, %v2297
        %v2490 = vpack.c.b16 %v2306, %v2298
        %v2491 = vpack.c.b16 %v2307, %v2299
        %v2492 = vpack.c.b16 %v2308, %v2300
        %v2493 = vpack.c.b16 %v2317, %v2309
        %v2494 = vpack.c.b16 %v2318, %v2310
        %v2495 = vpack.c.b16 %v2319, %v2311
        %v2496 = vpack.c.b16 %v2320, %v2312
        %v2497 = vpack.c.b16 %v2321, %v2313
        %v2498 = vpack.c.b16 %v2322, %v2314
        %v2499 = vpack.c.b16 %v2323, %v2315
        %v2500 = vpack.c.b16 %v2324, %v2316
        %v2501 = vpack.c.b16 %v2333, %v2325
        %v2502 = vpack.c.b16 %v2334, %v2326
        %v2503 = vpack.c.b16 %v2335, %v2327
        %v2504 = vpack.c.b16 %v2336, %v2328
        %v2505 = vpack.c.b16 %v2337, %v2329
        %v2506 = vpack.c.b16 %v2338, %v2330
        %v2507 = vpack.c.b16 %v2339, %v2331
        %v2508 = vpack.c.b16 %v2340, %v2332
        %v2509 = vpack.c.b16 %v2349, %v2341
        %v2510 = vpack.c.b16 %v2350, %v2342
        %v2511 = vpack.c.b16 %v2351, %v2343
        %v2512 = vpack.c.b16 %v2352, %v2344
        %v2513 = vpack.c.b16 %v2353, %v2345
        %v2514 = vpack.c.b16 %v2354, %v2346
        %v2515 = vpack.c.b16 %v2355, %v2347
        %v2516 = vpack.c.b16 %v2356, %v2348
        %v2517 = vpack.c.b16 %v2365, %v2357
        %v2518 = vpack.c.b16 %v2366, %v2358
        %v2519 = vpack.c.b16 %v2367, %v2359
        %v2520 = vpack.c.b16 %v2368, %v2360
        %v2521 = vpack.c.b16 %v2369, %v2361
        %v2522 = vpack.c.b16 %v2370, %v2362
        %v2523 = vpack.c.b16 %v2371, %v2363
        %v2524 = vpack.c.b16 %v2372, %v2364
        %v2525 = vpack.c.b16 %v2381, %v2373
        %v2526 = vpack.c.b16 %v2382, %v2374
        %v2527 = vpack.c.b16 %v2383, %v2375
        %v2528 = vpack.c.b16 %v2384, %v2376
        %v2529 = vpack.c.b16 %v2385, %v2377
        %v2530 = vpack.c.b16 %v2386, %v2378
        %v2531 = vpack.c.b16 %v2387, %v2379
        %v2532 = vpack.c.b16 %v2388, %v2380
        %v2533 = vpack.c.b16 %v2397, %v2389
        %v2534 = vpack.c.b16 %v2398, %v2390
        %v2535 = vpack.c.b16 %v2399, %v2391
        %v2536 = vpack.c.b16 %v2400, %v2392
        %v2537 = vpack.c.b16 %v2401, %v2393
        %v2538 = vpack.c.b16 %v2402, %v2394
        %v2539 = vpack.c.b16 %v2403, %v2395
        %v2540 = vpack.c.b16 %v2404, %v2396
        %v2541 = vpack.c.b16 %v2413, %v2405
        %v2542 = vpack.c.b16 %v2414, %v2406
        %v2543 = vpack.c.b16 %v2415, %v2407
        %v2544 = vpack.c.b16 %v2416, %v2408
        %v2545 = vpack.c.b16 %v2417, %v2409
        %v2546 = vpack.c.b16 %v2418, %v2410
        %v2547 = vpack.c.b16 %v2419, %v2411
        %v2548 = vpack.c.b16 %v2420, %v2412
        %2677 = vmatpush.bf16.msra.mxu0 %v2477
        %2678 = vmatpush.bf16.msra.mxu0 %v2469
        %2679 = vmatpush.bf16.msra.mxu0 %v2461
        %2680 = vmatpush.bf16.msra.mxu0 %v2453
        %2681 = vmatpush.bf16.msra.mxu0 %v2445
        %2682 = vmatpush.bf16.msra.mxu0 %v2437
        %2683 = vmatpush.bf16.msra.mxu0 %v2429
        %2684 = vmatpush.bf16.msra.mxu0 %v2421
        %2685 = vmatmul.bf16.gmra.mxu0 %v1907
        %v2686 = vpop.f32.mrf.mxu0
        %v2687 = vadd.f32 0.0, %v2686
        %v2688 = vpop.f32.mrf.mxu0
        %v2689 = vadd.f32 0.0, %v2688
        %2690 = vdwg.mxu0
        %2691 = vmatpush.bf16.msra.mxu0 %v2541
        %2692 = vmatpush.bf16.msra.mxu0 %v2533
        %2693 = vmatpush.bf16.msra.mxu0 %v2525
        %2694 = vmatpush.bf16.msra.mxu0 %v2517
        %2695 = vmatpush.bf16.msra.mxu0 %v2509
        %2696 = vmatpush.bf16.msra.mxu0 %v2501
        %2697 = vmatpush.bf16.msra.mxu0 %v2493
        %2698 = vmatpush.bf16.msra.mxu0 %v2485
        %2699 = vmatmul.bf16.gmra.mxu0 %v1908
        %v2700 = vpop.f32.mrf.mxu0
        %v2701 = vadd.f32 %v2687, %v2700
        %v2702 = vpop.f32.mrf.mxu0
        %v2703 = vadd.f32 %v2689, %v2702
        %2704 = vdwg.mxu0
        %2705 = vmatpush.bf16.msra.mxu0 %v2478
        %2706 = vmatpush.bf16.msra.mxu0 %v2470
        %2707 = vmatpush.bf16.msra.mxu0 %v2462
        %2708 = vmatpush.bf16.msra.mxu0 %v2454
        %2709 = vmatpush.bf16.msra.mxu0 %v2446
        %2710 = vmatpush.bf16.msra.mxu0 %v2438
        %2711 = vmatpush.bf16.msra.mxu0 %v2430
        %2712 = vmatpush.bf16.msra.mxu0 %v2422
        %2713 = vmatmul.bf16.gmra.mxu0 %v1907
        %v2714 = vpop.f32.mrf.mxu0
        %v2715 = vadd.f32 0.0, %v2714
        %v2716 = vpop.f32.mrf.mxu0
        %v2717 = vadd.f32 0.0, %v2716
        %2718 = vdwg.mxu0
        %2719 = vmatpush.bf16.msra.mxu0 %v2542
        %2720 = vmatpush.bf16.msra.mxu0 %v2534
        %2721 = vmatpush.bf16.msra.mxu0 %v2526
        %2722 = vmatpush.bf16.msra.mxu0 %v2518
        %2723 = vmatpush.bf16.msra.mxu0 %v2510
        %2724 = vmatpush.bf16.msra.mxu0 %v2502
        %2725 = vmatpush.bf16.msra.mxu0 %v2494
        %2726 = vmatpush.bf16.msra.mxu0 %v2486
        %2727 = vmatmul.bf16.gmra.mxu0 %v1908
        %v2728 = vpop.f32.mrf.mxu0
        %v2729 = vadd.f32 %v2715, %v2728
        %v2730 = vpop.f32.mrf.mxu0
        %v2731 = vadd.f32 %v2717, %v2730
        %2732 = vdwg.mxu0
        %2733 = vmatpush.bf16.msra.mxu0 %v2479
        %2734 = vmatpush.bf16.msra.mxu0 %v2471
        %2735 = vmatpush.bf16.msra.mxu0 %v2463
        %2736 = vmatpush.bf16.msra.mxu0 %v2455
        %2737 = vmatpush.bf16.msra.mxu0 %v2447
        %2738 = vmatpush.bf16.msra.mxu0 %v2439
        %2739 = vmatpush.bf16.msra.mxu0 %v2431
        %2740 = vmatpush.bf16.msra.mxu0 %v2423
        %2741 = vmatmul.bf16.gmra.mxu0 %v1907
        %v2742 = vpop.f32.mrf.mxu0
        %v2743 = vadd.f32 0.0, %v2742
        %v2744 = vpop.f32.mrf.mxu0
        %v2745 = vadd.f32 0.0, %v2744
        %2746 = vdwg.mxu0
        %2747 = vmatpush.bf16.msra.mxu0 %v2543
        %2748 = vmatpush.bf16.msra.mxu0 %v2535
        %2749 = vmatpush.bf16.msra.mxu0 %v2527
        %2750 = vmatpush.bf16.msra.mxu0 %v2519
        %2751 = vmatpush.bf16.msra.mxu0 %v2511
        %2752 = vmatpush.bf16.msra.mxu0 %v2503
        %2753 = vmatpush.bf16.msra.mxu0 %v2495
        %2754 = vmatpush.bf16.msra.mxu0 %v2487
        %2755 = vmatmul.bf16.gmra.mxu0 %v1908
        %v2756 = vpop.f32.mrf.mxu0
        %v2757 = vadd.f32 %v2743, %v2756
        %v2758 = vpop.f32.mrf.mxu0
        %v2759 = vadd.f32 %v2745, %v2758
        %2760 = vdwg.mxu0
        %2761 = vmatpush.bf16.msra.mxu0 %v2480
        %2762 = vmatpush.bf16.msra.mxu0 %v2472
        %2763 = vmatpush.bf16.msra.mxu0 %v2464
        %2764 = vmatpush.bf16.msra.mxu0 %v2456
        %2765 = vmatpush.bf16.msra.mxu0 %v2448
        %2766 = vmatpush.bf16.msra.mxu0 %v2440
        %2767 = vmatpush.bf16.msra.mxu0 %v2432
        %2768 = vmatpush.bf16.msra.mxu0 %v2424
        %2769 = vmatmul.bf16.gmra.mxu0 %v1907
        %v2770 = vpop.f32.mrf.mxu0
        %v2771 = vadd.f32 0.0, %v2770
        %v2772 = vpop.f32.mrf.mxu0
        %v2773 = vadd.f32 0.0, %v2772
        %2774 = vdwg.mxu0
        %2775 = vmatpush.bf16.msra.mxu0 %v2544
        %2776 = vmatpush.bf16.msra.mxu0 %v2536
        %2777 = vmatpush.bf16.msra.mxu0 %v2528
        %2778 = vmatpush.bf16.msra.mxu0 %v2520
        %2779 = vmatpush.bf16.msra.mxu0 %v2512
        %2780 = vmatpush.bf16.msra.mxu0 %v2504
        %2781 = vmatpush.bf16.msra.mxu0 %v2496
        %2782 = vmatpush.bf16.msra.mxu0 %v2488
        %2783 = vmatmul.bf16.gmra.mxu0 %v1908
        %v2784 = vpop.f32.mrf.mxu0
        %v2785 = vadd.f32 %v2771, %v2784
        %v2786 = vpop.f32.mrf.mxu0
        %v2787 = vadd.f32 %v2773, %v2786
        %2788 = vdwg.mxu0
        %2789 = vmatpush.bf16.msra.mxu0 %v2481
        %2790 = vmatpush.bf16.msra.mxu0 %v2473
        %2791 = vmatpush.bf16.msra.mxu0 %v2465
        %2792 = vmatpush.bf16.msra.mxu0 %v2457
        %2793 = vmatpush.bf16.msra.mxu0 %v2449
        %2794 = vmatpush.bf16.msra.mxu0 %v2441
        %2795 = vmatpush.bf16.msra.mxu0 %v2433
        %2796 = vmatpush.bf16.msra.mxu0 %v2425
        %2797 = vmatmul.bf16.gmra.mxu0 %v1907
        %v2798 = vpop.f32.mrf.mxu0
        %v2799 = vadd.f32 0.0, %v2798
        %v2800 = vpop.f32.mrf.mxu0
        %v2801 = vadd.f32 0.0, %v2800
        %2802 = vdwg.mxu0
        %2803 = vmatpush.bf16.msra.mxu0 %v2545
        %2804 = vmatpush.bf16.msra.mxu0 %v2537
        %2805 = vmatpush.bf16.msra.mxu0 %v2529
        %2806 = vmatpush.bf16.msra.mxu0 %v2521
        %2807 = vmatpush.bf16.msra.mxu0 %v2513
        %2808 = vmatpush.bf16.msra.mxu0 %v2505
        %2809 = vmatpush.bf16.msra.mxu0 %v2497
        %2810 = vmatpush.bf16.msra.mxu0 %v2489
        %2811 = vmatmul.bf16.gmra.mxu0 %v1908
        %v2812 = vpop.f32.mrf.mxu0
        %v2813 = vadd.f32 %v2799, %v2812
        %v2814 = vpop.f32.mrf.mxu0
        %v2815 = vadd.f32 %v2801, %v2814
        %2816 = vdwg.mxu0
        %2817 = vmatpush.bf16.msra.mxu0 %v2482
        %2818 = vmatpush.bf16.msra.mxu0 %v2474
        %2819 = vmatpush.bf16.msra.mxu0 %v2466
        %2820 = vmatpush.bf16.msra.mxu0 %v2458
        %2821 = vmatpush.bf16.msra.mxu0 %v2450
        %2822 = vmatpush.bf16.msra.mxu0 %v2442
        %2823 = vmatpush.bf16.msra.mxu0 %v2434
        %2824 = vmatpush.bf16.msra.mxu0 %v2426
        %2825 = vmatmul.bf16.gmra.mxu0 %v1907
        %v2826 = vpop.f32.mrf.mxu0
        %v2827 = vadd.f32 0.0, %v2826
        %v2828 = vpop.f32.mrf.mxu0
        %v2829 = vadd.f32 0.0, %v2828
        %2830 = vdwg.mxu0
        %2831 = vmatpush.bf16.msra.mxu0 %v2546
        %2832 = vmatpush.bf16.msra.mxu0 %v2538
        %2833 = vmatpush.bf16.msra.mxu0 %v2530
        %2834 = vmatpush.bf16.msra.mxu0 %v2522
        %2835 = vmatpush.bf16.msra.mxu0 %v2514
        %2836 = vmatpush.bf16.msra.mxu0 %v2506
        %2837 = vmatpush.bf16.msra.mxu0 %v2498
        %2838 = vmatpush.bf16.msra.mxu0 %v2490
        %2839 = vmatmul.bf16.gmra.mxu0 %v1908
        %v2840 = vpop.f32.mrf.mxu0
        %v2841 = vadd.f32 %v2827, %v2840
        %v2842 = vpop.f32.mrf.mxu0
        %v2843 = vadd.f32 %v2829, %v2842
        %2844 = vdwg.mxu0
        %2845 = vmatpush.bf16.msra.mxu0 %v2483
        %2846 = vmatpush.bf16.msra.mxu0 %v2475
        %2847 = vmatpush.bf16.msra.mxu0 %v2467
        %2848 = vmatpush.bf16.msra.mxu0 %v2459
        %2849 = vmatpush.bf16.msra.mxu0 %v2451
        %2850 = vmatpush.bf16.msra.mxu0 %v2443
        %2851 = vmatpush.bf16.msra.mxu0 %v2435
        %2852 = vmatpush.bf16.msra.mxu0 %v2427
        %2853 = vmatmul.bf16.gmra.mxu0 %v1907
        %v2854 = vpop.f32.mrf.mxu0
        %v2855 = vadd.f32 0.0, %v2854
        %v2856 = vpop.f32.mrf.mxu0
        %v2857 = vadd.f32 0.0, %v2856
        %2858 = vdwg.mxu0
        %2859 = vmatpush.bf16.msra.mxu0 %v2547
        %2860 = vmatpush.bf16.msra.mxu0 %v2539
        %2861 = vmatpush.bf16.msra.mxu0 %v2531
        %2862 = vmatpush.bf16.msra.mxu0 %v2523
        %2863 = vmatpush.bf16.msra.mxu0 %v2515
        %2864 = vmatpush.bf16.msra.mxu0 %v2507
        %2865 = vmatpush.bf16.msra.mxu0 %v2499
        %2866 = vmatpush.bf16.msra.mxu0 %v2491
        %2867 = vmatmul.bf16.gmra.mxu0 %v1908
        %v2868 = vpop.f32.mrf.mxu0
        %v2869 = vadd.f32 %v2855, %v2868
        %v2870 = vpop.f32.mrf.mxu0
        %v2871 = vadd.f32 %v2857, %v2870
        %2872 = vdwg.mxu0
        %2873 = vmatpush.bf16.msra.mxu0 %v2484
        %2874 = vmatpush.bf16.msra.mxu0 %v2476
        %2875 = vmatpush.bf16.msra.mxu0 %v2468
        %2876 = vmatpush.bf16.msra.mxu0 %v2460
        %2877 = vmatpush.bf16.msra.mxu0 %v2452
        %2878 = vmatpush.bf16.msra.mxu0 %v2444
        %2879 = vmatpush.bf16.msra.mxu0 %v2436
        %2880 = vmatpush.bf16.msra.mxu0 %v2428
        %2881 = vmatmul.bf16.gmra.mxu0 %v1907
        %v2882 = vpop.f32.mrf.mxu0
        %v2883 = vadd.f32 0.0, %v2882
        %v2884 = vpop.f32.mrf.mxu0
        %v2885 = vadd.f32 0.0, %v2884
        %2886 = vdwg.mxu0
        %2887 = vmatpush.bf16.msra.mxu0 %v2548
        %2888 = vmatpush.bf16.msra.mxu0 %v2540
        %2889 = vmatpush.bf16.msra.mxu0 %v2532
        %2890 = vmatpush.bf16.msra.mxu0 %v2524
        %2891 = vmatpush.bf16.msra.mxu0 %v2516
        %2892 = vmatpush.bf16.msra.mxu0 %v2508
        %2893 = vmatpush.bf16.msra.mxu0 %v2500
        %2894 = vmatpush.bf16.msra.mxu0 %v2492
        %2895 = vmatmul.bf16.gmra.mxu0 %v1908
        %v2896 = vpop.f32.mrf.mxu0
        %v2897 = vadd.f32 %v2883, %v2896
        %v2898 = vpop.f32.mrf.mxu0
        %v2899 = vadd.f32 %v2885, %v2898
        %2900 = vdwg.mxu0
        %v2901 = vxor.u32 %v2701, 2147483648
        %v2902 = vxor.u32 %v2729, 2147483648
        %v2903 = vxor.u32 %v2757, 2147483648
        %v2904 = vxor.u32 %v2785, 2147483648
        %v2905 = vxor.u32 %v2703, 2147483648
        %v2906 = vxor.u32 %v2731, 2147483648
        %v2907 = vxor.u32 %v2759, 2147483648
        %v2908 = vxor.u32 %v2787, 2147483648
        %v2909 = vmul.f32 %v2901, 1.442695
        %v2910 = vpow.pop %v2909
        %v2911 = vmul.f32 %v2902, 1.442695
        %v2912 = vpow.pop %v2911
        %v2913 = vmul.f32 %v2903, 1.442695
        %v2914 = vpow.pop %v2913
        %v2915 = vmul.f32 %v2904, 1.442695
        %v2916 = vpow.pop %v2915
        %v2917 = vmul.f32 %v2905, 1.442695
        %v2918 = vpow.pop %v2917
        %v2919 = vmul.f32 %v2906, 1.442695
        %v2920 = vpow.pop %v2919
        %v2921 = vmul.f32 %v2907, 1.442695
        %v2922 = vpow.pop %v2921
        %v2923 = vmul.f32 %v2908, 1.442695
        %v2924 = vpow.pop %v2923
        %v2925 = vadd.f32 %v2910, 1.0
        %v2926 = vadd.f32 %v2912, 1.0
        %v2927 = vadd.f32 %v2914, 1.0
        %v2928 = vadd.f32 %v2916, 1.0
        %v2929 = vadd.f32 %v2918, 1.0
        %v2930 = vadd.f32 %v2920, 1.0
        %v2931 = vadd.f32 %v2922, 1.0
        %v2932 = vadd.f32 %v2924, 1.0
        %v2933 = vrcp.pop %v2925
        %v2934 = vmul.f32 %v2925, %v2933
        %v2935 = vsub.f32 1.0, %v2934
        %v2936 = vmul.f32 %v2933, %v2935
        %v2937 = vadd.f32 %v2933, %v2936
        %vm2938 = vweird.f32 %v2925
        %vm2939 = vweird.f32 %v2933
        %vm2940 = vmor %vm2938, %vm2939
        %v2941 = vsel %vm2940, %v2933, %v2937
        %v2942 = vand.u32 2147483647, %v2925
        %vm2943 = vcmp.eq.f32.partialorder %v2942, 8.507059e+37
        %v2944 = vand.u32 %v2925, 2147483648
        %v2945 = vor.u32 1.1754944e-38, %v2944
        %v2946 = vsel %vm2943, %v2945, %v2941
        %v2947 = vmul.f32 1.0, %v2946
        %v2948 = vrcp.pop %v2926
        %v2949 = vmul.f32 %v2926, %v2948
        %v2950 = vsub.f32 1.0, %v2949
        %v2951 = vmul.f32 %v2948, %v2950
        %v2952 = vadd.f32 %v2948, %v2951
        %vm2953 = vweird.f32 %v2926
        %vm2954 = vweird.f32 %v2948
        %vm2955 = vmor %vm2953, %vm2954
        %v2956 = vsel %vm2955, %v2948, %v2952
        %v2957 = vand.u32 2147483647, %v2926
        %vm2958 = vcmp.eq.f32.partialorder %v2957, 8.507059e+37
        %v2959 = vand.u32 %v2926, 2147483648
        %v2960 = vor.u32 1.1754944e-38, %v2959
        %v2961 = vsel %vm2958, %v2960, %v2956
        %v2962 = vmul.f32 1.0, %v2961
        %v2963 = vrcp.pop %v2927
        %v2964 = vmul.f32 %v2927, %v2963
        %v2965 = vsub.f32 1.0, %v2964
        %v2966 = vmul.f32 %v2963, %v2965
        %v2967 = vadd.f32 %v2963, %v2966
        %vm2968 = vweird.f32 %v2927
        %vm2969 = vweird.f32 %v2963
        %vm2970 = vmor %vm2968, %vm2969
        %v2971 = vsel %vm2970, %v2963, %v2967
        %v2972 = vand.u32 2147483647, %v2927
        %vm2973 = vcmp.eq.f32.partialorder %v2972, 8.507059e+37
        %v2974 = vand.u32 %v2927, 2147483648
        %v2975 = vor.u32 1.1754944e-38, %v2974
        %v2976 = vsel %vm2973, %v2975, %v2971
        %v2977 = vmul.f32 1.0, %v2976
        %v2978 = vrcp.pop %v2928
        %v2979 = vmul.f32 %v2928, %v2978
        %v2980 = vsub.f32 1.0, %v2979
        %v2981 = vmul.f32 %v2978, %v2980
        %v2982 = vadd.f32 %v2978, %v2981
        %vm2983 = vweird.f32 %v2928
        %vm2984 = vweird.f32 %v2978
        %vm2985 = vmor %vm2983, %vm2984
        %v2986 = vsel %vm2985, %v2978, %v2982
        %v2987 = vand.u32 2147483647, %v2928
        %vm2988 = vcmp.eq.f32.partialorder %v2987, 8.507059e+37
        %v2989 = vand.u32 %v2928, 2147483648
        %v2990 = vor.u32 1.1754944e-38, %v2989
        %v2991 = vsel %vm2988, %v2990, %v2986
        %v2992 = vmul.f32 1.0, %v2991
        %v2993 = vrcp.pop %v2929
        %v2994 = vmul.f32 %v2929, %v2993
        %v2995 = vsub.f32 1.0, %v2994
        %v2996 = vmul.f32 %v2993, %v2995
        %v2997 = vadd.f32 %v2993, %v2996
        %vm2998 = vweird.f32 %v2929
        %vm2999 = vweird.f32 %v2993
        %vm3000 = vmor %vm2998, %vm2999
        %v3001 = vsel %vm3000, %v2993, %v2997
        %v3002 = vand.u32 2147483647, %v2929
        %vm3003 = vcmp.eq.f32.partialorder %v3002, 8.507059e+37
        %v3004 = vand.u32 %v2929, 2147483648
        %v3005 = vor.u32 1.1754944e-38, %v3004
        %v3006 = vsel %vm3003, %v3005, %v3001
        %v3007 = vmul.f32 1.0, %v3006
        %v3008 = vrcp.pop %v2930
        %v3009 = vmul.f32 %v2930, %v3008
        %v3010 = vsub.f32 1.0, %v3009
        %v3011 = vmul.f32 %v3008, %v3010
        %v3012 = vadd.f32 %v3008, %v3011
        %vm3013 = vweird.f32 %v2930
        %vm3014 = vweird.f32 %v3008
        %vm3015 = vmor %vm3013, %vm3014
        %v3016 = vsel %vm3015, %v3008, %v3012
        %v3017 = vand.u32 2147483647, %v2930
        %vm3018 = vcmp.eq.f32.partialorder %v3017, 8.507059e+37
        %v3019 = vand.u32 %v2930, 2147483648
        %v3020 = vor.u32 1.1754944e-38, %v3019
        %v3021 = vsel %vm3018, %v3020, %v3016
        %v3022 = vmul.f32 1.0, %v3021
        %v3023 = vrcp.pop %v2931
        %v3024 = vmul.f32 %v2931, %v3023
        %v3025 = vsub.f32 1.0, %v3024
        %v3026 = vmul.f32 %v3023, %v3025
        %v3027 = vadd.f32 %v3023, %v3026
        %vm3028 = vweird.f32 %v2931
        %vm3029 = vweird.f32 %v3023
        %vm3030 = vmor %vm3028, %vm3029
        %v3031 = vsel %vm3030, %v3023, %v3027
        %v3032 = vand.u32 2147483647, %v2931
        %vm3033 = vcmp.eq.f32.partialorder %v3032, 8.507059e+37
        %v3034 = vand.u32 %v2931, 2147483648
        %v3035 = vor.u32 1.1754944e-38, %v3034
        %v3036 = vsel %vm3033, %v3035, %v3031
        %v3037 = vmul.f32 1.0, %v3036
        %v3038 = vrcp.pop %v2932
        %v3039 = vmul.f32 %v2932, %v3038
        %v3040 = vsub.f32 1.0, %v3039
        %v3041 = vmul.f32 %v3038, %v3040
        %v3042 = vadd.f32 %v3038, %v3041
        %vm3043 = vweird.f32 %v2932
        %vm3044 = vweird.f32 %v3038
        %vm3045 = vmor %vm3043, %vm3044
        %v3046 = vsel %vm3045, %v3038, %v3042
        %v3047 = vand.u32 2147483647, %v2932
        %vm3048 = vcmp.eq.f32.partialorder %v3047, 8.507059e+37
        %v3049 = vand.u32 %v2932, 2147483648
        %v3050 = vor.u32 1.1754944e-38, %v3049
        %v3051 = vsel %vm3048, %v3050, %v3046
        %v3052 = vmul.f32 1.0, %v3051
        %v3053 = vmul.f32 %v2701, %v2947
        %v3054 = vmul.f32 %v2729, %v2962
        %v3055 = vmul.f32 %v2757, %v2977
        %v3056 = vmul.f32 %v2785, %v2992
        %v3057 = vmul.f32 %v2703, %v3007
        %v3058 = vmul.f32 %v2731, %v3022
        %v3059 = vmul.f32 %v2759, %v3037
        %v3060 = vmul.f32 %v2787, %v3052
        %v3061 = vmul.f32 %v3053, %v2813
        %v3062 = vmul.f32 %v3054, %v2841
        %v3063 = vmul.f32 %v3055, %v2869
        %v3064 = vmul.f32 %v3056, %v2897
        %v3065 = vmul.f32 %v3057, %v2815
        %v3066 = vmul.f32 %v3058, %v2843
        %v3067 = vmul.f32 %v3059, %v2871
        %v3068 = vmul.f32 %v3060, %v2899
        %v3069 = vpack.c.bf16 %v3065, %v3061
        %v3070 = vpack.c.bf16 %v3066, %v3062
        %v3071 = vpack.c.bf16 %v3067, %v3063
        %v3072 = vpack.c.bf16 %v3068, %v3064
        %v3073 = vld [vmem:[%s495] sm:$0xff]
        %v3074 = vld [vmem:[%s495 + $0x8] sm:$0xff]
        %v3075 = vld [vmem:[%s495 + $0x10] sm:$0xff]
        %v3076 = vld [vmem:[%s495 + $0x18] sm:$0xff]
        %v3077 = vld [vmem:[%s495 + $0x20] sm:$0xff]
        %v3078 = vld [vmem:[%s495 + $0x28] sm:$0xff]
        %v3079 = vld [vmem:[%s495 + $0x30] sm:$0xff]
        %v3080 = vld [vmem:[%s495 + $0x38] sm:$0xff]
        %v3081 = vld [vmem:[%s495 + $0x40] sm:$0xff]
        %v3082 = vld [vmem:[%s495 + $0x48] sm:$0xff]
        %v3083 = vld [vmem:[%s495 + $0x50] sm:$0xff]
        %v3084 = vld [vmem:[%s495 + $0x58] sm:$0xff]
        %v3085 = vld [vmem:[%s495 + $0x60] sm:$0xff]
        %v3086 = vld [vmem:[%s495 + $0x68] sm:$0xff]
        %v3087 = vld [vmem:[%s495 + $0x70] sm:$0xff]
        %v3088 = vld [vmem:[%s495 + $0x78] sm:$0xff]
        %v3089 = vld [vmem:[%s495 + $0x80] sm:$0xff]
        %v3090 = vld [vmem:[%s495 + $0x88] sm:$0xff]
        %v3091 = vld [vmem:[%s495 + $0x90] sm:$0xff]
        %v3092 = vld [vmem:[%s495 + $0x98] sm:$0xff]
        %v3093 = vld [vmem:[%s495 + $0xa0] sm:$0xff]
        %v3094 = vld [vmem:[%s495 + $0xa8] sm:$0xff]
        %v3095 = vld [vmem:[%s495 + $0xb0] sm:$0xff]
        %v3096 = vld [vmem:[%s495 + $0xb8] sm:$0xff]
        %v3097 = vld [vmem:[%s495 + $0xc0] sm:$0xff]
        %v3098 = vld [vmem:[%s495 + $0xc8] sm:$0xff]
        %v3099 = vld [vmem:[%s495 + $0xd0] sm:$0xff]
        %v3100 = vld [vmem:[%s495 + $0xd8] sm:$0xff]
        %v3101 = vld [vmem:[%s495 + $0xe0] sm:$0xff]
        %v3102 = vld [vmem:[%s495 + $0xe8] sm:$0xff]
        %v3103 = vld [vmem:[%s495 + $0xf0] sm:$0xff]
        %v3104 = vld [vmem:[%s495 + $0xf8] sm:$0xff]
        %v3105 = vld [vmem:[%s495 + $0x100] sm:$0xff]
        %v3106 = vld [vmem:[%s495 + $0x108] sm:$0xff]
        %v3107 = vld [vmem:[%s495 + $0x110] sm:$0xff]
        %v3108 = vld [vmem:[%s495 + $0x118] sm:$0xff]
        %v3109 = vld [vmem:[%s495 + $0x120] sm:$0xff]
        %v3110 = vld [vmem:[%s495 + $0x128] sm:$0xff]
        %v3111 = vld [vmem:[%s495 + $0x130] sm:$0xff]
        %v3112 = vld [vmem:[%s495 + $0x138] sm:$0xff]
        %v3113 = vld [vmem:[%s495 + $0x140] sm:$0xff]
        %v3114 = vld [vmem:[%s495 + $0x148] sm:$0xff]
        %v3115 = vld [vmem:[%s495 + $0x150] sm:$0xff]
        %v3116 = vld [vmem:[%s495 + $0x158] sm:$0xff]
        %v3117 = vld [vmem:[%s495 + $0x160] sm:$0xff]
        %v3118 = vld [vmem:[%s495 + $0x168] sm:$0xff]
        %v3119 = vld [vmem:[%s495 + $0x170] sm:$0xff]
        %v3120 = vld [vmem:[%s495 + $0x178] sm:$0xff]
        %v3121 = vld [vmem:[%s495 + $0x180] sm:$0xff]
        %v3122 = vld [vmem:[%s495 + $0x188] sm:$0xff]
        %v3123 = vld [vmem:[%s495 + $0x190] sm:$0xff]
        %v3124 = vld [vmem:[%s495 + $0x198] sm:$0xff]
        %v3125 = vld [vmem:[%s495 + $0x1a0] sm:$0xff]
        %v3126 = vld [vmem:[%s495 + $0x1a8] sm:$0xff]
        %v3127 = vld [vmem:[%s495 + $0x1b0] sm:$0xff]
        %v3128 = vld [vmem:[%s495 + $0x1b8] sm:$0xff]
        %v3129 = vld [vmem:[%s495 + $0x1c0] sm:$0xff]
        %v3130 = vld [vmem:[%s495 + $0x1c8] sm:$0xff]
        %v3131 = vld [vmem:[%s495 + $0x1d0] sm:$0xff]
        %v3132 = vld [vmem:[%s495 + $0x1d8] sm:$0xff]
        %v3133 = vld [vmem:[%s495 + $0x1e0] sm:$0xff]
        %v3134 = vld [vmem:[%s495 + $0x1e8] sm:$0xff]
        %v3135 = vld [vmem:[%s495 + $0x1f0] sm:$0xff]
        %v3136 = vld [vmem:[%s495 + $0x1f8] sm:$0xff]
        %v3201 = vunpack.c.l.b16 %v3073
        %v3202 = vunpack.c.h.b16 %v3073
        %v3203 = vunpack.c.l.b16 %v3074
        %v3204 = vunpack.c.h.b16 %v3074
        %v3205 = vunpack.c.l.b16 %v3075
        %v3206 = vunpack.c.h.b16 %v3075
        %v3207 = vunpack.c.l.b16 %v3076
        %v3208 = vunpack.c.h.b16 %v3076
        %v3209 = vunpack.c.l.b16 %v3077
        %v3210 = vunpack.c.h.b16 %v3077
        %v3211 = vunpack.c.l.b16 %v3078
        %v3212 = vunpack.c.h.b16 %v3078
        %v3213 = vunpack.c.l.b16 %v3079
        %v3214 = vunpack.c.h.b16 %v3079
        %v3215 = vunpack.c.l.b16 %v3080
        %v3216 = vunpack.c.h.b16 %v3080
        %v3217 = vunpack.c.l.b16 %v3081
        %v3218 = vunpack.c.h.b16 %v3081
        %v3219 = vunpack.c.l.b16 %v3082
        %v3220 = vunpack.c.h.b16 %v3082
        %v3221 = vunpack.c.l.b16 %v3083
        %v3222 = vunpack.c.h.b16 %v3083
        %v3223 = vunpack.c.l.b16 %v3084
        %v3224 = vunpack.c.h.b16 %v3084
        %v3225 = vunpack.c.l.b16 %v3085
        %v3226 = vunpack.c.h.b16 %v3085
        %v3227 = vunpack.c.l.b16 %v3086
        %v3228 = vunpack.c.h.b16 %v3086
        %v3229 = vunpack.c.l.b16 %v3087
        %v3230 = vunpack.c.h.b16 %v3087
        %v3231 = vunpack.c.l.b16 %v3088
        %v3232 = vunpack.c.h.b16 %v3088
        %v3233 = vunpack.c.l.b16 %v3089
        %v3234 = vunpack.c.h.b16 %v3089
        %v3235 = vunpack.c.l.b16 %v3090
        %v3236 = vunpack.c.h.b16 %v3090
        %v3237 = vunpack.c.l.b16 %v3091
        %v3238 = vunpack.c.h.b16 %v3091
        %v3239 = vunpack.c.l.b16 %v3092
        %v3240 = vunpack.c.h.b16 %v3092
        %v3241 = vunpack.c.l.b16 %v3093
        %v3242 = vunpack.c.h.b16 %v3093
        %v3243 = vunpack.c.l.b16 %v3094
        %v3244 = vunpack.c.h.b16 %v3094
        %v3245 = vunpack.c.l.b16 %v3095
        %v3246 = vunpack.c.h.b16 %v3095
        %v3247 = vunpack.c.l.b16 %v3096
        %v3248 = vunpack.c.h.b16 %v3096
        %v3249 = vunpack.c.l.b16 %v3097
        %v3250 = vunpack.c.h.b16 %v3097
        %v3251 = vunpack.c.l.b16 %v3098
        %v3252 = vunpack.c.h.b16 %v3098
        %v3253 = vunpack.c.l.b16 %v3099
        %v3254 = vunpack.c.h.b16 %v3099
        %v3255 = vunpack.c.l.b16 %v3100
        %v3256 = vunpack.c.h.b16 %v3100
        %v3257 = vunpack.c.l.b16 %v3101
        %v3258 = vunpack.c.h.b16 %v3101
        %v3259 = vunpack.c.l.b16 %v3102
        %v3260 = vunpack.c.h.b16 %v3102
        %v3261 = vunpack.c.l.b16 %v3103
        %v3262 = vunpack.c.h.b16 %v3103
        %v3263 = vunpack.c.l.b16 %v3104
        %v3264 = vunpack.c.h.b16 %v3104
        %v3265 = vunpack.c.l.b16 %v3105
        %v3266 = vunpack.c.h.b16 %v3105
        %v3267 = vunpack.c.l.b16 %v3106
        %v3268 = vunpack.c.h.b16 %v3106
        %v3269 = vunpack.c.l.b16 %v3107
        %v3270 = vunpack.c.h.b16 %v3107
        %v3271 = vunpack.c.l.b16 %v3108
        %v3272 = vunpack.c.h.b16 %v3108
        %v3273 = vunpack.c.l.b16 %v3109
        %v3274 = vunpack.c.h.b16 %v3109
        %v3275 = vunpack.c.l.b16 %v3110
        %v3276 = vunpack.c.h.b16 %v3110
        %v3277 = vunpack.c.l.b16 %v3111
        %v3278 = vunpack.c.h.b16 %v3111
        %v3279 = vunpack.c.l.b16 %v3112
        %v3280 = vunpack.c.h.b16 %v3112
        %v3281 = vunpack.c.l.b16 %v3113
        %v3282 = vunpack.c.h.b16 %v3113
        %v3283 = vunpack.c.l.b16 %v3114
        %v3284 = vunpack.c.h.b16 %v3114
        %v3285 = vunpack.c.l.b16 %v3115
        %v3286 = vunpack.c.h.b16 %v3115
        %v3287 = vunpack.c.l.b16 %v3116
        %v3288 = vunpack.c.h.b16 %v3116
        %v3289 = vunpack.c.l.b16 %v3117
        %v3290 = vunpack.c.h.b16 %v3117
        %v3291 = vunpack.c.l.b16 %v3118
        %v3292 = vunpack.c.h.b16 %v3118
        %v3293 = vunpack.c.l.b16 %v3119
        %v3294 = vunpack.c.h.b16 %v3119
        %v3295 = vunpack.c.l.b16 %v3120
        %v3296 = vunpack.c.h.b16 %v3120
        %v3297 = vunpack.c.l.b16 %v3121
        %v3298 = vunpack.c.h.b16 %v3121
        %v3299 = vunpack.c.l.b16 %v3122
        %v3300 = vunpack.c.h.b16 %v3122
        %v3301 = vunpack.c.l.b16 %v3123
        %v3302 = vunpack.c.h.b16 %v3123
        %v3303 = vunpack.c.l.b16 %v3124
        %v3304 = vunpack.c.h.b16 %v3124
        %v3305 = vunpack.c.l.b16 %v3125
        %v3306 = vunpack.c.h.b16 %v3125
        %v3307 = vunpack.c.l.b16 %v3126
        %v3308 = vunpack.c.h.b16 %v3126
        %v3309 = vunpack.c.l.b16 %v3127
        %v3310 = vunpack.c.h.b16 %v3127
        %v3311 = vunpack.c.l.b16 %v3128
        %v3312 = vunpack.c.h.b16 %v3128
        %v3313 = vunpack.c.l.b16 %v3129
        %v3314 = vunpack.c.h.b16 %v3129
        %v3315 = vunpack.c.l.b16 %v3130
        %v3316 = vunpack.c.h.b16 %v3130
        %v3317 = vunpack.c.l.b16 %v3131
        %v3318 = vunpack.c.h.b16 %v3131
        %v3319 = vunpack.c.l.b16 %v3132
        %v3320 = vunpack.c.h.b16 %v3132
        %v3321 = vunpack.c.l.b16 %v3133
        %v3322 = vunpack.c.h.b16 %v3133
        %v3323 = vunpack.c.l.b16 %v3134
        %v3324 = vunpack.c.h.b16 %v3134
        %v3325 = vunpack.c.l.b16 %v3135
        %v3326 = vunpack.c.h.b16 %v3135
        %v3327 = vunpack.c.l.b16 %v3136
        %v3328 = vunpack.c.h.b16 %v3136
        %v3329 = vpack.c.b16 %v3203, %v3201
        %v3330 = vpack.c.b16 %v3204, %v3202
        %v3331 = vpack.c.b16 %v3207, %v3205
        %v3332 = vpack.c.b16 %v3208, %v3206
        %v3333 = vpack.c.b16 %v3211, %v3209
        %v3334 = vpack.c.b16 %v3212, %v3210
        %v3335 = vpack.c.b16 %v3215, %v3213
        %v3336 = vpack.c.b16 %v3216, %v3214
        %v3337 = vpack.c.b16 %v3219, %v3217
        %v3338 = vpack.c.b16 %v3220, %v3218
        %v3339 = vpack.c.b16 %v3223, %v3221
        %v3340 = vpack.c.b16 %v3224, %v3222
        %v3341 = vpack.c.b16 %v3227, %v3225
        %v3342 = vpack.c.b16 %v3228, %v3226
        %v3343 = vpack.c.b16 %v3231, %v3229
        %v3344 = vpack.c.b16 %v3232, %v3230
        %v3345 = vpack.c.b16 %v3235, %v3233
        %v3346 = vpack.c.b16 %v3236, %v3234
        %v3347 = vpack.c.b16 %v3239, %v3237
        %v3348 = vpack.c.b16 %v3240, %v3238
        %v3349 = vpack.c.b16 %v3243, %v3241
        %v3350 = vpack.c.b16 %v3244, %v3242
        %v3351 = vpack.c.b16 %v3247, %v3245
        %v3352 = vpack.c.b16 %v3248, %v3246
        %v3353 = vpack.c.b16 %v3251, %v3249
        %v3354 = vpack.c.b16 %v3252, %v3250
        %v3355 = vpack.c.b16 %v3255, %v3253
        %v3356 = vpack.c.b16 %v3256, %v3254
        %v3357 = vpack.c.b16 %v3259, %v3257
        %v3358 = vpack.c.b16 %v3260, %v3258
        %v3359 = vpack.c.b16 %v3263, %v3261
        %v3360 = vpack.c.b16 %v3264, %v3262
        %v3361 = vpack.c.b16 %v3267, %v3265
        %v3362 = vpack.c.b16 %v3268, %v3266
        %v3363 = vpack.c.b16 %v3271, %v3269
        %v3364 = vpack.c.b16 %v3272, %v3270
        %v3365 = vpack.c.b16 %v3275, %v3273
        %v3366 = vpack.c.b16 %v3276, %v3274
        %v3367 = vpack.c.b16 %v3279, %v3277
        %v3368 = vpack.c.b16 %v3280, %v3278
        %v3369 = vpack.c.b16 %v3283, %v3281
        %v3370 = vpack.c.b16 %v3284, %v3282
        %v3371 = vpack.c.b16 %v3287, %v3285
        %v3372 = vpack.c.b16 %v3288, %v3286
        %v3373 = vpack.c.b16 %v3291, %v3289
        %v3374 = vpack.c.b16 %v3292, %v3290
        %v3375 = vpack.c.b16 %v3295, %v3293
        %v3376 = vpack.c.b16 %v3296, %v3294
        %v3377 = vpack.c.b16 %v3299, %v3297
        %v3378 = vpack.c.b16 %v3300, %v3298
        %v3379 = vpack.c.b16 %v3303, %v3301
        %v3380 = vpack.c.b16 %v3304, %v3302
        %v3381 = vpack.c.b16 %v3307, %v3305
        %v3382 = vpack.c.b16 %v3308, %v3306
        %v3383 = vpack.c.b16 %v3311, %v3309
        %v3384 = vpack.c.b16 %v3312, %v3310
        %v3385 = vpack.c.b16 %v3315, %v3313
        %v3386 = vpack.c.b16 %v3316, %v3314
        %v3387 = vpack.c.b16 %v3319, %v3317
        %v3388 = vpack.c.b16 %v3320, %v3318
        %v3389 = vpack.c.b16 %v3323, %v3321
        %v3390 = vpack.c.b16 %v3324, %v3322
        %v3391 = vpack.c.b16 %v3327, %v3325
        %v3392 = vpack.c.b16 %v3328, %v3326
        %3457 = vmatpush.bf16.msra.mxu0 %v3343
        %3458 = vmatpush.bf16.msra.mxu0 %v3341
        %3459 = vmatpush.bf16.msra.mxu0 %v3339
        %3460 = vmatpush.bf16.msra.mxu0 %v3337
        %3461 = vmatpush.bf16.msra.mxu0 %v3335
        %3462 = vmatpush.bf16.msra.mxu0 %v3333
        %3463 = vmatpush.bf16.msra.mxu0 %v3331
        %3464 = vmatpush.bf16.msra.mxu0 %v3329
        %3465 = vmatmul.bf16.gmra.mxu0 %v3069
        %v3466 = vpop.f32.mrf.mxu0
        %v3467 = vadd.f32 0.0, %v3466
        %v3468 = vpop.f32.mrf.mxu0
        %v3469 = vadd.f32 0.0, %v3468
        %3470 = vdwg.mxu0
        %3471 = vmatpush.bf16.msra.mxu0 %v3359
        %3472 = vmatpush.bf16.msra.mxu0 %v3357
        %3473 = vmatpush.bf16.msra.mxu0 %v3355
        %3474 = vmatpush.bf16.msra.mxu0 %v3353
        %3475 = vmatpush.bf16.msra.mxu0 %v3351
        %3476 = vmatpush.bf16.msra.mxu0 %v3349
        %3477 = vmatpush.bf16.msra.mxu0 %v3347
        %3478 = vmatpush.bf16.msra.mxu0 %v3345
        %3479 = vmatmul.bf16.gmra.mxu0 %v3070
        %v3480 = vpop.f32.mrf.mxu0
        %v3481 = vadd.f32 %v3467, %v3480
        %v3482 = vpop.f32.mrf.mxu0
        %v3483 = vadd.f32 %v3469, %v3482
        %3484 = vdwg.mxu0
        %3485 = vmatpush.bf16.msra.mxu0 %v3375
        %3486 = vmatpush.bf16.msra.mxu0 %v3373
        %3487 = vmatpush.bf16.msra.mxu0 %v3371
        %3488 = vmatpush.bf16.msra.mxu0 %v3369
        %3489 = vmatpush.bf16.msra.mxu0 %v3367
        %3490 = vmatpush.bf16.msra.mxu0 %v3365
        %3491 = vmatpush.bf16.msra.mxu0 %v3363
        %3492 = vmatpush.bf16.msra.mxu0 %v3361
        %3493 = vmatmul.bf16.gmra.mxu0 %v3071
        %v3494 = vpop.f32.mrf.mxu0
        %v3495 = vadd.f32 %v3481, %v3494
        %v3496 = vpop.f32.mrf.mxu0
        %v3497 = vadd.f32 %v3483, %v3496
        %3498 = vdwg.mxu0
        %3499 = vmatpush.bf16.msra.mxu0 %v3391
        %3500 = vmatpush.bf16.msra.mxu0 %v3389
        %3501 = vmatpush.bf16.msra.mxu0 %v3387
        %3502 = vmatpush.bf16.msra.mxu0 %v3385
        %3503 = vmatpush.bf16.msra.mxu0 %v3383
        %3504 = vmatpush.bf16.msra.mxu0 %v3381
        %3505 = vmatpush.bf16.msra.mxu0 %v3379
        %3506 = vmatpush.bf16.msra.mxu0 %v3377
        %3507 = vmatmul.bf16.gmra.mxu0 %v3072
        %v3508 = vpop.f32.mrf.mxu0
        %v3509 = vadd.f32 %v3495, %v3508
        %v3510 = vpop.f32.mrf.mxu0
        %v3511 = vadd.f32 %v3497, %v3510
        %3512 = vdwg.mxu0
        %3513 = vmatpush.bf16.msra.mxu0 %v3344
        %3514 = vmatpush.bf16.msra.mxu0 %v3342
        %3515 = vmatpush.bf16.msra.mxu0 %v3340
        %3516 = vmatpush.bf16.msra.mxu0 %v3338
        %3517 = vmatpush.bf16.msra.mxu0 %v3336
        %3518 = vmatpush.bf16.msra.mxu0 %v3334
        %3519 = vmatpush.bf16.msra.mxu0 %v3332
        %3520 = vmatpush.bf16.msra.mxu0 %v3330
        %3521 = vmatmul.bf16.gmra.mxu0 %v3069
        %v3522 = vpop.f32.mrf.mxu0
        %v3523 = vadd.f32 0.0, %v3522
        %v3524 = vpop.f32.mrf.mxu0
        %v3525 = vadd.f32 0.0, %v3524
        %3526 = vdwg.mxu0
        %3527 = vmatpush.bf16.msra.mxu0 %v3360
        %3528 = vmatpush.bf16.msra.mxu0 %v3358
        %3529 = vmatpush.bf16.msra.mxu0 %v3356
        %3530 = vmatpush.bf16.msra.mxu0 %v3354
        %3531 = vmatpush.bf16.msra.mxu0 %v3352
        %3532 = vmatpush.bf16.msra.mxu0 %v3350
        %3533 = vmatpush.bf16.msra.mxu0 %v3348
        %3534 = vmatpush.bf16.msra.mxu0 %v3346
        %3535 = vmatmul.bf16.gmra.mxu0 %v3070
        %v3536 = vpop.f32.mrf.mxu0
        %v3537 = vadd.f32 %v3523, %v3536
        %v3538 = vpop.f32.mrf.mxu0
        %v3539 = vadd.f32 %v3525, %v3538
        %3540 = vdwg.mxu0
        %3541 = vmatpush.bf16.msra.mxu0 %v3376
        %3542 = vmatpush.bf16.msra.mxu0 %v3374
        %3543 = vmatpush.bf16.msra.mxu0 %v3372
        %3544 = vmatpush.bf16.msra.mxu0 %v3370
        %3545 = vmatpush.bf16.msra.mxu0 %v3368
        %3546 = vmatpush.bf16.msra.mxu0 %v3366
        %3547 = vmatpush.bf16.msra.mxu0 %v3364
        %3548 = vmatpush.bf16.msra.mxu0 %v3362
        %3549 = vmatmul.bf16.gmra.mxu0 %v3071
        %v3550 = vpop.f32.mrf.mxu0
        %v3551 = vadd.f32 %v3537, %v3550
        %v3552 = vpop.f32.mrf.mxu0
        %v3553 = vadd.f32 %v3539, %v3552
        %3554 = vdwg.mxu0
        %3555 = vmatpush.bf16.msra.mxu0 %v3392
        %3556 = vmatpush.bf16.msra.mxu0 %v3390
        %3557 = vmatpush.bf16.msra.mxu0 %v3388
        %3558 = vmatpush.bf16.msra.mxu0 %v3386
        %3559 = vmatpush.bf16.msra.mxu0 %v3384
        %3560 = vmatpush.bf16.msra.mxu0 %v3382
        %3561 = vmatpush.bf16.msra.mxu0 %v3380
        %3562 = vmatpush.bf16.msra.mxu0 %v3378
        %3563 = vmatmul.bf16.gmra.mxu0 %v3072
        %v3564 = vpop.f32.mrf.mxu0
        %v3565 = vadd.f32 %v3551, %v3564
        %v3566 = vpop.f32.mrf.mxu0
        %v3567 = vadd.f32 %v3553, %v3566
        %3568 = vdwg.mxu0
        %3569 = vst [vmem:[#allocation2] sm:$0xff] %v3509
        %3570 = vst [vmem:[#allocation2 + $0x8] sm:$0xff] %v3565
        %3571 = vst [vmem:[#allocation2 + $0x10] sm:$0xff] %v3511
        %3572 = vst [vmem:[#allocation2 + $0x18] sm:$0xff] %v3567
        %3573 = vst [vmem:[#allocation3] sm:$0xff] %v1827
        %3574 = vst [vmem:[#allocation3 + $0x8] sm:$0xff] %v1855
        %3575 = vst [vmem:[#allocation3 + $0x10] sm:$0xff] %v1829
        %3576 = vst [vmem:[#allocation3 + $0x18] sm:$0xff] %v1857
        %p3577 = scmp.eq.s32.totalorder %s32, 1
        // Predicated region
        $region85: #{qwen_model_forward.1} parent=63 // pred_check
          %p3578 = pneg %p3577
        $region86: #{qwen_model_forward.1} parent=63 // pred_check_branch
          %3580 = sbr.rel (%p3578) target = $region88
        $region87: #{qwen_model_forward.1} parent=63 // pred_region
          %v3581 = vadd.f32 %v3509, %v1827
          %v3582 = vadd.f32 %v3565, %v1855
          %v3583 = vadd.f32 %v3511, %v1829
          %v3584 = vadd.f32 %v3567, %v1857
          %v3585 = vld [vmem:[%s3] sm:$0x3]
          %v3586 = vmul.f32 %v3581, %v3581
          %v3587 = vmul.f32 %v3582, %v3582
          %v3588 = vmul.f32 %v3583, %v3583
          %v3589 = vmul.f32 %v3584, %v3584
          %v3590 = vadd.f32 %v3586, %v3587
          %3591 = vadd.xlane.f32.xlu0 %v3590
          %v3592 = vpop.xlane.xlu0 %3591
          %v3593 = vadd.f32 %v3588, %v3589
          %3594 = vadd.xlane.f32.xlu0 %v3593
          %v3595 = vpop.xlane.xlu0 %3594
          %v3596 = vmul.f32 %v3592, %v628
          %v3597 = vmul.f32 %v3595, %v628
          %v3598 = vadd.f32 %v3596, 1e-06
          %v3599 = vadd.f32 %v3597, 1e-06
          %v3600 = vrsqrt.pop %v3598
          %v3601 = vmul.f32 %v3600, %v3598
          %v3602 = vmul.f32 %v3601, %v3600
          %v3603 = vmul.f32 0.5, %v3602
          %v3604 = vsub.f32 1.5, %v3603
          %v3605 = vmul.f32 %v3600, %v3604
          %vm3606 = vweird.f32 %v3598
          %vm3607 = vweird.f32 %v3600
          %vm3608 = vmor %vm3606, %vm3607
          %v3609 = vsel %vm3608, %v3600, %v3605
          %v3610 = vrsqrt.pop %v3599
          %v3611 = vmul.f32 %v3610, %v3599
          %v3612 = vmul.f32 %v3611, %v3610
          %v3613 = vmul.f32 0.5, %v3612
          %v3614 = vsub.f32 1.5, %v3613
          %v3615 = vmul.f32 %v3610, %v3614
          %vm3616 = vweird.f32 %v3599
          %vm3617 = vweird.f32 %v3610
          %vm3618 = vmor %vm3616, %vm3617
          %v3619 = vsel %vm3618, %v3610, %v3615
          %v3620 = vmul.f32 %v3581, %v3609
          %v3621 = vmul.f32 %v3582, %v3609
          %v3622 = vmul.f32 %v3583, %v3619
          %v3623 = vmul.f32 %v3584, %v3619
          %v3625 = vperm.slane %v3585, 0
          %v3626 = vperm.slane %v3585, 1
          %v3629 = vmul.f32 %v3620, %v3625
          %v3630 = vmul.f32 %v3621, %v3626
          %v3631 = vmul.f32 %v3622, %v3625
          %v3632 = vmul.f32 %v3623, %v3626
          %3633 = vst [vmem:[#allocation13] sm:$0xff] %v3629
          %3634 = vst [vmem:[#allocation13 + $0x8] sm:$0xff] %v3630
          %3635 = vst [vmem:[#allocation13 + $0x10] sm:$0xff] %v3631
          %3636 = vst [vmem:[#allocation13 + $0x18] sm:$0xff] %v3632
        $region88: #{qwen_model_forward.1} parent=63 // pred_fallthru
          _
        // Predicated region
        $region89: #{qwen_model_forward.1} parent=63 // pred_check
          %p3637 = pneg %p311
        $region90: #{qwen_model_forward.1} parent=63 // pred_check_branch
          %3639 = sbr.rel (%p3637) target = $region92
        $region91: #{qwen_model_forward.1} parent=63 // pred_region
          %3641 = vsyncadd [#allocation7], 0
          %s3642 = sshll.u32 [#allocation13], 4
          %s3643 = int_to_ptr.vmem [resolvable:$true] %s3642
          %s3644 = sshll.u32 %s11, 4
          %s3645 = int_to_ptr.hbm [resolvable:$true] %s3644
          %3650 = dma.vmem_to_hbm [thread:$0]  %s3643, 512, %s3645, [#allocation7], 256, 256, 16
        $region92: #{qwen_model_forward.1} parent=63 // pred_fallthru
          _
        // Predicated region
        $region93: #{qwen_model_forward.1} parent=63 // pred_check
          %p3651 = pneg %p311
        $region94: #{qwen_model_forward.1} parent=63 // pred_check_branch
          %3653 = sbr.rel (%p3651) target = $region96
        $region95: #{qwen_model_forward.1} parent=63 // pred_region
          %3655 = dma.done [#allocation7], 512
        $region96: #{qwen_model_forward.1} parent=63 // pred_fallthru
          _
      $region64: #{qwen_model_forward.1} parent=5 // pred_fallthru
        _
      %p3656 = scmp.le.s32.totalorder 2, %s27
      // Predicated region
      $region97: #{qwen_model_forward.1} parent=5 // pred_check
        %p3657 = pneg %p3656
      $region98: #{qwen_model_forward.1} parent=5 // pred_check_branch
        %3659 = sbr.rel (%p3657) target = $region100
      $region99: #{qwen_model_forward.1} parent=5 // pred_region
        %s3660 = ssub.s32 %s27, 2
      $region100: #{qwen_model_forward.1} parent=5 // pred_fallthru
        _
    $region6: #{qwen_model_forward.1} parent=1 // loop_footer
      %s31 = sadd.s32 1, %s27
    $region7: #{qwen_model_forward.1} parent=1 // loop_footer_branch
      %26 = sbr.rel target = $region3
    $region8: #{qwen_model_forward.1} parent=1 // loop_exit
      _
    %3661 = vsyncpa [#allocation6], 1
    %s3662 = scalar_lea.sflag [#allocation6], 1
    %3663 = vsyncpa %s3662, 1
    %3664 = vsyncpa [#allocation9], 1
    %s3665 = scalar_lea.sflag [#allocation9], 1
    %3666 = vsyncpa %s3665, 1
    %3667 = vsyncpa [#allocation12], 1
    %s3668 = scalar_lea.sflag [#allocation12], 1
    %3669 = vsyncpa %s3668, 1
    %3670 = vsyncpa [#allocation7], 1
    %s3671 = scalar_lea.sflag [#allocation7], 1
    %3672 = vsyncpa %s3671, 1

</llo_original>
